<compile_context>
chip_gen: v7x
topology: tpu7x:2x2x1
jax: 0.10.0
libtpu: 0.0.40
codegen_flags: <defaults>
</compile_context>

<pallas_src>
import functools
import numpy as np

import jax
import jax.numpy as jnp
from jax.experimental import pallas as pl
from jax.experimental.pallas import tpu as pltpu

LOG2 = float(np.log(2.0))


def _ssp(y):
    # shifted softplus: log(0.5*exp(y) + 0.5)  (numerically stable form)
    return jnp.maximum(y, 0.0) + jnp.log1p(jnp.exp(-jnp.abs(y))) - LOG2


# ----------------------------------------------------------------------------
# Fused Pallas kernel: whole SchNet forward, VMEM resident
# ----------------------------------------------------------------------------
def _schnet_fused_kernel(
    d_ref, mu_ref, x0_ref,
    w1_ref, b1_ref, w2_ref, b2_ref,
    in2f_w_ref, in2f_b_ref,
    f2out_w_ref, f2out_b_ref,
    out_w_ref, out_b_ref,
    o1_w_ref, o1_b_ref, o2_w_ref, o2_b_ref,
    energy_ref,
    *, gamma, cutoff, n_interactions, n_atoms, n_nbh,
):
    f32 = jnp.float32

    # ---- RBF expansion + cosine cutoff (EUP transcendentals, VMEM only) ----
    d = d_ref[...]                              # (NBH*A, 1), neighbor-major
    mu = mu_ref[...]                            # (1, G)
    diff = d - mu                               # (NBH*A, G)
    rbf = jnp.exp(-gamma * diff * diff)
    fc = 0.5 * (jnp.cos(d * (np.pi / cutoff)) + 1.0)
    # cutoff zeroing == neighbor mask (fixed cyclic table), so no extra mask.
    fc = jnp.where(d < cutoff, fc, 0.0)         # (NBH*A, 1)

    x = x0_ref[...]                             # (A, F)

    for t in range(n_interactions):             # static unroll (T = 2)
        # filter-generating network on the RBF expansion; fold fc in once.
        w = jnp.dot(rbf, w1_ref[t], preferred_element_type=f32) + b1_ref[t]
        w = _ssp(w)
        w = jnp.dot(w, w2_ref[t], preferred_element_type=f32) + b2_ref[t]
        w = w * fc                              # (NBH*A, F)

        # cfconv: in2f then neighbor aggregation via cyclic sublane rolls.
        y = jnp.dot(x, in2f_w_ref[t], preferred_element_type=f32) + in2f_b_ref[t]
        agg = jnp.zeros_like(y)                 # (A, F)
        for k in range(n_nbh):
            # nbrs[i, k] = (i + k + 1) % A  ->  roll(y, A-1-k)[i] = y[(i+k+1)%A]
            y_k = pltpu.roll(y, shift=n_atoms - 1 - k, axis=0)
            agg = agg + y_k * w[k * n_atoms:(k + 1) * n_atoms, :]

        v = _ssp(jnp.dot(agg, f2out_w_ref[t], preferred_element_type=f32)
                 + f2out_b_ref[t])
        v = jnp.dot(v, out_w_ref[t], preferred_element_type=f32) + out_b_ref[t]
        x = x + v

    # ---- Atomwise output MLP + energy sum (atom mask is all ones) ----------
    h = _ssp(jnp.dot(x, o1_w_ref[...], preferred_element_type=f32) + o1_b_ref[...])
    yi = jnp.dot(h, o2_w_ref[...], preferred_element_type=f32) + o2_b_ref[...]
    energy_ref[...] = jnp.sum(yi, keepdims=True)        # (1, 1), single store


# ----------------------------------------------------------------------------
# Parameter construction (deterministic, synthetic, interaction-stacked)
# ----------------------------------------------------------------------------
def init_params(key, n_features=32, n_gaussians=16, n_interactions=2,
                max_z=20, cutoff=5.0):
    F, G, T = n_features, n_gaussians, n_interactions
    keys = iter(jax.random.split(key, 8))

    def mat(shape):
        fan_in = shape[-2]
        return jax.random.normal(next(keys), shape, jnp.float32) / np.sqrt(fan_in)

    params = {
        "embedding": jax.random.normal(next(keys), (max_z, F), jnp.float32) * 0.1,
        "mu": jnp.linspace(0.0, cutoff, G).astype(jnp.float32)[None, :],   # (1, G)
        # interaction blocks stacked over the (static) interaction axis T
        "w1": mat((T, G, F)),      "b1": jnp.zeros((T, 1, F), jnp.float32),
        "w2": mat((T, F, F)),      "b2": jnp.zeros((T, 1, F), jnp.float32),
        "in2f_w": mat((T, F, F)),  "in2f_b": jnp.zeros((T, 1, F), jnp.float32),
        "f2out_w": mat((T, F, F)), "f2out_b": jnp.zeros((T, 1, F), jnp.float32),
        "out_w": mat((T, F, F)),   "out_b": jnp.zeros((T, 1, F), jnp.float32),
        # atom-wise output MLP
        "o1_w": mat((F, F // 2)),  "o1_b": jnp.zeros((1, F // 2), jnp.float32),
        "o2_w": mat((F // 2, 1)),  "o2_b": jnp.zeros((1, 1), jnp.float32),
    }
    gamma = 0.5 / (cutoff / (G - 1)) ** 2
    return params, float(gamma)


# ----------------------------------------------------------------------------
# SchNetForcePBC forward
# ----------------------------------------------------------------------------
def schnet_force_pbc_forward(params, positions_nm, boxvectors_nm,
                             atomic_numbers, nn_index,
                             *, gamma, cutoff, n_interactions):
    # nm -> Angstrom (matches `positions * 10`, `boxvectors * 10`)
    positions = positions_nm * 10.0
    cell = boxvectors_nm * 10.0

    pos = positions[nn_index]                      # (A, 3)
    A = pos.shape[0]
    NBH = A - 1

    # --- neighbor environment (glue; PBC minimum image, fixed cyclic table) ---
    nbrs = (jnp.arange(1, A)[None, :] + jnp.arange(A)[:, None]) % A    # (A, NBH)
    pos_j = pos[nbrs]                                                  # (A, NBH, 3)
    inv_cell = jnp.linalg.inv(cell)
    disp = pos[:, None, :] - pos_j
    cell_shift = jnp.round(disp @ inv_cell)        # number of cell lengths
    dvec = pos_j + cell_shift @ cell - pos[:, None, :]
    d = jnp.sqrt(jnp.sum(dvec * dvec, axis=-1))    # (A, NBH)
    # neighbor-major layout: row k*A + i holds d(atom i, neighbor slot k)
    d_flat = d.T.reshape(NBH * A, 1)

    # embedding lookup (glue gather)
    x0 = params["embedding"][atomic_numbers].astype(jnp.float32)       # (A, F)

    vmem = pl.BlockSpec(memory_space=pltpu.MemorySpace.VMEM)
    kernel = functools.partial(
        _schnet_fused_kernel, gamma=float(gamma), cutoff=float(cutoff),
        n_interactions=int(n_interactions), n_atoms=A, n_nbh=NBH)

    energy = pl.pallas_call(
        kernel,
        out_shape=jax.ShapeDtypeStruct((1, 1), jnp.float32),
        in_specs=[vmem] * 17,
        out_specs=vmem,
    )(d_flat, params["mu"], x0,
      params["w1"], params["b1"], params["w2"], params["b2"],
      params["in2f_w"], params["in2f_b"],
      params["f2out_w"], params["f2out_b"],
      params["out_w"], params["out_b"],
      params["o1_w"], params["o1_b"], params["o2_w"], params["o2_b"])
    return energy[0, 0]


# ----------------------------------------------------------------------------
if __name__ == "__main__":
    key = jax.random.PRNGKey(0)
    k_pos, k_par = jax.random.split(key)

    n_atoms = 8
    atomic_numbers = jnp.array([8, 1, 1, 8, 1, 1, 6, 6], dtype=jnp.int32)
    nn_index = jnp.arange(n_atoms, dtype=jnp.int32)
    cutoff = 5.0                 # Angstrom (after nm -> Angstrom scaling)
    box_nm = 1.2                 # 12 Angstrom box -> minimum image valid (12/2 > 5)

    positions_nm = jax.random.uniform(k_pos, (n_atoms, 3), jnp.float32) * box_nm
    boxvectors_nm = jnp.eye(3, dtype=jnp.float32) * box_nm

    params, gamma = init_params(k_par, n_features=32, n_gaussians=16,
                                n_interactions=2, max_z=20, cutoff=cutoff)

    fwd = jax.jit(functools.partial(schnet_force_pbc_forward,
                                    gamma=gamma, cutoff=cutoff, n_interactions=2))
    energy = fwd(params, positions_nm, boxvectors_nm, atomic_numbers, nn_index)
    jax.block_until_ready(energy)
    assert energy.shape == () and energy.dtype == jnp.float32
    print("KERNEL_OK")
</pallas_src>

<mosaic_0001>
module attributes {stable_mosaic.version = 11 : i64} {
  func.func @_schnet_fused_kernel(%arg0: memref<56x1xf32, #tpu.memory_space<vmem>>, %arg1: memref<1x16xf32, #tpu.memory_space<vmem>>, %arg2: memref<8x32xf32, #tpu.memory_space<vmem>>, %arg3: memref<2x16x32xf32, #tpu.memory_space<vmem>>, %arg4: memref<2x1x32xf32, #tpu.memory_space<vmem>>, %arg5: memref<2x32x32xf32, #tpu.memory_space<vmem>>, %arg6: memref<2x1x32xf32, #tpu.memory_space<vmem>>, %arg7: memref<2x32x32xf32, #tpu.memory_space<vmem>>, %arg8: memref<2x1x32xf32, #tpu.memory_space<vmem>>, %arg9: memref<2x32x32xf32, #tpu.memory_space<vmem>>, %arg10: memref<2x1x32xf32, #tpu.memory_space<vmem>>, %arg11: memref<2x32x32xf32, #tpu.memory_space<vmem>>, %arg12: memref<2x1x32xf32, #tpu.memory_space<vmem>>, %arg13: memref<32x16xf32, #tpu.memory_space<vmem>>, %arg14: memref<1x16xf32, #tpu.memory_space<vmem>>, %arg15: memref<16x1xf32, #tpu.memory_space<vmem>>, %arg16: memref<1x1xf32, #tpu.memory_space<vmem>>, %arg17: memref<1x1xf32, #tpu.memory_space<vmem>>) attributes {dimension_semantics = [], scalar_prefetch = 0 : i64, scratch_operands = 0 : i64, tpu.core_type = #tpu.core_type<tc>} {
    %c0 = arith.constant 0 : index
    %c0_0 = arith.constant 0 : index
    %0 = vector.load %arg0[%c0, %c0_0] : memref<56x1xf32, #tpu.memory_space<vmem>>, vector<56x1xf32>
    %c0_1 = arith.constant 0 : index
    %c0_2 = arith.constant 0 : index
    %1 = vector.load %arg1[%c0_1, %c0_2] : memref<1x16xf32, #tpu.memory_space<vmem>>, vector<1x16xf32>
    %2 = vector.broadcast %0 : vector<56x1xf32> to vector<56x16xf32>
    %3 = vector.broadcast %1 : vector<1x16xf32> to vector<56x16xf32>
    %4 = arith.subf %2, %3 : vector<56x16xf32>
    %cst = arith.constant -4.500000e+00 : f32
    %5 = vector.broadcast %cst : f32 to vector<56x16xf32>
    %6 = arith.mulf %5, %4 : vector<56x16xf32>
    %7 = arith.mulf %6, %4 : vector<56x16xf32>
    %8 = math.exp %7 : vector<56x16xf32>
    %cst_3 = arith.constant 0.628318548 : f32
    %9 = vector.broadcast %cst_3 : f32 to vector<56x1xf32>
    %10 = arith.mulf %0, %9 : vector<56x1xf32>
    %11 = math.cos %10 : vector<56x1xf32>
    %cst_4 = arith.constant 1.000000e+00 : f32
    %12 = vector.broadcast %cst_4 : f32 to vector<56x1xf32>
    %13 = arith.addf %11, %12 : vector<56x1xf32>
    %cst_5 = arith.constant 5.000000e-01 : f32
    %14 = vector.broadcast %cst_5 : f32 to vector<56x1xf32>
    %15 = arith.mulf %14, %13 : vector<56x1xf32>
    %cst_6 = arith.constant 5.000000e+00 : f32
    %16 = vector.broadcast %cst_6 : f32 to vector<56x1xf32>
    %17 = arith.cmpf olt, %0, %16 : vector<56x1xf32>
    %cst_7 = arith.constant 0.000000e+00 : f32
    %18 = vector.broadcast %cst_7 : f32 to vector<56x1xf32>
    %19 = arith.select %17, %15, %18 : vector<56x1xi1>, vector<56x1xf32>
    %c0_8 = arith.constant 0 : index
    %c0_9 = arith.constant 0 : index
    %20 = vector.load %arg2[%c0_8, %c0_9] : memref<8x32xf32, #tpu.memory_space<vmem>>, vector<8x32xf32>
    %c0_10 = arith.constant 0 : index
    %c0_11 = arith.constant 0 : index
    %c0_12 = arith.constant 0 : index
    %21 = vector.load %arg3[%c0_10, %c0_11, %c0_12] : memref<2x16x32xf32, #tpu.memory_space<vmem>>, vector<1x16x32xf32>
    %22 = vector.shape_cast %21 : vector<1x16x32xf32> to vector<16x32xf32>
    %cst_13 = arith.constant dense<0.000000e+00> : vector<56x32xf32>
    %23 = tpu.matmul %8, %22, %cst_13 {dimension_numbers = #tpu.dot_dimension_numbers<[1], [0], [0], [1], [0, 0, 1, 1], [], []>} : vector<56x16xf32>, vector<16x32xf32>, vector<56x32xf32> -> vector<56x32xf32>
    %c0_14 = arith.constant 0 : index
    %c0_15 = arith.constant 0 : index
    %c0_16 = arith.constant 0 : index
    %24 = vector.load %arg4[%c0_14, %c0_15, %c0_16] : memref<2x1x32xf32, #tpu.memory_space<vmem>>, vector<1x1x32xf32>
    %25 = vector.shape_cast %24 : vector<1x1x32xf32> to vector<1x32xf32>
    %26 = vector.broadcast %25 : vector<1x32xf32> to vector<56x32xf32>
    %27 = arith.addf %23, %26 : vector<56x32xf32>
    %cst_17 = arith.constant 0.000000e+00 : f32
    %28 = vector.broadcast %cst_17 : f32 to vector<56x32xf32>
    %29 = arith.maximumf %27, %28 : vector<56x32xf32>
    %30 = math.absf %27 : vector<56x32xf32>
    %cst_18 = arith.constant 0.000000e+00 : f32
    %31 = vector.broadcast %cst_18 : f32 to vector<56x32xf32>
    %32 = arith.subf %31, %30 : vector<56x32xf32>
    %33 = math.exp %32 : vector<56x32xf32>
    %34 = math.log1p %33 : vector<56x32xf32>
    %35 = arith.addf %29, %34 : vector<56x32xf32>
    %cst_19 = arith.constant 0.693147182 : f32
    %36 = vector.broadcast %cst_19 : f32 to vector<56x32xf32>
    %37 = arith.subf %35, %36 : vector<56x32xf32>
    %c0_20 = arith.constant 0 : index
    %c0_21 = arith.constant 0 : index
    %c0_22 = arith.constant 0 : index
    %38 = vector.load %arg5[%c0_20, %c0_21, %c0_22] : memref<2x32x32xf32, #tpu.memory_space<vmem>>, vector<1x32x32xf32>
    %39 = vector.shape_cast %38 : vector<1x32x32xf32> to vector<32x32xf32>
    %cst_23 = arith.constant dense<0.000000e+00> : vector<56x32xf32>
    %40 = tpu.matmul %37, %39, %cst_23 {dimension_numbers = #tpu.dot_dimension_numbers<[1], [0], [0], [1], [0, 0, 1, 1], [], []>} : vector<56x32xf32>, vector<32x32xf32>, vector<56x32xf32> -> vector<56x32xf32>
    %c0_24 = arith.constant 0 : index
    %c0_25 = arith.constant 0 : index
    %c0_26 = arith.constant 0 : index
    %41 = vector.load %arg6[%c0_24, %c0_25, %c0_26] : memref<2x1x32xf32, #tpu.memory_space<vmem>>, vector<1x1x32xf32>
    %42 = vector.shape_cast %41 : vector<1x1x32xf32> to vector<1x32xf32>
    %43 = vector.broadcast %42 : vector<1x32xf32> to vector<56x32xf32>
    %44 = arith.addf %40, %43 : vector<56x32xf32>
    %45 = vector.broadcast %19 : vector<56x1xf32> to vector<56x32xf32>
    %46 = arith.mulf %44, %45 : vector<56x32xf32>
    %c0_27 = arith.constant 0 : index
    %c0_28 = arith.constant 0 : index
    %c0_29 = arith.constant 0 : index
    %47 = vector.load %arg7[%c0_27, %c0_28, %c0_29] : memref<2x32x32xf32, #tpu.memory_space<vmem>>, vector<1x32x32xf32>
    %48 = vector.shape_cast %47 : vector<1x32x32xf32> to vector<32x32xf32>
    %cst_30 = arith.constant dense<0.000000e+00> : vector<8x32xf32>
    %49 = tpu.matmul %20, %48, %cst_30 {dimension_numbers = #tpu.dot_dimension_numbers<[1], [0], [0], [1], [0, 0, 1, 1], [], []>} : vector<8x32xf32>, vector<32x32xf32>, vector<8x32xf32> -> vector<8x32xf32>
    %c0_31 = arith.constant 0 : index
    %c0_32 = arith.constant 0 : index
    %c0_33 = arith.constant 0 : index
    %50 = vector.load %arg8[%c0_31, %c0_32, %c0_33] : memref<2x1x32xf32, #tpu.memory_space<vmem>>, vector<1x1x32xf32>
    %51 = vector.shape_cast %50 : vector<1x1x32xf32> to vector<1x32xf32>
    %52 = vector.broadcast %51 : vector<1x32xf32> to vector<8x32xf32>
    %53 = arith.addf %49, %52 : vector<8x32xf32>
    %cst_34 = arith.constant 0.000000e+00 : f32
    %54 = vector.broadcast %cst_34 : f32 to vector<8x32xf32>
    %c7_i32 = arith.constant 7 : i32
    %55 = tpu.dynamic_rotate %53 by %c7_i32 dim 0 : vector<8x32xf32>, i32 -> vector<8x32xf32>
    %56 = vector.extract_strided_slice %46 {offsets = [0, 0], sizes = [8, 32], strides = [1, 1]} : vector<56x32xf32> to vector<8x32xf32>
    %57 = arith.mulf %55, %56 : vector<8x32xf32>
    %58 = arith.addf %54, %57 : vector<8x32xf32>
    %c6_i32 = arith.constant 6 : i32
    %59 = tpu.dynamic_rotate %53 by %c6_i32 dim 0 : vector<8x32xf32>, i32 -> vector<8x32xf32>
    %60 = vector.extract_strided_slice %46 {offsets = [8, 0], sizes = [8, 32], strides = [1, 1]} : vector<56x32xf32> to vector<8x32xf32>
    %61 = arith.mulf %59, %60 : vector<8x32xf32>
    %62 = arith.addf %58, %61 : vector<8x32xf32>
    %c5_i32 = arith.constant 5 : i32
    %63 = tpu.dynamic_rotate %53 by %c5_i32 dim 0 : vector<8x32xf32>, i32 -> vector<8x32xf32>
    %64 = vector.extract_strided_slice %46 {offsets = [16, 0], sizes = [8, 32], strides = [1, 1]} : vector<56x32xf32> to vector<8x32xf32>
    %65 = arith.mulf %63, %64 : vector<8x32xf32>
    %66 = arith.addf %62, %65 : vector<8x32xf32>
    %c4_i32 = arith.constant 4 : i32
    %67 = tpu.dynamic_rotate %53 by %c4_i32 dim 0 : vector<8x32xf32>, i32 -> vector<8x32xf32>
    %68 = vector.extract_strided_slice %46 {offsets = [24, 0], sizes = [8, 32], strides = [1, 1]} : vector<56x32xf32> to vector<8x32xf32>
    %69 = arith.mulf %67, %68 : vector<8x32xf32>
    %70 = arith.addf %66, %69 : vector<8x32xf32>
    %c3_i32 = arith.constant 3 : i32
    %71 = tpu.dynamic_rotate %53 by %c3_i32 dim 0 : vector<8x32xf32>, i32 -> vector<8x32xf32>
    %72 = vector.extract_strided_slice %46 {offsets = [32, 0], sizes = [8, 32], strides = [1, 1]} : vector<56x32xf32> to vector<8x32xf32>
    %73 = arith.mulf %71, %72 : vector<8x32xf32>
    %74 = arith.addf %70, %73 : vector<8x32xf32>
    %c2_i32 = arith.constant 2 : i32
    %75 = tpu.dynamic_rotate %53 by %c2_i32 dim 0 : vector<8x32xf32>, i32 -> vector<8x32xf32>
    %76 = vector.extract_strided_slice %46 {offsets = [40, 0], sizes = [8, 32], strides = [1, 1]} : vector<56x32xf32> to vector<8x32xf32>
    %77 = arith.mulf %75, %76 : vector<8x32xf32>
    %78 = arith.addf %74, %77 : vector<8x32xf32>
    %c1_i32 = arith.constant 1 : i32
    %79 = tpu.dynamic_rotate %53 by %c1_i32 dim 0 : vector<8x32xf32>, i32 -> vector<8x32xf32>
    %80 = vector.extract_strided_slice %46 {offsets = [48, 0], sizes = [8, 32], strides = [1, 1]} : vector<56x32xf32> to vector<8x32xf32>
    %81 = arith.mulf %79, %80 : vector<8x32xf32>
    %82 = arith.addf %78, %81 : vector<8x32xf32>
    %c0_35 = arith.constant 0 : index
    %c0_36 = arith.constant 0 : index
    %c0_37 = arith.constant 0 : index
    %83 = vector.load %arg9[%c0_35, %c0_36, %c0_37] : memref<2x32x32xf32, #tpu.memory_space<vmem>>, vector<1x32x32xf32>
    %84 = vector.shape_cast %83 : vector<1x32x32xf32> to vector<32x32xf32>
    %cst_38 = arith.constant dense<0.000000e+00> : vector<8x32xf32>
    %85 = tpu.matmul %82, %84, %cst_38 {dimension_numbers = #tpu.dot_dimension_numbers<[1], [0], [0], [1], [0, 0, 1, 1], [], []>} : vector<8x32xf32>, vector<32x32xf32>, vector<8x32xf32> -> vector<8x32xf32>
    %c0_39 = arith.constant 0 : index
    %c0_40 = arith.constant 0 : index
    %c0_41 = arith.constant 0 : index
    %86 = vector.load %arg10[%c0_39, %c0_40, %c0_41] : memref<2x1x32xf32, #tpu.memory_space<vmem>>, vector<1x1x32xf32>
    %87 = vector.shape_cast %86 : vector<1x1x32xf32> to vector<1x32xf32>
    %88 = vector.broadcast %87 : vector<1x32xf32> to vector<8x32xf32>
    %89 = arith.addf %85, %88 : vector<8x32xf32>
    %cst_42 = arith.constant 0.000000e+00 : f32
    %90 = vector.broadcast %cst_42 : f32 to vector<8x32xf32>
    %91 = arith.maximumf %89, %90 : vector<8x32xf32>
    %92 = math.absf %89 : vector<8x32xf32>
    %cst_43 = arith.constant 0.000000e+00 : f32
    %93 = vector.broadcast %cst_43 : f32 to vector<8x32xf32>
    %94 = arith.subf %93, %92 : vector<8x32xf32>
    %95 = math.exp %94 : vector<8x32xf32>
    %96 = math.log1p %95 : vector<8x32xf32>
    %97 = arith.addf %91, %96 : vector<8x32xf32>
    %cst_44 = arith.constant 0.693147182 : f32
    %98 = vector.broadcast %cst_44 : f32 to vector<8x32xf32>
    %99 = arith.subf %97, %98 : vector<8x32xf32>
    %c0_45 = arith.constant 0 : index
    %c0_46 = arith.constant 0 : index
    %c0_47 = arith.constant 0 : index
    %100 = vector.load %arg11[%c0_45, %c0_46, %c0_47] : memref<2x32x32xf32, #tpu.memory_space<vmem>>, vector<1x32x32xf32>
    %101 = vector.shape_cast %100 : vector<1x32x32xf32> to vector<32x32xf32>
    %cst_48 = arith.constant dense<0.000000e+00> : vector<8x32xf32>
    %102 = tpu.matmul %99, %101, %cst_48 {dimension_numbers = #tpu.dot_dimension_numbers<[1], [0], [0], [1], [0, 0, 1, 1], [], []>} : vector<8x32xf32>, vector<32x32xf32>, vector<8x32xf32> -> vector<8x32xf32>
    %c0_49 = arith.constant 0 : index
    %c0_50 = arith.constant 0 : index
    %c0_51 = arith.constant 0 : index
    %103 = vector.load %arg12[%c0_49, %c0_50, %c0_51] : memref<2x1x32xf32, #tpu.memory_space<vmem>>, vector<1x1x32xf32>
    %104 = vector.shape_cast %103 : vector<1x1x32xf32> to vector<1x32xf32>
    %105 = vector.broadcast %104 : vector<1x32xf32> to vector<8x32xf32>
    %106 = arith.addf %102, %105 : vector<8x32xf32>
    %107 = arith.addf %20, %106 : vector<8x32xf32>
    %c1 = arith.constant 1 : index
    %c0_52 = arith.constant 0 : index
    %c0_53 = arith.constant 0 : index
    %108 = vector.load %arg3[%c1, %c0_52, %c0_53] : memref<2x16x32xf32, #tpu.memory_space<vmem>>, vector<1x16x32xf32>
    %109 = vector.shape_cast %108 : vector<1x16x32xf32> to vector<16x32xf32>
    %cst_54 = arith.constant dense<0.000000e+00> : vector<56x32xf32>
    %110 = tpu.matmul %8, %109, %cst_54 {dimension_numbers = #tpu.dot_dimension_numbers<[1], [0], [0], [1], [0, 0, 1, 1], [], []>} : vector<56x16xf32>, vector<16x32xf32>, vector<56x32xf32> -> vector<56x32xf32>
    %c1_55 = arith.constant 1 : index
    %c0_56 = arith.constant 0 : index
    %c0_57 = arith.constant 0 : index
    %111 = vector.load %arg4[%c1_55, %c0_56, %c0_57] : memref<2x1x32xf32, #tpu.memory_space<vmem>>, vector<1x1x32xf32>
    %112 = vector.shape_cast %111 : vector<1x1x32xf32> to vector<1x32xf32>
    %113 = vector.broadcast %112 : vector<1x32xf32> to vector<56x32xf32>
    %114 = arith.addf %110, %113 : vector<56x32xf32>
    %cst_58 = arith.constant 0.000000e+00 : f32
    %115 = vector.broadcast %cst_58 : f32 to vector<56x32xf32>
    %116 = arith.maximumf %114, %115 : vector<56x32xf32>
    %117 = math.absf %114 : vector<56x32xf32>
    %cst_59 = arith.constant 0.000000e+00 : f32
    %118 = vector.broadcast %cst_59 : f32 to vector<56x32xf32>
    %119 = arith.subf %118, %117 : vector<56x32xf32>
    %120 = math.exp %119 : vector<56x32xf32>
    %121 = math.log1p %120 : vector<56x32xf32>
    %122 = arith.addf %116, %121 : vector<56x32xf32>
    %cst_60 = arith.constant 0.693147182 : f32
    %123 = vector.broadcast %cst_60 : f32 to vector<56x32xf32>
    %124 = arith.subf %122, %123 : vector<56x32xf32>
    %c1_61 = arith.constant 1 : index
    %c0_62 = arith.constant 0 : index
    %c0_63 = arith.constant 0 : index
    %125 = vector.load %arg5[%c1_61, %c0_62, %c0_63] : memref<2x32x32xf32, #tpu.memory_space<vmem>>, vector<1x32x32xf32>
    %126 = vector.shape_cast %125 : vector<1x32x32xf32> to vector<32x32xf32>
    %cst_64 = arith.constant dense<0.000000e+00> : vector<56x32xf32>
    %127 = tpu.matmul %124, %126, %cst_64 {dimension_numbers = #tpu.dot_dimension_numbers<[1], [0], [0], [1], [0, 0, 1, 1], [], []>} : vector<56x32xf32>, vector<32x32xf32>, vector<56x32xf32> -> vector<56x32xf32>
    %c1_65 = arith.constant 1 : index
    %c0_66 = arith.constant 0 : index
    %c0_67 = arith.constant 0 : index
    %128 = vector.load %arg6[%c1_65, %c0_66, %c0_67] : memref<2x1x32xf32, #tpu.memory_space<vmem>>, vector<1x1x32xf32>
    %129 = vector.shape_cast %128 : vector<1x1x32xf32> to vector<1x32xf32>
    %130 = vector.broadcast %129 : vector<1x32xf32> to vector<56x32xf32>
    %131 = arith.addf %127, %130 : vector<56x32xf32>
    %132 = vector.broadcast %19 : vector<56x1xf32> to vector<56x32xf32>
    %133 = arith.mulf %131, %132 : vector<56x32xf32>
    %c1_68 = arith.constant 1 : index
    %c0_69 = arith.constant 0 : index
    %c0_70 = arith.constant 0 : index
    %134 = vector.load %arg7[%c1_68, %c0_69, %c0_70] : memref<2x32x32xf32, #tpu.memory_space<vmem>>, vector<1x32x32xf32>
    %135 = vector.shape_cast %134 : vector<1x32x32xf32> to vector<32x32xf32>
    %cst_71 = arith.constant dense<0.000000e+00> : vector<8x32xf32>
    %136 = tpu.matmul %107, %135, %cst_71 {dimension_numbers = #tpu.dot_dimension_numbers<[1], [0], [0], [1], [0, 0, 1, 1], [], []>} : vector<8x32xf32>, vector<32x32xf32>, vector<8x32xf32> -> vector<8x32xf32>
    %c1_72 = arith.constant 1 : index
    %c0_73 = arith.constant 0 : index
    %c0_74 = arith.constant 0 : index
    %137 = vector.load %arg8[%c1_72, %c0_73, %c0_74] : memref<2x1x32xf32, #tpu.memory_space<vmem>>, vector<1x1x32xf32>
    %138 = vector.shape_cast %137 : vector<1x1x32xf32> to vector<1x32xf32>
    %139 = vector.broadcast %138 : vector<1x32xf32> to vector<8x32xf32>
    %140 = arith.addf %136, %139 : vector<8x32xf32>
    %cst_75 = arith.constant 0.000000e+00 : f32
    %141 = vector.broadcast %cst_75 : f32 to vector<8x32xf32>
    %c7_i32_76 = arith.constant 7 : i32
    %142 = tpu.dynamic_rotate %140 by %c7_i32_76 dim 0 : vector<8x32xf32>, i32 -> vector<8x32xf32>
    %143 = vector.extract_strided_slice %133 {offsets = [0, 0], sizes = [8, 32], strides = [1, 1]} : vector<56x32xf32> to vector<8x32xf32>
    %144 = arith.mulf %142, %143 : vector<8x32xf32>
    %145 = arith.addf %141, %144 : vector<8x32xf32>
    %c6_i32_77 = arith.constant 6 : i32
    %146 = tpu.dynamic_rotate %140 by %c6_i32_77 dim 0 : vector<8x32xf32>, i32 -> vector<8x32xf32>
    %147 = vector.extract_strided_slice %133 {offsets = [8, 0], sizes = [8, 32], strides = [1, 1]} : vector<56x32xf32> to vector<8x32xf32>
    %148 = arith.mulf %146, %147 : vector<8x32xf32>
    %149 = arith.addf %145, %148 : vector<8x32xf32>
    %c5_i32_78 = arith.constant 5 : i32
    %150 = tpu.dynamic_rotate %140 by %c5_i32_78 dim 0 : vector<8x32xf32>, i32 -> vector<8x32xf32>
    %151 = vector.extract_strided_slice %133 {offsets = [16, 0], sizes = [8, 32], strides = [1, 1]} : vector<56x32xf32> to vector<8x32xf32>
    %152 = arith.mulf %150, %151 : vector<8x32xf32>
    %153 = arith.addf %149, %152 : vector<8x32xf32>
    %c4_i32_79 = arith.constant 4 : i32
    %154 = tpu.dynamic_rotate %140 by %c4_i32_79 dim 0 : vector<8x32xf32>, i32 -> vector<8x32xf32>
    %155 = vector.extract_strided_slice %133 {offsets = [24, 0], sizes = [8, 32], strides = [1, 1]} : vector<56x32xf32> to vector<8x32xf32>
    %156 = arith.mulf %154, %155 : vector<8x32xf32>
    %157 = arith.addf %153, %156 : vector<8x32xf32>
    %c3_i32_80 = arith.constant 3 : i32
    %158 = tpu.dynamic_rotate %140 by %c3_i32_80 dim 0 : vector<8x32xf32>, i32 -> vector<8x32xf32>
    %159 = vector.extract_strided_slice %133 {offsets = [32, 0], sizes = [8, 32], strides = [1, 1]} : vector<56x32xf32> to vector<8x32xf32>
    %160 = arith.mulf %158, %159 : vector<8x32xf32>
    %161 = arith.addf %157, %160 : vector<8x32xf32>
    %c2_i32_81 = arith.constant 2 : i32
    %162 = tpu.dynamic_rotate %140 by %c2_i32_81 dim 0 : vector<8x32xf32>, i32 -> vector<8x32xf32>
    %163 = vector.extract_strided_slice %133 {offsets = [40, 0], sizes = [8, 32], strides = [1, 1]} : vector<56x32xf32> to vector<8x32xf32>
    %164 = arith.mulf %162, %163 : vector<8x32xf32>
    %165 = arith.addf %161, %164 : vector<8x32xf32>
    %c1_i32_82 = arith.constant 1 : i32
    %166 = tpu.dynamic_rotate %140 by %c1_i32_82 dim 0 : vector<8x32xf32>, i32 -> vector<8x32xf32>
    %167 = vector.extract_strided_slice %133 {offsets = [48, 0], sizes = [8, 32], strides = [1, 1]} : vector<56x32xf32> to vector<8x32xf32>
    %168 = arith.mulf %166, %167 : vector<8x32xf32>
    %169 = arith.addf %165, %168 : vector<8x32xf32>
    %c1_83 = arith.constant 1 : index
    %c0_84 = arith.constant 0 : index
    %c0_85 = arith.constant 0 : index
    %170 = vector.load %arg9[%c1_83, %c0_84, %c0_85] : memref<2x32x32xf32, #tpu.memory_space<vmem>>, vector<1x32x32xf32>
    %171 = vector.shape_cast %170 : vector<1x32x32xf32> to vector<32x32xf32>
    %cst_86 = arith.constant dense<0.000000e+00> : vector<8x32xf32>
    %172 = tpu.matmul %169, %171, %cst_86 {dimension_numbers = #tpu.dot_dimension_numbers<[1], [0], [0], [1], [0, 0, 1, 1], [], []>} : vector<8x32xf32>, vector<32x32xf32>, vector<8x32xf32> -> vector<8x32xf32>
    %c1_87 = arith.constant 1 : index
    %c0_88 = arith.constant 0 : index
    %c0_89 = arith.constant 0 : index
    %173 = vector.load %arg10[%c1_87, %c0_88, %c0_89] : memref<2x1x32xf32, #tpu.memory_space<vmem>>, vector<1x1x32xf32>
    %174 = vector.shape_cast %173 : vector<1x1x32xf32> to vector<1x32xf32>
    %175 = vector.broadcast %174 : vector<1x32xf32> to vector<8x32xf32>
    %176 = arith.addf %172, %175 : vector<8x32xf32>
    %cst_90 = arith.constant 0.000000e+00 : f32
    %177 = vector.broadcast %cst_90 : f32 to vector<8x32xf32>
    %178 = arith.maximumf %176, %177 : vector<8x32xf32>
    %179 = math.absf %176 : vector<8x32xf32>
    %cst_91 = arith.constant 0.000000e+00 : f32
    %180 = vector.broadcast %cst_91 : f32 to vector<8x32xf32>
    %181 = arith.subf %180, %179 : vector<8x32xf32>
    %182 = math.exp %181 : vector<8x32xf32>
    %183 = math.log1p %182 : vector<8x32xf32>
    %184 = arith.addf %178, %183 : vector<8x32xf32>
    %cst_92 = arith.constant 0.693147182 : f32
    %185 = vector.broadcast %cst_92 : f32 to vector<8x32xf32>
    %186 = arith.subf %184, %185 : vector<8x32xf32>
    %c1_93 = arith.constant 1 : index
    %c0_94 = arith.constant 0 : index
    %c0_95 = arith.constant 0 : index
    %187 = vector.load %arg11[%c1_93, %c0_94, %c0_95] : memref<2x32x32xf32, #tpu.memory_space<vmem>>, vector<1x32x32xf32>
    %188 = vector.shape_cast %187 : vector<1x32x32xf32> to vector<32x32xf32>
    %cst_96 = arith.constant dense<0.000000e+00> : vector<8x32xf32>
    %189 = tpu.matmul %186, %188, %cst_96 {dimension_numbers = #tpu.dot_dimension_numbers<[1], [0], [0], [1], [0, 0, 1, 1], [], []>} : vector<8x32xf32>, vector<32x32xf32>, vector<8x32xf32> -> vector<8x32xf32>
    %c1_97 = arith.constant 1 : index
    %c0_98 = arith.constant 0 : index
    %c0_99 = arith.constant 0 : index
    %190 = vector.load %arg12[%c1_97, %c0_98, %c0_99] : memref<2x1x32xf32, #tpu.memory_space<vmem>>, vector<1x1x32xf32>
    %191 = vector.shape_cast %190 : vector<1x1x32xf32> to vector<1x32xf32>
    %192 = vector.broadcast %191 : vector<1x32xf32> to vector<8x32xf32>
    %193 = arith.addf %189, %192 : vector<8x32xf32>
    %194 = arith.addf %107, %193 : vector<8x32xf32>
    %c0_100 = arith.constant 0 : index
    %c0_101 = arith.constant 0 : index
    %195 = vector.load %arg13[%c0_100, %c0_101] : memref<32x16xf32, #tpu.memory_space<vmem>>, vector<32x16xf32>
    %cst_102 = arith.constant dense<0.000000e+00> : vector<8x16xf32>
    %196 = tpu.matmul %194, %195, %cst_102 {dimension_numbers = #tpu.dot_dimension_numbers<[1], [0], [0], [1], [0, 0, 1, 1], [], []>} : vector<8x32xf32>, vector<32x16xf32>, vector<8x16xf32> -> vector<8x16xf32>
    %c0_103 = arith.constant 0 : index
    %c0_104 = arith.constant 0 : index
    %197 = vector.load %arg14[%c0_103, %c0_104] : memref<1x16xf32, #tpu.memory_space<vmem>>, vector<1x16xf32>
    %198 = vector.broadcast %197 : vector<1x16xf32> to vector<8x16xf32>
    %199 = arith.addf %196, %198 : vector<8x16xf32>
    %cst_105 = arith.constant 0.000000e+00 : f32
    %200 = vector.broadcast %cst_105 : f32 to vector<8x16xf32>
    %201 = arith.maximumf %199, %200 : vector<8x16xf32>
    %202 = math.absf %199 : vector<8x16xf32>
    %cst_106 = arith.constant 0.000000e+00 : f32
    %203 = vector.broadcast %cst_106 : f32 to vector<8x16xf32>
    %204 = arith.subf %203, %202 : vector<8x16xf32>
    %205 = math.exp %204 : vector<8x16xf32>
    %206 = math.log1p %205 : vector<8x16xf32>
    %207 = arith.addf %201, %206 : vector<8x16xf32>
    %cst_107 = arith.constant 0.693147182 : f32
    %208 = vector.broadcast %cst_107 : f32 to vector<8x16xf32>
    %209 = arith.subf %207, %208 : vector<8x16xf32>
    %c0_108 = arith.constant 0 : index
    %c0_109 = arith.constant 0 : index
    %210 = vector.load %arg15[%c0_108, %c0_109] : memref<16x1xf32, #tpu.memory_space<vmem>>, vector<16x1xf32>
    %cst_110 = arith.constant dense<0.000000e+00> : vector<8x1xf32>
    %211 = tpu.matmul %209, %210, %cst_110 {dimension_numbers = #tpu.dot_dimension_numbers<[1], [0], [0], [1], [0, 0, 1, 1], [], []>} : vector<8x16xf32>, vector<16x1xf32>, vector<8x1xf32> -> vector<8x1xf32>
    %c0_111 = arith.constant 0 : index
    %c0_112 = arith.constant 0 : index
    %212 = vector.load %arg16[%c0_111, %c0_112] : memref<1x1xf32, #tpu.memory_space<vmem>>, vector<1x1xf32>
    %213 = vector.broadcast %212 : vector<1x1xf32> to vector<8x1xf32>
    %214 = arith.addf %211, %213 : vector<8x1xf32>
    %215 = vector.shape_cast %214 : vector<8x1xf32> to vector<1x8x1xf32>
    %cst_113 = arith.constant dense<0.000000e+00> : vector<1xf32>
    %216 = vector.multi_reduction <add>, %215, %cst_113 [1, 2] : vector<1x8x1xf32> to vector<1xf32>
    %217 = vector.shape_cast %216 : vector<1xf32> to vector<1x1x1xf32>
    %218 = vector.extract %217[0, 0, 0] : f32 from vector<1x1x1xf32>
    %219 = vector.broadcast %218 : f32 to vector<1x1xf32>
    %c0_114 = arith.constant 0 : index
    %c0_115 = arith.constant 0 : index
    %220 = vector.load %arg17[%c0_114, %c0_115] : memref<1x1xf32, #tpu.memory_space<vmem>>, vector<1x1xf32>
    tpu.vector_store %arg17[%c0_114, %c0_115], %219 {strides = array<i32>} : memref<1x1xf32, #tpu.memory_space<vmem>>, vector<1x1xf32>,
    return
  }
}

</mosaic_0001>

<llo_original>
// kernel: custom-call.11
$region0: #{custom-call.11}
  %s0 = inlined_call_operand.vmem [shape: f32[3,3], index: 0, kind: input, shape index: {}]
  %s1 = inlined_call_operand.vmem [shape: f32[3,3], index: 1, kind: output, shape index: {0}]
  %s2 = inlined_call_operand.hbm [shape: s32[3], index: 2, kind: output, shape index: {1}]
  %s3 = inlined_call_operand.vmem [shape: s32[3], index: 3, kind: output, shape index: {2}]
  %4 = xla_tuple %s1, %s2, %s3
  $region1: #{custom-call.11} parent=0
    #allocation0 [shape = 'u8[4096]{0}', space=vmem, size = 0x1000, scoped, tag = 'operand span for operand 0']
    #allocation1 [shape = 'u8[2048]{0}', space=vmem, size = 0x800, scoped, tag = 'packed  for operand 0']
    #allocation2 [shape = 'u8[4096]{0}', space=vmem, size = 0x1000, scoped, tag = 'operand span for operand 1']
    #allocation3 [shape = 'u8[2048]{0}', space=vmem, size = 0x800, scoped, tag = 'packed  for operand 1']
    #allocation4 [shape = 'u8[4096]{0}', space=vmem, size = 0x1000, scoped, tag = 'operand span for operand 2']
    #allocation5 [shape = 'u8[512]{0}', space=vmem, size = 0x400, scoped, tag = 'packed  for operand 2']
    #allocation6 [shape = 's32[1]{0}', space=sflag, size = 0x4, scoped, tag = 'scoped memory for custom-call.11']
    #allocation7 [shape = 'u8[4096]{0}', space=vmem, size = 0x1000, scoped, tag = 'operand span for operand 3']
    #allocation8 [shape = 'u8[512]{0}', space=vmem, size = 0x400, scoped, tag = 'packed  for operand 3']
    #allocation9 [shape = 's32[3,128]{1,0}', space=vmem, size = 0x1000, scoped, tag = 'scratch for permutations']
    %5 = vsyncpa [#allocation6], 0
    %p7 = scmp.gt.s32.totalorder 4, 0
    // Predicated region
    $region2: #{custom-call.11} parent=1 // pred_check
      %p8 = pneg %p7
    $region3: #{custom-call.11} parent=1 // pred_check_branch
      %10 = sbr.rel (%p8) target = $region5
    $region4: #{custom-call.11} parent=1 // pred_region
      %s11 = sshra.s32 4, 3
      %p12 = scmp.gt.s32.totalorder %s11, 0
      // Predicated region
      $region6: #{custom-call.11} parent=4 // pred_check
        %p13 = pneg %p12
      $region7: #{custom-call.11} parent=4 // pred_check_branch
        %15 = sbr.rel (%p13) target = $region9
      $region8: #{custom-call.11} parent=4 // pred_region
        %s16 = ssub.s32 %s11, 1
        %s17 = smul.u32 %s16, 128
        %s18 = sshra.s32 %s17, 4
        %s19 = scalar_lea.vmem %s0, %s18
        %v20 = vld [vmem:[%s0] sm:$0xff]
        // While loop
        $region10: #{custom-call.11} parent=8 // loop_pre_header
          _
        $region11: #{custom-call.11} parent=8 // loop_header
          %s21 = sphi %s0, %s43
          %s22 = sphi [#allocation1], %s44
          %v23 = vphi %v20, %v45
          %s24 = ssub.s32 %s19, 64
          %p25 = scmp.gt.s32.totalorder %s21, %s24
        $region12: #{custom-call.11} parent=8 // loop_header_branch
          %27 = sbr.rel (%p25) target = $region16
        $region13: #{custom-call.11} parent=8 // loop_body
          %28 = vst [vmem:[%s22] sm:$0xff] %v23
          %v29 = vld [vmem:[%s21 + $0x8] sm:$0xff]
          %30 = vst [vmem:[%s22 + $0x8] sm:$0xff] %v29
          %v31 = vld [vmem:[%s21 + $0x10] sm:$0xff]
          %32 = vst [vmem:[%s22 + $0x10] sm:$0xff] %v31
          %v33 = vld [vmem:[%s21 + $0x18] sm:$0xff]
          %34 = vst [vmem:[%s22 + $0x18] sm:$0xff] %v33
          %v35 = vld [vmem:[%s21 + $0x20] sm:$0xff]
          %36 = vst [vmem:[%s22 + $0x20] sm:$0xff] %v35
          %v37 = vld [vmem:[%s21 + $0x28] sm:$0xff]
          %38 = vst [vmem:[%s22 + $0x28] sm:$0xff] %v37
          %v39 = vld [vmem:[%s21 + $0x30] sm:$0xff]
          %40 = vst [vmem:[%s22 + $0x30] sm:$0xff] %v39
          %v41 = vld [vmem:[%s21 + $0x38] sm:$0xff]
          %42 = vst [vmem:[%s22 + $0x38] sm:$0xff] %v41
        $region14: #{custom-call.11} parent=8 // loop_footer
          %s43 = scalar_lea.vmem %s21, 64
          %s44 = scalar_lea.vmem %s22, 64
          %v45 = vld [vmem:[%s21 + $0x40] sm:$0xff]
        $region15: #{custom-call.11} parent=8 // loop_footer_branch
          %46 = sbr.rel target = $region11
        $region16: #{custom-call.11} parent=8 // loop_exit
          _
        // While loop
        $region17: #{custom-call.11} parent=8 // loop_pre_header
          _
        $region18: #{custom-call.11} parent=8 // loop_header
          %s47 = sphi %s21, %s55
          %s48 = sphi %s22, %s56
          %v49 = vphi %v23, %v49
          %p50 = scmp.gt.s32.totalorder %s47, %s19
        $region19: #{custom-call.11} parent=8 // loop_header_branch
          %52 = sbr.rel (%p50) target = $region23
        $region20: #{custom-call.11} parent=8 // loop_body
          %v53 = vld [vmem:[%s47] sm:$0xff]
          %54 = vst [vmem:[%s48] sm:$0xff] %v53
        $region21: #{custom-call.11} parent=8 // loop_footer
          %s55 = scalar_lea.vmem %s47, 8
          %s56 = scalar_lea.vmem %s48, 8
        $region22: #{custom-call.11} parent=8 // loop_footer_branch
          %57 = sbr.rel target = $region18
        $region23: #{custom-call.11} parent=8 // loop_exit
          _
      $region9: #{custom-call.11} parent=4 // pred_fallthru
        _
      %s58 = sand.u32 4, 7
      %s59 = sshllo.u32 0, %s58
      %s60 = smul.u32 %s11, 128
      %s61 = sshra.s32 %s60, 4
      %s62 = scalar_lea.vmem [#allocation1], %s61
      %s63 = smul.u32 %s11, 128
      %s64 = sshra.s32 %s63, 4
      %s65 = scalar_lea.vmem %s0, %s64
      %v66 = vld [vmem:[%s65] sm:%s59]
      %67 = vst [vmem:[%s62] sm:%s59] %v66
    $region5: #{custom-call.11} parent=1 // pred_fallthru
      _
    %s69 = sshllo.u32 0, 4
    %v70 = vld [vmem:[#allocation1] sm:%s69]
    %71 = vst [vmem:[#allocation0] sm:%s69] %v70
    %v72 = vld [vmem:[#allocation0] sm:$0xff]
    %73 = vst [vmem:[#allocation2] sm:$0xff] %v72
    %74 = vst [vmem:[#allocation4] sm:$0x1] 0
    %v75 = vlaneseq
    %v76 = vshrl.u32 %v75, 7
    %v77 = vmov %v76
    %79 = vst [vmem:[#allocation9] sm:$0xff] %v77
    loop: start=0, step=1, limit=3
    $region25: #{custom-call.11} parent=1 // loop_pre_header
      _
    $region26: #{custom-call.11} parent=1 // loop_header
      %s81 = sphi 0, %s85
      %p82 = scmp.ge.s32.totalorder %s81, 3
    $region27: #{custom-call.11} parent=1 // loop_header_branch
      %84 = sbr.rel (%p82) target = $region31
    $region28: #{custom-call.11} parent=1 // loop_body
      %v86 = vstv %s81
      %v87 = vlaneseq
      %v88 = vshrl.u32 %v87, 7
      %v89 = vmov %v88
      %v90 = vld [vmem:[#allocation2] sm:$0xff]
      %v91 = vand.u32 2147483647, %v90
      %v93 = vstv %s81
      %vm94 = vcmp.ge.s32.totalorder %v89, %v93
      %vm95 = vcmp.lt.s32.totalorder %v89, 3
      %vm96 = vmand %vm94, %vm95
      %vm97 = vcmp.lt.f32.partialorder -inf, %v91
      %vm98 = vmand %vm96, %vm97
      %v99 = vsel %vm98, %v89, %v86
      %v100 = vsel %vm98, %v91, -inf
      %v101 = vrot.slane %v100, 1
      %v102 = vrot.slane %v99, 1
      %vm103 = vcmp.ge.f32.partialorder %v101, %v100
      %v104 = vsel %vm103, %v101, %v100
      %v105 = vsel %vm103, %v102, %v99
      %v106 = vrot.slane %v101, 1
      %v107 = vrot.slane %v102, 1
      %vm108 = vcmp.ge.f32.partialorder %v106, %v104
      %v109 = vsel %vm108, %v106, %v104
      %v110 = vsel %vm108, %v107, %v105
      %v111 = vrot.slane %v106, 1
      %v112 = vrot.slane %v107, 1
      %vm113 = vcmp.ge.f32.partialorder %v111, %v109
      %v114 = vsel %vm113, %v111, %v109
      %v115 = vsel %vm113, %v112, %v110
      %v116 = vrot.slane %v111, 1
      %v117 = vrot.slane %v112, 1
      %vm118 = vcmp.ge.f32.partialorder %v116, %v114
      %v119 = vsel %vm118, %v116, %v114
      %v120 = vsel %vm118, %v117, %v115
      %v121 = vrot.slane %v116, 1
      %v122 = vrot.slane %v117, 1
      %vm123 = vcmp.ge.f32.partialorder %v121, %v119
      %v124 = vsel %vm123, %v121, %v119
      %v125 = vsel %vm123, %v122, %v120
      %v126 = vrot.slane %v121, 1
      %v127 = vrot.slane %v122, 1
      %vm128 = vcmp.ge.f32.partialorder %v126, %v124
      %v129 = vsel %vm128, %v126, %v124
      %v130 = vsel %vm128, %v127, %v125
      %v131 = vrot.slane %v126, 1
      %v132 = vrot.slane %v127, 1
      %vm133 = vcmp.ge.f32.partialorder %v131, %v129
      %v134 = vsel %vm133, %v131, %v129
      %v135 = vsel %vm133, %v132, %v130
      %s136 = ssub.s32 128, %s81
      %137 = vrot.lane.b32.xlu0 %v135, %s136
      %v138 = vpop.permute.xlu0 %137
      %s139 = vtos %v138
      %v140 = vstv %s81
      %v141 = vlaneseq
      %v142 = vand.u32 %v141, 127
      %vm143 = vcmp.eq.s32.totalorder %v142, %v140
      %v144 = vstv %s139
      %v145 = vld [vmem:[#allocation4] ss:$0 sm:$0xff]
      %v146 = vsel %vm143, %v144, %v145
      %147 = vst [vmem:[#allocation4] sm:$0x1] %v146
      %s148 = scalar_lea.vmem [#allocation2], %s81
      %s149 = scalar_lea.vmem [#allocation2], %s139
      %v150 = vld [vmem:[%s148] ss:$0 sm:$0xff]
      %v151 = vld [vmem:[%s149] ss:$0 sm:$0xff]
      %152 = vst [vmem:[%s149] sm:$0x1] %v150
      %153 = vst [vmem:[%s148] sm:$0x1] %v151
      %s154 = scalar_lea.vmem [#allocation9], %s81
      %s155 = scalar_lea.vmem [#allocation9], %s139
      %v156 = vld [vmem:[%s154] ss:$0 sm:$0xff]
      %v157 = vld [vmem:[%s155] ss:$0 sm:$0xff]
      %158 = vst [vmem:[%s155] sm:$0x1] %v156
      %159 = vst [vmem:[%s154] sm:$0x1] %v157
      %vm160 = vcmp.ne.f32.partialorder %v151, 0.0
      %vm161 = vmand %vm143, %vm160
      %v162 = vsel %vm161, %v151, 1.0
      %v163 = vlaneseq
      %v164 = vand.u32 %v163, 127
      %v165 = vstv %s81
      %vm166 = vcmp.gt.s32.totalorder %v164, %v165
      %v167 = vsel %vm166, %v151, 0.0
      %v168 = vlaneseq
      %v169 = vshrl.u32 %v168, 7
      %v170 = vmov %v169
      %v171 = vld [vmem:[#allocation2] sm:$0xff]
      %v173 = vstv %s81
      %vm174 = vcmp.gt.s32.totalorder %v170, %v173
      %v175 = vsel %vm174, %v162, 1.0
      %v176 = vrcp.pop %v175
      %v177 = vmul.f32 %v171, %v176
      %vm178 = vmand %vm174, %vm143
      %v179 = vsel %vm178, %v177, 0.0
      %180 = vadd.xlane.f32.xlu0 %v179
      %v181 = vpop.xlane.xlu0 %180
      %v182 = vmul.f32 %v181, %v167
      %v183 = vsub.f32 %v177, %v182
      %184 = vst [vmem:[#allocation2] sm:$0xff] %v183
    $region29: #{custom-call.11} parent=1 // loop_footer
      %s85 = sadd.s32 1, %s81
    $region30: #{custom-call.11} parent=1 // loop_footer_branch
      %80 = sbr.rel target = $region26
    $region31: #{custom-call.11} parent=1 // loop_exit
      _
    %v185 = vld [vmem:[#allocation9] sm:$0xff]
    %s186 = scalar_lea.vmem [#allocation9], 8
    %s187 = scalar_lea.vmem [#allocation9], 16
    %s188 = scalar_lea.vmem [#allocation9], 24
    %s189 = scalar_lea.vmem [#allocation9], 32
    %s190 = scalar_lea.vmem [#allocation9], 40
    %s191 = scalar_lea.vmem [#allocation9], 48
    %s192 = scalar_lea.vmem [#allocation9], 56
    %s193 = scalar_lea.vmem [#allocation9], 64
    %s194 = scalar_lea.vmem [#allocation9], 72
    %s195 = scalar_lea.vmem [#allocation9], 80
    %s196 = scalar_lea.vmem [#allocation9], 88
    %s197 = scalar_lea.vmem [#allocation9], 96
    %s198 = scalar_lea.vmem [#allocation9], 104
    %s199 = scalar_lea.vmem [#allocation9], 112
    %s200 = scalar_lea.vmem [#allocation9], 120
    %201 = vxpose.xlu0.b32.start [1/16] %v185, 128
    %202 = vxpose.xlu0.b32.cont [2/16] 0, 128
    %203 = vxpose.xlu0.b32.cont [3/16] 0, 128
    %204 = vxpose.xlu0.b32.cont [4/16] 0, 128
    %205 = vxpose.xlu0.b32.cont [5/16] 0, 128
    %206 = vxpose.xlu0.b32.cont [6/16] 0, 128
    %207 = vxpose.xlu0.b32.cont [7/16] 0, 128
    %208 = vxpose.xlu0.b32.cont [8/16] 0, 128
    %209 = vxpose.xlu0.b32.cont [9/16] 0, 128
    %210 = vxpose.xlu0.b32.cont [10/16] 0, 128
    %211 = vxpose.xlu0.b32.cont [11/16] 0, 128
    %212 = vxpose.xlu0.b32.cont [12/16] 0, 128
    %213 = vxpose.xlu0.b32.cont [13/16] 0, 128
    %214 = vxpose.xlu0.b32.cont [14/16] 0, 128
    %215 = vxpose.xlu0.b32.cont [15/16] 0, 128
    %216 = vxpose.xlu0.b32.end [16/16] 0, 128
    %v217 = vpop.trf.xlu0
    %v218 = vpop.trf.xlu0
    %v219 = vpop.trf.xlu0
    %v220 = vpop.trf.xlu0
    %v221 = vpop.trf.xlu0
    %v222 = vpop.trf.xlu0
    %v223 = vpop.trf.xlu0
    %v224 = vpop.trf.xlu0
    %v225 = vpop.trf.xlu0
    %v226 = vpop.trf.xlu0
    %v227 = vpop.trf.xlu0
    %v228 = vpop.trf.xlu0
    %v229 = vpop.trf.xlu0
    %v230 = vpop.trf.xlu0
    %v231 = vpop.trf.xlu0
    %v232 = vpop.trf.xlu0
    %233 = vst [vmem:[#allocation7] sm:$0x1] %v217
    %s235 = sshllo.u32 0, 4
    %v237 = vld [vmem:[#allocation2] sm:%s235]
    %s238 = sshllo.u32 0, 4
    %239 = vst [vmem:[#allocation3] sm:%s238] %v237
    %s241 = sshllo.u32 0, 1
    %v243 = vld [vmem:[#allocation4] sm:%s241]
    %s244 = sshllo.u32 0, 1
    %245 = vst [vmem:[#allocation5] sm:%s244] %v243
    %s247 = sshllo.u32 0, 1
    %v249 = vld [vmem:[#allocation7] sm:%s247]
    %s250 = sshllo.u32 0, 1
    %251 = vst [vmem:[#allocation8] sm:%s250] %v249
    %p253 = scmp.gt.s32.totalorder 4, 0
    // Predicated region
    $region32: #{custom-call.11} parent=1 // pred_check
      %p254 = pneg %p253
    $region33: #{custom-call.11} parent=1 // pred_check_branch
      %256 = sbr.rel (%p254) target = $region35
    $region34: #{custom-call.11} parent=1 // pred_region
      %s257 = sshra.s32 4, 3
      %p258 = scmp.gt.s32.totalorder %s257, 0
      // Predicated region
      $region36: #{custom-call.11} parent=34 // pred_check
        %p259 = pneg %p258
      $region37: #{custom-call.11} parent=34 // pred_check_branch
        %261 = sbr.rel (%p259) target = $region39
      $region38: #{custom-call.11} parent=34 // pred_region
        %s262 = ssub.s32 %s257, 1
        %s263 = smul.u32 %s262, 128
        %s264 = sshra.s32 %s263, 4
        %s265 = scalar_lea.vmem [#allocation3], %s264
        %v266 = vld [vmem:[#allocation3] sm:$0xff]
        // While loop
        $region40: #{custom-call.11} parent=38 // loop_pre_header
          _
        $region41: #{custom-call.11} parent=38 // loop_header
          %s267 = sphi [#allocation3], %s289
          %s268 = sphi %s1, %s290
          %v269 = vphi %v266, %v291
          %s270 = ssub.s32 %s265, 64
          %p271 = scmp.gt.s32.totalorder %s267, %s270
        $region42: #{custom-call.11} parent=38 // loop_header_branch
          %273 = sbr.rel (%p271) target = $region46
        $region43: #{custom-call.11} parent=38 // loop_body
          %274 = vst [vmem:[%s268] sm:$0xff] %v269
          %v275 = vld [vmem:[%s267 + $0x8] sm:$0xff]
          %276 = vst [vmem:[%s268 + $0x8] sm:$0xff] %v275
          %v277 = vld [vmem:[%s267 + $0x10] sm:$0xff]
          %278 = vst [vmem:[%s268 + $0x10] sm:$0xff] %v277
          %v279 = vld [vmem:[%s267 + $0x18] sm:$0xff]
          %280 = vst [vmem:[%s268 + $0x18] sm:$0xff] %v279
          %v281 = vld [vmem:[%s267 + $0x20] sm:$0xff]
          %282 = vst [vmem:[%s268 + $0x20] sm:$0xff] %v281
          %v283 = vld [vmem:[%s267 + $0x28] sm:$0xff]
          %284 = vst [vmem:[%s268 + $0x28] sm:$0xff] %v283
          %v285 = vld [vmem:[%s267 + $0x30] sm:$0xff]
          %286 = vst [vmem:[%s268 + $0x30] sm:$0xff] %v285
          %v287 = vld [vmem:[%s267 + $0x38] sm:$0xff]
          %288 = vst [vmem:[%s268 + $0x38] sm:$0xff] %v287
        $region44: #{custom-call.11} parent=38 // loop_footer
          %s289 = scalar_lea.vmem %s267, 64
          %s290 = scalar_lea.vmem %s268, 64
          %v291 = vld [vmem:[%s267 + $0x40] sm:$0xff]
        $region45: #{custom-call.11} parent=38 // loop_footer_branch
          %292 = sbr.rel target = $region41
        $region46: #{custom-call.11} parent=38 // loop_exit
          _
        // While loop
        $region47: #{custom-call.11} parent=38 // loop_pre_header
          _
        $region48: #{custom-call.11} parent=38 // loop_header
          %s293 = sphi %s267, %s301
          %s294 = sphi %s268, %s302
          %v295 = vphi %v269, %v295
          %p296 = scmp.gt.s32.totalorder %s293, %s265
        $region49: #{custom-call.11} parent=38 // loop_header_branch
          %298 = sbr.rel (%p296) target = $region53
        $region50: #{custom-call.11} parent=38 // loop_body
          %v299 = vld [vmem:[%s293] sm:$0xff]
          %300 = vst [vmem:[%s294] sm:$0xff] %v299
        $region51: #{custom-call.11} parent=38 // loop_footer
          %s301 = scalar_lea.vmem %s293, 8
          %s302 = scalar_lea.vmem %s294, 8
        $region52: #{custom-call.11} parent=38 // loop_footer_branch
          %303 = sbr.rel target = $region48
        $region53: #{custom-call.11} parent=38 // loop_exit
          _
      $region39: #{custom-call.11} parent=34 // pred_fallthru
        _
      %s304 = sand.u32 4, 7
      %s305 = sshllo.u32 0, %s304
      %s306 = smul.u32 %s257, 128
      %s307 = sshra.s32 %s306, 4
      %s308 = scalar_lea.vmem %s1, %s307
      %s309 = smul.u32 %s257, 128
      %s310 = sshra.s32 %s309, 4
      %s311 = scalar_lea.vmem [#allocation3], %s310
      %v312 = vld [vmem:[%s311] sm:%s305]
      %313 = vst [vmem:[%s308] sm:%s305] %v312
    $region35: #{custom-call.11} parent=1 // pred_fallthru
      _
    // Predicated region
    $region54: #{custom-call.11} parent=1 // pred_check
      _
    $region55: #{custom-call.11} parent=1 // pred_check_branch
      %315 = sbr.rel (0) target = $region57
    $region56: #{custom-call.11} parent=1 // pred_region
      %s317 = ssub.s32 16, 16
      %318 = vsyncadd [#allocation6], %s317
      %s319 = sshll.u32 [#allocation5], 4
      %s320 = int_to_ptr.vmem [resolvable:$true] %s319
      %322 = dma.vmem_to_hbm [thread:$0]  %s320, 16, %s2, [#allocation6]
    $region57: #{custom-call.11} parent=1 // pred_fallthru
      _
    // Predicated region
    $region58: #{custom-call.11} parent=1 // pred_check
      _
    $region59: #{custom-call.11} parent=1 // pred_check_branch
      %324 = sbr.rel (0) target = $region61
    $region60: #{custom-call.11} parent=1 // pred_region
      %p326 = scmp.gt.s32.totalorder 1, 0
      // Predicated region
      $region62: #{custom-call.11} parent=60 // pred_check
        %p327 = pneg %p326
      $region63: #{custom-call.11} parent=60 // pred_check_branch
        %329 = sbr.rel (%p327) target = $region65
      $region64: #{custom-call.11} parent=60 // pred_region
        %s330 = sshra.s32 1, 3
        %p331 = scmp.gt.s32.totalorder %s330, 0
        // Predicated region
        $region66: #{custom-call.11} parent=64 // pred_check
          %p332 = pneg %p331
        $region67: #{custom-call.11} parent=64 // pred_check_branch
          %334 = sbr.rel (%p332) target = $region69
        $region68: #{custom-call.11} parent=64 // pred_region
          %s335 = ssub.s32 %s330, 1
          %s336 = smul.u32 %s335, 128
          %s337 = sshra.s32 %s336, 4
          %s338 = scalar_lea.vmem [#allocation8], %s337
          %v339 = vld [vmem:[#allocation8] sm:$0xff]
          // While loop
          $region70: #{custom-call.11} parent=68 // loop_pre_header
            _
          $region71: #{custom-call.11} parent=68 // loop_header
            %s340 = sphi [#allocation8], %s362
            %s341 = sphi %s3, %s363
            %v342 = vphi %v339, %v364
            %s343 = ssub.s32 %s338, 64
            %p344 = scmp.gt.s32.totalorder %s340, %s343
          $region72: #{custom-call.11} parent=68 // loop_header_branch
            %346 = sbr.rel (%p344) target = $region76
          $region73: #{custom-call.11} parent=68 // loop_body
            %347 = vst [vmem:[%s341] sm:$0xff] %v342
            %v348 = vld [vmem:[%s340 + $0x8] sm:$0xff]
            %349 = vst [vmem:[%s341 + $0x8] sm:$0xff] %v348
            %v350 = vld [vmem:[%s340 + $0x10] sm:$0xff]
            %351 = vst [vmem:[%s341 + $0x10] sm:$0xff] %v350
            %v352 = vld [vmem:[%s340 + $0x18] sm:$0xff]
            %353 = vst [vmem:[%s341 + $0x18] sm:$0xff] %v352
            %v354 = vld [vmem:[%s340 + $0x20] sm:$0xff]
            %355 = vst [vmem:[%s341 + $0x20] sm:$0xff] %v354
            %v356 = vld [vmem:[%s340 + $0x28] sm:$0xff]
            %357 = vst [vmem:[%s341 + $0x28] sm:$0xff] %v356
            %v358 = vld [vmem:[%s340 + $0x30] sm:$0xff]
            %359 = vst [vmem:[%s341 + $0x30] sm:$0xff] %v358
            %v360 = vld [vmem:[%s340 + $0x38] sm:$0xff]
            %361 = vst [vmem:[%s341 + $0x38] sm:$0xff] %v360
          $region74: #{custom-call.11} parent=68 // loop_footer
            %s362 = scalar_lea.vmem %s340, 64
            %s363 = scalar_lea.vmem %s341, 64
            %v364 = vld [vmem:[%s340 + $0x40] sm:$0xff]
          $region75: #{custom-call.11} parent=68 // loop_footer_branch
            %365 = sbr.rel target = $region71
          $region76: #{custom-call.11} parent=68 // loop_exit
            _
          // While loop
          $region77: #{custom-call.11} parent=68 // loop_pre_header
            _
          $region78: #{custom-call.11} parent=68 // loop_header
            %s366 = sphi %s340, %s374
            %s367 = sphi %s341, %s375
            %v368 = vphi %v342, %v368
            %p369 = scmp.gt.s32.totalorder %s366, %s338
          $region79: #{custom-call.11} parent=68 // loop_header_branch
            %371 = sbr.rel (%p369) target = $region83
          $region80: #{custom-call.11} parent=68 // loop_body
            %v372 = vld [vmem:[%s366] sm:$0xff]
            %373 = vst [vmem:[%s367] sm:$0xff] %v372
          $region81: #{custom-call.11} parent=68 // loop_footer
            %s374 = scalar_lea.vmem %s366, 8
            %s375 = scalar_lea.vmem %s367, 8
          $region82: #{custom-call.11} parent=68 // loop_footer_branch
            %376 = sbr.rel target = $region78
          $region83: #{custom-call.11} parent=68 // loop_exit
            _
        $region69: #{custom-call.11} parent=64 // pred_fallthru
          _
        %s377 = sand.u32 1, 7
        %s378 = sshllo.u32 0, %s377
        %s379 = smul.u32 %s330, 128
        %s380 = sshra.s32 %s379, 4
        %s381 = scalar_lea.vmem %s3, %s380
        %s382 = smul.u32 %s330, 128
        %s383 = sshra.s32 %s382, 4
        %s384 = scalar_lea.vmem [#allocation8], %s383
        %v385 = vld [vmem:[%s384] sm:%s378]
        %386 = vst [vmem:[%s381] sm:%s378] %v385
      $region65: #{custom-call.11} parent=60 // pred_fallthru
        _
    $region61: #{custom-call.11} parent=1 // pred_fallthru
      _
    // Predicated region
    $region84: #{custom-call.11} parent=1 // pred_check
      _
    $region85: #{custom-call.11} parent=1 // pred_check_branch
      %388 = sbr.rel (0) target = $region87
    $region86: #{custom-call.11} parent=1 // pred_region
      %389 = dma.done [#allocation6], 16
    $region87: #{custom-call.11} parent=1 // pred_fallthru
      _
    // Predicated region
    $region88: #{custom-call.11} parent=1 // pred_check
      _
    $region89: #{custom-call.11} parent=1 // pred_check_branch
      %391 = sbr.rel (0) target = $region91
    $region90: #{custom-call.11} parent=1 // pred_region
      _
    $region91: #{custom-call.11} parent=1 // pred_fallthru
      _
    %392 = vsyncpa [#allocation6], 1

// kernel: custom-call.13
$region0: #{custom-call.13}
  %s0 = inlined_call_operand.vmem [shape: f32[1,3,3], index: 0, kind: input, shape index: {}]
  %s1 = inlined_call_operand.vmem [shape: f32[1,3,3], index: 1, kind: output, shape index: {}]
  $region1: #{custom-call.13} parent=0
    #allocation0 [shape = 'u8[4096]{0}', space=vmem, size = 0x1000, scoped, tag = 'operand span for operand 0']
    #allocation1 [shape = 'u8[2048]{0}', space=vmem, size = 0x800, scoped, tag = 'packed  for operand 0']
    #allocation2 [shape = 'u8[4096]{0}', space=vmem, size = 0x1000, scoped, tag = 'operand span for operand 1']
    #allocation3 [shape = 'u8[2048]{0}', space=vmem, size = 0x800, scoped, tag = 'packed  for operand 1']
    #allocation4 [shape = 'f32[3,3]{1,0}', space=vmem, size = 0x1000, scoped, tag = 'rescaled input a']
    // Predicated region
    $region2: #{custom-call.13} parent=1 // pred_check
      _
    $region3: #{custom-call.13} parent=1 // pred_check_branch
      %3 = sbr.rel (0) target = $region5
    $region4: #{custom-call.13} parent=1 // pred_region
      // Predicated region
      $region6: #{custom-call.13} parent=4 // pred_check
        _
      $region7: #{custom-call.13} parent=4 // pred_check_branch
        %5 = sbr.rel target = $region9
      $region8: #{custom-call.13} parent=4 // pred_region
        // Predicated region
        $region21: #{custom-call.13} parent=8 // pred_check
          _
        $region22: #{custom-call.13} parent=8 // pred_check_branch
          %20 = sbr.rel (0) target = $region24
        $region23: #{custom-call.13} parent=8 // pred_region
          loop: start=0, step=1, limit=1
          $region25: #{custom-call.13} parent=23 // loop_pre_header
            _
          $region26: #{custom-call.13} parent=23 // loop_header
            %s23 = sphi 0, %s27
            %p24 = scmp.ge.s32.totalorder %s23, 1
            %s28 = sphi %s0, %s0
            %s29 = sphi [#allocation1], [#allocation1]
          $region27: #{custom-call.13} parent=23 // loop_header_branch
            %26 = sbr.rel (%p24) target = $region31
          $region28: #{custom-call.13} parent=23 // loop_body
            %v30 = vld [vmem:[%s28] sm:$0xf]
            %31 = vst [vmem:[%s29] sm:$0xf] %v30
          $region29: #{custom-call.13} parent=23 // loop_footer
            %s27 = sadd.s32 1, %s23
          $region30: #{custom-call.13} parent=23 // loop_footer_branch
            %22 = sbr.rel target = $region26
          $region31: #{custom-call.13} parent=23 // loop_exit
            _
        $region24: #{custom-call.13} parent=8 // pred_fallthru
          _
      $region9: #{custom-call.13} parent=4 // pred_fallthru
        _
      // Predicated region
      $region10: #{custom-call.13} parent=4 // pred_check
        _
      $region11: #{custom-call.13} parent=4 // pred_check_branch
        %7 = sbr.rel (0) target = $region13
      $region12: #{custom-call.13} parent=4 // pred_region
        loop: start=0, step=1, limit=1
        $region14: #{custom-call.13} parent=12 // loop_pre_header
          _
        $region15: #{custom-call.13} parent=12 // loop_header
          %s10 = sphi 0, %s14
          %p11 = scmp.ge.s32.totalorder %s10, 1
          %s15 = sphi %s0, %s0
          %s16 = sphi [#allocation1], [#allocation1]
        $region16: #{custom-call.13} parent=12 // loop_header_branch
          %13 = sbr.rel (%p11) target = $region20
        $region17: #{custom-call.13} parent=12 // loop_body
          %v17 = vld [vmem:[%s15] sm:$0xf]
          %18 = vst [vmem:[%s16] sm:$0xf] %v17
        $region18: #{custom-call.13} parent=12 // loop_footer
          %s14 = sadd.s32 1, %s10
        $region19: #{custom-call.13} parent=12 // loop_footer_branch
          %9 = sbr.rel target = $region15
        $region20: #{custom-call.13} parent=12 // loop_exit
          _
      $region13: #{custom-call.13} parent=4 // pred_fallthru
        _
    $region5: #{custom-call.13} parent=1 // pred_fallthru
      _
    %32 = vnop
    %s34 = sshllo.u32 0, 4
    %v35 = vld [vmem:[#allocation1] sm:%s34]
    %36 = vst [vmem:[#allocation0] sm:%s34] %v35
    %v37 = vlaneseq
    %v38 = vand.u32 %v37, 127
    %vm39 = vcmp.lt.s32.totalorder %v38, 3
    %v40 = vlaneseq
    %v41 = vshrl.u32 %v40, 7
    %vm43 = vcmp.eq.s32.totalorder %v41, %v38
    %v44 = vld [vmem:[#allocation0] sm:$0xff]
    %v45 = vsel %vm43, %v44, 0.0
    %46 = vadd.xlane.f32.xlu0 %v45
    %v47 = vpop.xlane.xlu0 %46
    %vm48 = vcmp.ge.s32.totalorder %v41, %v38
    %vm49 = vmand %vm48, %vm39
    %v50 = vsel %vm49, %v44, 0.0
    %v51 = vrcp.pop %v47
    %v52 = vmul.f32 %v50, %v51
    %53 = vst [vmem:[#allocation4] sm:$0xff] %v52
    %v54 = vlaneseq
    %v55 = vand.u32 %v54, 127
    %v56 = vlaneseq
    %v57 = vshrl.u32 %v56, 7
    %vm59 = vcmp.eq.s32.totalorder %v55, %v57
    %v60 = vlaneseq
    %v61 = vand.u32 %v60, 127
    %vm62 = vcmp.eq.s32.totalorder %v61, 0
    %v63 = vsel %vm62, 1.0, -1.0
    %v64 = vsel %vm59, %v63, 0.0
    %s65 = scalar_lea.vmem [#allocation4], 1
    %v66 = vld [vmem:[%s65] ss:$0 sm:$0xff]
    %v67 = vxor.u32 %v66, 2147483648
    %v68 = vlaneseq
    %v69 = vand.u32 %v68, 127
    %vm70 = vcmp.eq.s32.totalorder %v69, 1
    %v71 = vmul.f32 %v67, %v64
    %72 = vadd.xlane.f32.xlu0 %v71
    %v73 = vpop.xlane.xlu0 %72
    %v74 = vsel %vm70, %v73, %v64
    %s75 = scalar_lea.vmem [#allocation4], 2
    %v76 = vld [vmem:[%s75] ss:$0 sm:$0xff]
    %v77 = vxor.u32 %v76, 2147483648
    %v78 = vlaneseq
    %v79 = vand.u32 %v78, 127
    %vm80 = vcmp.eq.s32.totalorder %v79, 2
    %v81 = vmul.f32 %v77, %v74
    %82 = vadd.xlane.f32.xlu0 %v81
    %v83 = vpop.xlane.xlu0 %82
    %v84 = vsel %vm80, %v83, %v74
    %v85 = vrcp.pop %v47
    %v86 = vmul.f32 %v84, %v85
    %vm87 = vweird.f32 %v47
    %v88 = vsel %vm87, %v84, %v86
    %89 = vst [vmem:[#allocation2] sm:$0xff] %v88
    %s91 = sshllo.u32 0, 4
    %v93 = vld [vmem:[#allocation2] sm:%s91]
    %s94 = sshllo.u32 0, 4
    %95 = vst [vmem:[#allocation3] sm:%s94] %v93
    // Predicated region
    $region32: #{custom-call.13} parent=1 // pred_check
      _
    $region33: #{custom-call.13} parent=1 // pred_check_branch
      %97 = sbr.rel (0) target = $region35
    $region34: #{custom-call.13} parent=1 // pred_region
      // Predicated region
      $region36: #{custom-call.13} parent=34 // pred_check
        _
      $region37: #{custom-call.13} parent=34 // pred_check_branch
        %99 = sbr.rel target = $region39
      $region38: #{custom-call.13} parent=34 // pred_region
        // Predicated region
        $region51: #{custom-call.13} parent=38 // pred_check
          _
        $region52: #{custom-call.13} parent=38 // pred_check_branch
          %114 = sbr.rel (0) target = $region54
        $region53: #{custom-call.13} parent=38 // pred_region
          loop: start=0, step=1, limit=1
          $region55: #{custom-call.13} parent=53 // loop_pre_header
            _
          $region56: #{custom-call.13} parent=53 // loop_header
            %s117 = sphi 0, %s121
            %p118 = scmp.ge.s32.totalorder %s117, 1
            %s122 = sphi [#allocation3], [#allocation3]
            %s123 = sphi %s1, %s1
          $region57: #{custom-call.13} parent=53 // loop_header_branch
            %120 = sbr.rel (%p118) target = $region61
          $region58: #{custom-call.13} parent=53 // loop_body
            %v124 = vld [vmem:[%s122] sm:$0xf]
            %125 = vst [vmem:[%s123] sm:$0xf] %v124
          $region59: #{custom-call.13} parent=53 // loop_footer
            %s121 = sadd.s32 1, %s117
          $region60: #{custom-call.13} parent=53 // loop_footer_branch
            %116 = sbr.rel target = $region56
          $region61: #{custom-call.13} parent=53 // loop_exit
            _
        $region54: #{custom-call.13} parent=38 // pred_fallthru
          _
      $region39: #{custom-call.13} parent=34 // pred_fallthru
        _
      // Predicated region
      $region40: #{custom-call.13} parent=34 // pred_check
        _
      $region41: #{custom-call.13} parent=34 // pred_check_branch
        %101 = sbr.rel (0) target = $region43
      $region42: #{custom-call.13} parent=34 // pred_region
        loop: start=0, step=1, limit=1
        $region44: #{custom-call.13} parent=42 // loop_pre_header
          _
        $region45: #{custom-call.13} parent=42 // loop_header
          %s104 = sphi 0, %s108
          %p105 = scmp.ge.s32.totalorder %s104, 1
          %s109 = sphi [#allocation3], [#allocation3]
          %s110 = sphi %s1, %s1
        $region46: #{custom-call.13} parent=42 // loop_header_branch
          %107 = sbr.rel (%p105) target = $region50
        $region47: #{custom-call.13} parent=42 // loop_body
          %v111 = vld [vmem:[%s109] sm:$0xf]
          %112 = vst [vmem:[%s110] sm:$0xf] %v111
        $region48: #{custom-call.13} parent=42 // loop_footer
          %s108 = sadd.s32 1, %s104
        $region49: #{custom-call.13} parent=42 // loop_footer_branch
          %103 = sbr.rel target = $region45
        $region50: #{custom-call.13} parent=42 // loop_exit
          _
      $region43: #{custom-call.13} parent=34 // pred_fallthru
        _
    $region35: #{custom-call.13} parent=1 // pred_fallthru
      _
    %126 = vnop

// kernel: custom-call.12
$region0: #{custom-call.12}
  %s0 = inlined_call_operand.vmem [shape: f32[1,3,3], index: 0, kind: input, shape index: {}]
  %s1 = inlined_call_operand.vmem [shape: f32[1,3,3], index: 1, kind: output, shape index: {}]
  $region1: #{custom-call.12} parent=0
    #allocation0 [shape = 'u8[4096]{0}', space=vmem, size = 0x1000, scoped, tag = 'operand span for operand 0']
    #allocation1 [shape = 'u8[2048]{0}', space=vmem, size = 0x800, scoped, tag = 'packed  for operand 0']
    #allocation2 [shape = 'u8[4096]{0}', space=vmem, size = 0x1000, scoped, tag = 'operand span for operand 1']
    #allocation3 [shape = 'u8[2048]{0}', space=vmem, size = 0x800, scoped, tag = 'packed  for operand 1']
    #allocation4 [shape = 'f32[3,3]{1,0}', space=vmem, size = 0x1000, scoped, tag = 'rescaled input a']
    // Predicated region
    $region2: #{custom-call.12} parent=1 // pred_check
      _
    $region3: #{custom-call.12} parent=1 // pred_check_branch
      %3 = sbr.rel (0) target = $region5
    $region4: #{custom-call.12} parent=1 // pred_region
      // Predicated region
      $region6: #{custom-call.12} parent=4 // pred_check
        _
      $region7: #{custom-call.12} parent=4 // pred_check_branch
        %5 = sbr.rel target = $region9
      $region8: #{custom-call.12} parent=4 // pred_region
        // Predicated region
        $region21: #{custom-call.12} parent=8 // pred_check
          _
        $region22: #{custom-call.12} parent=8 // pred_check_branch
          %20 = sbr.rel (0) target = $region24
        $region23: #{custom-call.12} parent=8 // pred_region
          loop: start=0, step=1, limit=1
          $region25: #{custom-call.12} parent=23 // loop_pre_header
            _
          $region26: #{custom-call.12} parent=23 // loop_header
            %s23 = sphi 0, %s27
            %p24 = scmp.ge.s32.totalorder %s23, 1
            %s28 = sphi %s0, %s0
            %s29 = sphi [#allocation1], [#allocation1]
          $region27: #{custom-call.12} parent=23 // loop_header_branch
            %26 = sbr.rel (%p24) target = $region31
          $region28: #{custom-call.12} parent=23 // loop_body
            %v30 = vld [vmem:[%s28] sm:$0xf]
            %31 = vst [vmem:[%s29] sm:$0xf] %v30
          $region29: #{custom-call.12} parent=23 // loop_footer
            %s27 = sadd.s32 1, %s23
          $region30: #{custom-call.12} parent=23 // loop_footer_branch
            %22 = sbr.rel target = $region26
          $region31: #{custom-call.12} parent=23 // loop_exit
            _
        $region24: #{custom-call.12} parent=8 // pred_fallthru
          _
      $region9: #{custom-call.12} parent=4 // pred_fallthru
        _
      // Predicated region
      $region10: #{custom-call.12} parent=4 // pred_check
        _
      $region11: #{custom-call.12} parent=4 // pred_check_branch
        %7 = sbr.rel (0) target = $region13
      $region12: #{custom-call.12} parent=4 // pred_region
        loop: start=0, step=1, limit=1
        $region14: #{custom-call.12} parent=12 // loop_pre_header
          _
        $region15: #{custom-call.12} parent=12 // loop_header
          %s10 = sphi 0, %s14
          %p11 = scmp.ge.s32.totalorder %s10, 1
          %s15 = sphi %s0, %s0
          %s16 = sphi [#allocation1], [#allocation1]
        $region16: #{custom-call.12} parent=12 // loop_header_branch
          %13 = sbr.rel (%p11) target = $region20
        $region17: #{custom-call.12} parent=12 // loop_body
          %v17 = vld [vmem:[%s15] sm:$0xf]
          %18 = vst [vmem:[%s16] sm:$0xf] %v17
        $region18: #{custom-call.12} parent=12 // loop_footer
          %s14 = sadd.s32 1, %s10
        $region19: #{custom-call.12} parent=12 // loop_footer_branch
          %9 = sbr.rel target = $region15
        $region20: #{custom-call.12} parent=12 // loop_exit
          _
      $region13: #{custom-call.12} parent=4 // pred_fallthru
        _
    $region5: #{custom-call.12} parent=1 // pred_fallthru
      _
    %32 = vnop
    %s34 = sshllo.u32 0, 4
    %v35 = vld [vmem:[#allocation1] sm:%s34]
    %36 = vst [vmem:[#allocation0] sm:%s34] %v35
    %v37 = vlaneseq
    %v38 = vand.u32 %v37, 127
    %vm39 = vcmp.lt.s32.totalorder %v38, 3
    %v40 = vlaneseq
    %v41 = vshrl.u32 %v40, 7
    %vm43 = vcmp.eq.s32.totalorder %v41, %v38
    %v44 = vld [vmem:[#allocation0] sm:$0xff]
    %v45 = vsel %vm43, %v44, 0.0
    %46 = vadd.xlane.f32.xlu0 %v45
    %v47 = vpop.xlane.xlu0 %46
    %vm48 = vcmp.le.s32.totalorder %v41, %v38
    %vm49 = vmand %vm48, %vm39
    %v50 = vsel %vm49, %v44, 0.0
    %v51 = vrcp.pop %v47
    %v52 = vmul.f32 %v50, %v51
    %53 = vst [vmem:[#allocation4] sm:$0xff] %v52
    %v54 = vlaneseq
    %v55 = vand.u32 %v54, 127
    %v56 = vlaneseq
    %v57 = vshrl.u32 %v56, 7
    %vm59 = vcmp.eq.s32.totalorder %v55, %v57
    %v60 = vlaneseq
    %v61 = vand.u32 %v60, 127
    %vm62 = vcmp.eq.s32.totalorder %v61, 2
    %v63 = vsel %vm62, 1.0, -1.0
    %v64 = vsel %vm59, %v63, 0.0
    %s65 = scalar_lea.vmem [#allocation4], 1
    %v66 = vld [vmem:[%s65] ss:$0 sm:$0xff]
    %v67 = vxor.u32 %v66, 2147483648
    %v68 = vlaneseq
    %v69 = vand.u32 %v68, 127
    %vm70 = vcmp.eq.s32.totalorder %v69, 1
    %v71 = vmul.f32 %v67, %v64
    %72 = vadd.xlane.f32.xlu0 %v71
    %v73 = vpop.xlane.xlu0 %72
    %v74 = vsel %vm70, %v73, %v64
    %v75 = vld [vmem:[#allocation4] ss:$0 sm:$0xff]
    %v76 = vxor.u32 %v75, 2147483648
    %v77 = vlaneseq
    %v78 = vand.u32 %v77, 127
    %vm79 = vcmp.eq.s32.totalorder %v78, 0
    %v80 = vmul.f32 %v76, %v74
    %81 = vadd.xlane.f32.xlu0 %v80
    %v82 = vpop.xlane.xlu0 %81
    %v83 = vsel %vm79, %v82, %v74
    %v84 = vrcp.pop %v47
    %v85 = vmul.f32 %v83, %v84
    %vm86 = vweird.f32 %v47
    %v87 = vsel %vm86, %v83, %v85
    %88 = vst [vmem:[#allocation2] sm:$0xff] %v87
    %s90 = sshllo.u32 0, 4
    %v92 = vld [vmem:[#allocation2] sm:%s90]
    %s93 = sshllo.u32 0, 4
    %94 = vst [vmem:[#allocation3] sm:%s93] %v92
    // Predicated region
    $region32: #{custom-call.12} parent=1 // pred_check
      _
    $region33: #{custom-call.12} parent=1 // pred_check_branch
      %96 = sbr.rel (0) target = $region35
    $region34: #{custom-call.12} parent=1 // pred_region
      // Predicated region
      $region36: #{custom-call.12} parent=34 // pred_check
        _
      $region37: #{custom-call.12} parent=34 // pred_check_branch
        %98 = sbr.rel target = $region39
      $region38: #{custom-call.12} parent=34 // pred_region
        // Predicated region
        $region51: #{custom-call.12} parent=38 // pred_check
          _
        $region52: #{custom-call.12} parent=38 // pred_check_branch
          %113 = sbr.rel (0) target = $region54
        $region53: #{custom-call.12} parent=38 // pred_region
          loop: start=0, step=1, limit=1
          $region55: #{custom-call.12} parent=53 // loop_pre_header
            _
          $region56: #{custom-call.12} parent=53 // loop_header
            %s116 = sphi 0, %s120
            %p117 = scmp.ge.s32.totalorder %s116, 1
            %s121 = sphi [#allocation3], [#allocation3]
            %s122 = sphi %s1, %s1
          $region57: #{custom-call.12} parent=53 // loop_header_branch
            %119 = sbr.rel (%p117) target = $region61
          $region58: #{custom-call.12} parent=53 // loop_body
            %v123 = vld [vmem:[%s121] sm:$0xf]
            %124 = vst [vmem:[%s122] sm:$0xf] %v123
          $region59: #{custom-call.12} parent=53 // loop_footer
            %s120 = sadd.s32 1, %s116
          $region60: #{custom-call.12} parent=53 // loop_footer_branch
            %115 = sbr.rel target = $region56
          $region61: #{custom-call.12} parent=53 // loop_exit
            _
        $region54: #{custom-call.12} parent=38 // pred_fallthru
          _
      $region39: #{custom-call.12} parent=34 // pred_fallthru
        _
      // Predicated region
      $region40: #{custom-call.12} parent=34 // pred_check
        _
      $region41: #{custom-call.12} parent=34 // pred_check_branch
        %100 = sbr.rel (0) target = $region43
      $region42: #{custom-call.12} parent=34 // pred_region
        loop: start=0, step=1, limit=1
        $region44: #{custom-call.12} parent=42 // loop_pre_header
          _
        $region45: #{custom-call.12} parent=42 // loop_header
          %s103 = sphi 0, %s107
          %p104 = scmp.ge.s32.totalorder %s103, 1
          %s108 = sphi [#allocation3], [#allocation3]
          %s109 = sphi %s1, %s1
        $region46: #{custom-call.12} parent=42 // loop_header_branch
          %106 = sbr.rel (%p104) target = $region50
        $region47: #{custom-call.12} parent=42 // loop_body
          %v110 = vld [vmem:[%s108] sm:$0xf]
          %111 = vst [vmem:[%s109] sm:$0xf] %v110
        $region48: #{custom-call.12} parent=42 // loop_footer
          %s107 = sadd.s32 1, %s103
        $region49: #{custom-call.12} parent=42 // loop_footer_branch
          %102 = sbr.rel target = $region45
        $region50: #{custom-call.12} parent=42 // loop_exit
          _
      $region43: #{custom-call.12} parent=34 // pred_fallthru
        _
    $region35: #{custom-call.12} parent=1 // pred_fallthru
      _
    %125 = vnop

// kernel: schnet_force_pbc_forward.1
$region0: #{schnet_force_pbc_forward.1}
  #allocation0 [shape = 'u32[]', space=smem, size = 0x4, offset = 0x4, fixed_abs, tag = 'smem constant byte address 0x4 - core index']
  #allocation1 [shape = 'u32[144,128]{1,0:T(1,128)}', space=vmem, size = 0x12000, scoped, tag = 'internal scratch']
  #allocation2 [shape = 'f32[1,1]{1,0:T(1,128)S(1)}', space=vmem, size = 0x200, scoped, tag = 'scoped memory for schnet_force_pbc_forward.1']
  %s0 = inlined_call_operand.vmem [shape: f32[56,1], index: 0, kind: input, shape index: {}]
  %s1 = inlined_call_operand.vmem [shape: f32[1,16], index: 1, kind: input, shape index: {}]
  %s2 = inlined_call_operand.vmem [shape: f32[8,32], index: 2, kind: input, shape index: {}]
  %s3 = inlined_call_operand.vmem [shape: f32[2,16,32], index: 3, kind: input, shape index: {}]
  %s4 = inlined_call_operand.vmem [shape: f32[2,1,32], index: 4, kind: input, shape index: {}]
  %s5 = inlined_call_operand.vmem [shape: f32[2,32,32], index: 5, kind: input, shape index: {}]
  %s6 = inlined_call_operand.vmem [shape: f32[2,1,32], index: 6, kind: input, shape index: {}]
  %s7 = inlined_call_operand.vmem [shape: f32[2,32,32], index: 7, kind: input, shape index: {}]
  %s8 = inlined_call_operand.vmem [shape: f32[2,1,32], index: 8, kind: input, shape index: {}]
  %s9 = inlined_call_operand.vmem [shape: f32[2,32,32], index: 9, kind: input, shape index: {}]
  %s10 = inlined_call_operand.vmem [shape: f32[2,1,32], index: 10, kind: input, shape index: {}]
  %s11 = inlined_call_operand.vmem [shape: f32[2,32,32], index: 11, kind: input, shape index: {}]
  %s12 = inlined_call_operand.vmem [shape: f32[2,1,32], index: 12, kind: input, shape index: {}]
  %s13 = inlined_call_operand.vmem [shape: f32[32,16], index: 13, kind: input, shape index: {}]
  %s14 = inlined_call_operand.vmem [shape: f32[1,16], index: 14, kind: input, shape index: {}]
  %s15 = inlined_call_operand.vmem [shape: f32[16,1], index: 15, kind: input, shape index: {}]
  %s16 = inlined_call_operand.<no memory space> [shape: f32[1,1], index: 16, kind: input, shape index: {}]
  %s17 = inlined_call_operand.hbm [shape: f32[1,1], index: 17, kind: output, shape index: {}]
  %s18 = sld [smem:[#allocation0]]
  $region78: #{schnet_force_pbc_forward.1} parent=0
    _
  %s20 = ssub.s32 1, %s18
  %s21 = scalar_select 0, %s20, %s18
  %v22 = vstv %s16
  %23 = vst [vmem:[#allocation2] sm:$0x1] %v22
  $region1: #{schnet_force_pbc_forward.1} parent=0
    #allocation3 [shape = 'u8[512]{0}', space=vmem, size = 0x400, scoped, tag = 'output window, operand 0, single buffered']
    #allocation4 [shape = 's32[1]{0}', space=sflag, size = 0x4, scoped, tag = 'scoped memory for schnet_force_pbc_forward.1']
    %24 = vsyncpa [#allocation4], 0
    // Predicated region
    $region2: #{schnet_force_pbc_forward.1} parent=1 // pred_check
      _
    $region3: #{schnet_force_pbc_forward.1} parent=1 // pred_check_branch
      %26 = sbr.rel (0) target = $region5
    $region4: #{schnet_force_pbc_forward.1} parent=1 // pred_region
      _
    $region5: #{schnet_force_pbc_forward.1} parent=1 // pred_fallthru
      _
    // Predicated region
    $region6: #{schnet_force_pbc_forward.1} parent=1 // pred_check
      _
    $region7: #{schnet_force_pbc_forward.1} parent=1 // pred_check_branch
      %28 = sbr.rel (0) target = $region9
    $region8: #{schnet_force_pbc_forward.1} parent=1 // pred_region
      _
    $region9: #{schnet_force_pbc_forward.1} parent=1 // pred_fallthru
      _
    // Predicated region
    $region10: #{schnet_force_pbc_forward.1} parent=1 // pred_check
      _
    $region11: #{schnet_force_pbc_forward.1} parent=1 // pred_check_branch
      %30 = sbr.rel (0) target = $region13
    $region12: #{schnet_force_pbc_forward.1} parent=1 // pred_region
      _
    $region13: #{schnet_force_pbc_forward.1} parent=1 // pred_fallthru
      _
    // Predicated region
    $region14: #{schnet_force_pbc_forward.1} parent=1 // pred_check
      _
    $region15: #{schnet_force_pbc_forward.1} parent=1 // pred_check_branch
      %32 = sbr.rel (0) target = $region17
    $region16: #{schnet_force_pbc_forward.1} parent=1 // pred_region
      _
    $region17: #{schnet_force_pbc_forward.1} parent=1 // pred_fallthru
      _
    // Predicated region
    $region18: #{schnet_force_pbc_forward.1} parent=1 // pred_check
      _
    $region19: #{schnet_force_pbc_forward.1} parent=1 // pred_check_branch
      %34 = sbr.rel (0) target = $region21
    $region20: #{schnet_force_pbc_forward.1} parent=1 // pred_region
      _
    $region21: #{schnet_force_pbc_forward.1} parent=1 // pred_fallthru
      _
    // Predicated region
    $region22: #{schnet_force_pbc_forward.1} parent=1 // pred_check
      _
    $region23: #{schnet_force_pbc_forward.1} parent=1 // pred_check_branch
      %36 = sbr.rel (0) target = $region25
    $region24: #{schnet_force_pbc_forward.1} parent=1 // pred_region
      _
    $region25: #{schnet_force_pbc_forward.1} parent=1 // pred_fallthru
      _
    // Predicated region
    $region26: #{schnet_force_pbc_forward.1} parent=1 // pred_check
      _
    $region27: #{schnet_force_pbc_forward.1} parent=1 // pred_check_branch
      %38 = sbr.rel (0) target = $region29
    $region28: #{schnet_force_pbc_forward.1} parent=1 // pred_region
      _
    $region29: #{schnet_force_pbc_forward.1} parent=1 // pred_fallthru
      _
    // Predicated region
    $region30: #{schnet_force_pbc_forward.1} parent=1 // pred_check
      _
    $region31: #{schnet_force_pbc_forward.1} parent=1 // pred_check_branch
      %40 = sbr.rel (0) target = $region33
    $region32: #{schnet_force_pbc_forward.1} parent=1 // pred_region
      _
    $region33: #{schnet_force_pbc_forward.1} parent=1 // pred_fallthru
      _
    // Predicated region
    $region34: #{schnet_force_pbc_forward.1} parent=1 // pred_check
      _
    $region35: #{schnet_force_pbc_forward.1} parent=1 // pred_check_branch
      %42 = sbr.rel (0) target = $region37
    $region36: #{schnet_force_pbc_forward.1} parent=1 // pred_region
      _
    $region37: #{schnet_force_pbc_forward.1} parent=1 // pred_fallthru
      _
    // Predicated region
    $region38: #{schnet_force_pbc_forward.1} parent=1 // pred_check
      _
    $region39: #{schnet_force_pbc_forward.1} parent=1 // pred_check_branch
      %44 = sbr.rel (0) target = $region41
    $region40: #{schnet_force_pbc_forward.1} parent=1 // pred_region
      _
    $region41: #{schnet_force_pbc_forward.1} parent=1 // pred_fallthru
      _
    // Predicated region
    $region42: #{schnet_force_pbc_forward.1} parent=1 // pred_check
      _
    $region43: #{schnet_force_pbc_forward.1} parent=1 // pred_check_branch
      %46 = sbr.rel (0) target = $region45
    $region44: #{schnet_force_pbc_forward.1} parent=1 // pred_region
      _
    $region45: #{schnet_force_pbc_forward.1} parent=1 // pred_fallthru
      _
    // Predicated region
    $region46: #{schnet_force_pbc_forward.1} parent=1 // pred_check
      _
    $region47: #{schnet_force_pbc_forward.1} parent=1 // pred_check_branch
      %48 = sbr.rel (0) target = $region49
    $region48: #{schnet_force_pbc_forward.1} parent=1 // pred_region
      _
    $region49: #{schnet_force_pbc_forward.1} parent=1 // pred_fallthru
      _
    // Predicated region
    $region50: #{schnet_force_pbc_forward.1} parent=1 // pred_check
      _
    $region51: #{schnet_force_pbc_forward.1} parent=1 // pred_check_branch
      %50 = sbr.rel (0) target = $region53
    $region52: #{schnet_force_pbc_forward.1} parent=1 // pred_region
      _
    $region53: #{schnet_force_pbc_forward.1} parent=1 // pred_fallthru
      _
    // Predicated region
    $region54: #{schnet_force_pbc_forward.1} parent=1 // pred_check
      _
    $region55: #{schnet_force_pbc_forward.1} parent=1 // pred_check_branch
      %52 = sbr.rel (0) target = $region57
    $region56: #{schnet_force_pbc_forward.1} parent=1 // pred_region
      _
    $region57: #{schnet_force_pbc_forward.1} parent=1 // pred_fallthru
      _
    // Predicated region
    $region58: #{schnet_force_pbc_forward.1} parent=1 // pred_check
      _
    $region59: #{schnet_force_pbc_forward.1} parent=1 // pred_check_branch
      %54 = sbr.rel (0) target = $region61
    $region60: #{schnet_force_pbc_forward.1} parent=1 // pred_region
      _
    $region61: #{schnet_force_pbc_forward.1} parent=1 // pred_fallthru
      _
    // Predicated region
    $region62: #{schnet_force_pbc_forward.1} parent=1 // pred_check
      _
    $region63: #{schnet_force_pbc_forward.1} parent=1 // pred_check_branch
      %56 = sbr.rel (0) target = $region65
    $region64: #{schnet_force_pbc_forward.1} parent=1 // pred_region
      _
    $region65: #{schnet_force_pbc_forward.1} parent=1 // pred_fallthru
      _
    // Predicated region
    $region66: #{schnet_force_pbc_forward.1} parent=1 // pred_check
      _
    $region67: #{schnet_force_pbc_forward.1} parent=1 // pred_check_branch
      %58 = sbr.rel (0) target = $region69
    $region68: #{schnet_force_pbc_forward.1} parent=1 // pred_region
      _
    $region69: #{schnet_force_pbc_forward.1} parent=1 // pred_fallthru
      _
    %v59 = vld [vmem:[%s0] sm:$0xff]
    %v60 = vld [vmem:[%s0 + $0x8] sm:$0xff]
    %v61 = vld [vmem:[%s0 + $0x10] sm:$0xff]
    %v62 = vld [vmem:[%s0 + $0x18] sm:$0xff]
    %v63 = vld [vmem:[%s0 + $0x20] sm:$0xff]
    %v64 = vld [vmem:[%s0 + $0x28] sm:$0xff]
    %v65 = vld [vmem:[%s0 + $0x30] sm:$0xff]
    %v66 = vld [vmem:[%s1] sm:$0x1]
    %68 = vset.pattern.permute.xlu0 0
    %69 = vperm.xlu0 %68, %v59
    %v70 = vpop.permute.xlu0 %69
    %73 = vset.pattern.permute.xlu0 0
    %74 = vperm.xlu0 %73, %v60
    %v75 = vpop.permute.xlu0 %74
    %78 = vset.pattern.permute.xlu0 0
    %79 = vperm.xlu0 %78, %v61
    %v80 = vpop.permute.xlu0 %79
    %83 = vset.pattern.permute.xlu0 0
    %84 = vperm.xlu0 %83, %v62
    %v85 = vpop.permute.xlu0 %84
    %88 = vset.pattern.permute.xlu0 0
    %89 = vperm.xlu0 %88, %v63
    %v90 = vpop.permute.xlu0 %89
    %93 = vset.pattern.permute.xlu0 0
    %94 = vperm.xlu0 %93, %v64
    %v95 = vpop.permute.xlu0 %94
    %98 = vset.pattern.permute.xlu0 0
    %99 = vperm.xlu0 %98, %v65
    %v100 = vpop.permute.xlu0 %99
    %v103 = vlaneseq
    %v104 = vshrl.u32 %v103, 7
    %v105 = vsub.s32 0, %v104
    %v106 = vrot.slane %v66, %v105
    %v108 = vsub.f32 %v70, %v106
    %v109 = vsub.f32 %v75, %v106
    %v110 = vsub.f32 %v80, %v106
    %v111 = vsub.f32 %v85, %v106
    %v112 = vsub.f32 %v90, %v106
    %v113 = vsub.f32 %v95, %v106
    %v114 = vsub.f32 %v100, %v106
    %v115 = vmul.f32 %v108, -4.5
    %v116 = vmul.f32 %v109, -4.5
    %v117 = vmul.f32 %v110, -4.5
    %v118 = vmul.f32 %v111, -4.5
    %v119 = vmul.f32 %v112, -4.5
    %v120 = vmul.f32 %v113, -4.5
    %v121 = vmul.f32 %v114, -4.5
    %v122 = vmul.f32 %v115, %v108
    %v123 = vmul.f32 %v116, %v109
    %v124 = vmul.f32 %v117, %v110
    %v125 = vmul.f32 %v118, %v111
    %v126 = vmul.f32 %v119, %v112
    %v127 = vmul.f32 %v120, %v113
    %v128 = vmul.f32 %v121, %v114
    %v129 = vmul.f32 %v122, 1.442695
    %v130 = vpow.pop %v129
    %v131 = vmul.f32 %v123, 1.442695
    %v132 = vpow.pop %v131
    %v133 = vmul.f32 %v124, 1.442695
    %v134 = vpow.pop %v133
    %v135 = vmul.f32 %v125, 1.442695
    %v136 = vpow.pop %v135
    %v137 = vmul.f32 %v126, 1.442695
    %v138 = vpow.pop %v137
    %v139 = vmul.f32 %v127, 1.442695
    %v140 = vpow.pop %v139
    %v141 = vmul.f32 %v128, 1.442695
    %v142 = vpow.pop %v141
    %v143 = vmul.f32 %v59, 0.62831855
    %v144 = vmul.f32 %v60, 0.62831855
    %v145 = vmul.f32 %v61, 0.62831855
    %v146 = vmul.f32 %v62, 0.62831855
    %v147 = vmul.f32 %v63, 0.62831855
    %v148 = vmul.f32 %v64, 0.62831855
    %v149 = vmul.f32 %v65, 0.62831855
    %v150 = vand.u32 2147483647, %v143
    %vm151 = vcmp.le.f32.partialorder %v150, 0.7853982
    %vm152 = vcmp.lt.s32.totalorder %v143, 0
    %v153 = vand.u32 %v143, 2139095040
    %v154 = vshrl.u32 %v153, 23
    %v155 = vsub.s32 %v154, 127
    %v156 = vand.u32 2147483647, %v143
    %v157 = vand.u32 %v156, 8388607
    %v158 = vor.u32 %v157, 8388608
    %v159 = vsub.s32 0, %v158
    %v160 = vadd.s32 %v155, 1
    %vm161 = vcmp.gt.s32.totalorder %v160, 0
    %v162 = vsel %vm161, %v160, 0
    %v163 = vshrl.u32 %v162, 5
    %v164 = vand.u32 %v162, 31
    %v165 = vsub.s32 32, %v164
    %v166 = vshrl.u32 683565275, %v165
    %v167 = vshll.u32 683565275, %v164
    %v168 = vshrl.u32 2475754826, %v165
    %v169 = vor.u32 %v167, %v168
    %v170 = vshll.u32 2475754826, %v164
    %v171 = vshrl.u32 2131351028, %v165
    %v172 = vor.u32 %v170, %v171
    %v173 = vshll.u32 2131351028, %v164
    %v174 = vshrl.u32 2102212464, %v165
    %v175 = vor.u32 %v173, %v174
    %v176 = vshll.u32 2102212464, %v164
    %v177 = vshrl.u32 920167782, %v165
    %v178 = vor.u32 %v176, %v177
    %v179 = vshll.u32 920167782, %v164
    %v180 = vshrl.u32 1326507024, %v165
    %v181 = vor.u32 %v179, %v180
    %vm182 = vcmp.lt.s32.totalorder %v163, 1
    %vm183 = vcmp.lt.s32.totalorder %v163, 2
    %vm184 = vcmp.lt.s32.totalorder %v163, 3
    %vm185 = vcmp.lt.s32.totalorder %v163, 4
    %v186 = vsel %vm182, %v166, %v169
    %v187 = vsel %vm185, %v175, 2102212464
    %v188 = vsel %vm184, %v172, %v187
    %v189 = vsel %vm183, %v186, %v188
    %v190 = vsel %vm182, %v169, %v172
    %v191 = vsel %vm185, %v178, 920167782
    %v192 = vsel %vm184, %v175, %v191
    %v193 = vsel %vm183, %v190, %v192
    %v194 = vsel %vm182, %v172, %v175
    %v195 = vsel %vm185, %v181, 1326507024
    %v196 = vsel %vm184, %v178, %v195
    %v197 = vsel %vm183, %v194, %v196
    %v198 = vshll.u32 %v158, 8
    %v199 = vmul.u32.u64.compose %v198, %v197
    %v200 = vextract.low.u32 %v199
    %v201 = vextract.high.u32 %v199
    %v202 = vmul.u32.u64.compose %v198, %v193
    %v203 = vextract.low.u32 %v202
    %v204 = vextract.high.u32 %v202
    %v205 = vmul.u32 %v198, %v189
    %v206 = vadd.s32 %v201, %v203
    %vm207 = vc.u32 %v201, %v203
    %v208 = vadd.s32 %v204, 1
    %v209 = vsel %vm207, %v208, %v204
    %v210 = vadd.s32 %v205, %v209
    %v211 = vadd.s32 %v210, 536870912
    %v212 = vshrl.u32 %v211, 30
    %v213 = vshll.u32 %v212, 30
    %v214 = vsub.s32 %v210, %v213
    %vm215 = vcmp.lt.s32.totalorder %v214, 0
    %v216 = vsub.s32 0, %v214
    %v217 = vsel %vm215, %v216, %v214
    %v218 = vclz %v217
    %v219 = vsub.s32 %v218, 2
    %vm220 = vcmp.gt.s32.totalorder 0, %v219
    %v221 = vsel %vm220, 0, %v219
    %v222 = vsub.s32 32, %v221
    %v223 = vshll.u32 %v214, %v221
    %v224 = vshrl.u32 %v206, %v222
    %v225 = vor.u32 %v223, %v224
    %v226 = vsub.s32 4294967266, %v221
    %v227 = vadd.s32 %v226, 127
    %v228 = vshll.u32 %v227, 23
    %v229 = vor.u32 4788187, %v228
    %v230 = vand.u32 2147483647, %v229
    %v232 = vcvt.s32.f32 %v225
    %v233 = vmul.f32 %v232, %v230
    %v234 = vxor.u32 %v233, 2147483648
    %v235 = vsel %vm152, %v234, %v233
    %v236 = vsub.s32 4, %v212
    %v237 = vsel %vm152, %v236, %v212
    %v238 = vsel %vm151, %v143, %v235
    %v239 = vsel %vm151, 0, %v237
    %v240 = vcosq.f32.pop %v238
    %v241 = vsinq.f32.pop %v238
    %vm242 = vweird.f32 %v143
    %v243 = vand.u32 %v239, 3
    %vm244 = vcmp.lt.s32.totalorder %v243, 2
    %vm245 = vcmp.eq.s32.totalorder %v243, 0
    %v246 = vxor.u32 %v241, 2147483648
    %v247 = vsel %vm245, %v240, %v246
    %vm248 = vcmp.eq.s32.totalorder %v243, 2
    %v249 = vxor.u32 %v240, 2147483648
    %v250 = vsel %vm248, %v249, %v241
    %v251 = vsel %vm244, %v247, %v250
    %v252 = vsel %vm242, nan, %v251
    %v253 = vand.u32 2147483647, %v144
    %vm254 = vcmp.le.f32.partialorder %v253, 0.7853982
    %vm255 = vcmp.lt.s32.totalorder %v144, 0
    %v256 = vand.u32 %v144, 2139095040
    %v257 = vshrl.u32 %v256, 23
    %v258 = vsub.s32 %v257, 127
    %v259 = vand.u32 2147483647, %v144
    %v260 = vand.u32 %v259, 8388607
    %v261 = vor.u32 %v260, 8388608
    %v262 = vsub.s32 0, %v261
    %v263 = vadd.s32 %v258, 1
    %vm264 = vcmp.gt.s32.totalorder %v263, 0
    %v265 = vsel %vm264, %v263, 0
    %v266 = vshrl.u32 %v265, 5
    %v267 = vand.u32 %v265, 31
    %v268 = vsub.s32 32, %v267
    %v269 = vshrl.u32 683565275, %v268
    %v270 = vshll.u32 683565275, %v267
    %v271 = vshrl.u32 2475754826, %v268
    %v272 = vor.u32 %v270, %v271
    %v273 = vshll.u32 2475754826, %v267
    %v274 = vshrl.u32 2131351028, %v268
    %v275 = vor.u32 %v273, %v274
    %v276 = vshll.u32 2131351028, %v267
    %v277 = vshrl.u32 2102212464, %v268
    %v278 = vor.u32 %v276, %v277
    %v279 = vshll.u32 2102212464, %v267
    %v280 = vshrl.u32 920167782, %v268
    %v281 = vor.u32 %v279, %v280
    %v282 = vshll.u32 920167782, %v267
    %v283 = vshrl.u32 1326507024, %v268
    %v284 = vor.u32 %v282, %v283
    %vm285 = vcmp.lt.s32.totalorder %v266, 1
    %vm286 = vcmp.lt.s32.totalorder %v266, 2
    %vm287 = vcmp.lt.s32.totalorder %v266, 3
    %vm288 = vcmp.lt.s32.totalorder %v266, 4
    %v289 = vsel %vm285, %v269, %v272
    %v290 = vsel %vm288, %v278, 2102212464
    %v291 = vsel %vm287, %v275, %v290
    %v292 = vsel %vm286, %v289, %v291
    %v293 = vsel %vm285, %v272, %v275
    %v294 = vsel %vm288, %v281, 920167782
    %v295 = vsel %vm287, %v278, %v294
    %v296 = vsel %vm286, %v293, %v295
    %v297 = vsel %vm285, %v275, %v278
    %v298 = vsel %vm288, %v284, 1326507024
    %v299 = vsel %vm287, %v281, %v298
    %v300 = vsel %vm286, %v297, %v299
    %v301 = vshll.u32 %v261, 8
    %v302 = vmul.u32.u64.compose %v301, %v300
    %v303 = vextract.low.u32 %v302
    %v304 = vextract.high.u32 %v302
    %v305 = vmul.u32.u64.compose %v301, %v296
    %v306 = vextract.low.u32 %v305
    %v307 = vextract.high.u32 %v305
    %v308 = vmul.u32 %v301, %v292
    %v309 = vadd.s32 %v304, %v306
    %vm310 = vc.u32 %v304, %v306
    %v311 = vadd.s32 %v307, 1
    %v312 = vsel %vm310, %v311, %v307
    %v313 = vadd.s32 %v308, %v312
    %v314 = vadd.s32 %v313, 536870912
    %v315 = vshrl.u32 %v314, 30
    %v316 = vshll.u32 %v315, 30
    %v317 = vsub.s32 %v313, %v316
    %vm318 = vcmp.lt.s32.totalorder %v317, 0
    %v319 = vsub.s32 0, %v317
    %v320 = vsel %vm318, %v319, %v317
    %v321 = vclz %v320
    %v322 = vsub.s32 %v321, 2
    %vm323 = vcmp.gt.s32.totalorder 0, %v322
    %v324 = vsel %vm323, 0, %v322
    %v325 = vsub.s32 32, %v324
    %v326 = vshll.u32 %v317, %v324
    %v327 = vshrl.u32 %v309, %v325
    %v328 = vor.u32 %v326, %v327
    %v329 = vsub.s32 4294967266, %v324
    %v330 = vadd.s32 %v329, 127
    %v331 = vshll.u32 %v330, 23
    %v332 = vor.u32 4788187, %v331
    %v333 = vand.u32 2147483647, %v332
    %v335 = vcvt.s32.f32 %v328
    %v336 = vmul.f32 %v335, %v333
    %v337 = vxor.u32 %v336, 2147483648
    %v338 = vsel %vm255, %v337, %v336
    %v339 = vsub.s32 4, %v315
    %v340 = vsel %vm255, %v339, %v315
    %v341 = vsel %vm254, %v144, %v338
    %v342 = vsel %vm254, 0, %v340
    %v343 = vcosq.f32.pop %v341
    %v344 = vsinq.f32.pop %v341
    %vm345 = vweird.f32 %v144
    %v346 = vand.u32 %v342, 3
    %vm347 = vcmp.lt.s32.totalorder %v346, 2
    %vm348 = vcmp.eq.s32.totalorder %v346, 0
    %v349 = vxor.u32 %v344, 2147483648
    %v350 = vsel %vm348, %v343, %v349
    %vm351 = vcmp.eq.s32.totalorder %v346, 2
    %v352 = vxor.u32 %v343, 2147483648
    %v353 = vsel %vm351, %v352, %v344
    %v354 = vsel %vm347, %v350, %v353
    %v355 = vsel %vm345, nan, %v354
    %v356 = vand.u32 2147483647, %v145
    %vm357 = vcmp.le.f32.partialorder %v356, 0.7853982
    %vm358 = vcmp.lt.s32.totalorder %v145, 0
    %v359 = vand.u32 %v145, 2139095040
    %v360 = vshrl.u32 %v359, 23
    %v361 = vsub.s32 %v360, 127
    %v362 = vand.u32 2147483647, %v145
    %v363 = vand.u32 %v362, 8388607
    %v364 = vor.u32 %v363, 8388608
    %v365 = vsub.s32 0, %v364
    %v366 = vadd.s32 %v361, 1
    %vm367 = vcmp.gt.s32.totalorder %v366, 0
    %v368 = vsel %vm367, %v366, 0
    %v369 = vshrl.u32 %v368, 5
    %v370 = vand.u32 %v368, 31
    %v371 = vsub.s32 32, %v370
    %v372 = vshrl.u32 683565275, %v371
    %v373 = vshll.u32 683565275, %v370
    %v374 = vshrl.u32 2475754826, %v371
    %v375 = vor.u32 %v373, %v374
    %v376 = vshll.u32 2475754826, %v370
    %v377 = vshrl.u32 2131351028, %v371
    %v378 = vor.u32 %v376, %v377
    %v379 = vshll.u32 2131351028, %v370
    %v380 = vshrl.u32 2102212464, %v371
    %v381 = vor.u32 %v379, %v380
    %v382 = vshll.u32 2102212464, %v370
    %v383 = vshrl.u32 920167782, %v371
    %v384 = vor.u32 %v382, %v383
    %v385 = vshll.u32 920167782, %v370
    %v386 = vshrl.u32 1326507024, %v371
    %v387 = vor.u32 %v385, %v386
    %vm388 = vcmp.lt.s32.totalorder %v369, 1
    %vm389 = vcmp.lt.s32.totalorder %v369, 2
    %vm390 = vcmp.lt.s32.totalorder %v369, 3
    %vm391 = vcmp.lt.s32.totalorder %v369, 4
    %v392 = vsel %vm388, %v372, %v375
    %v393 = vsel %vm391, %v381, 2102212464
    %v394 = vsel %vm390, %v378, %v393
    %v395 = vsel %vm389, %v392, %v394
    %v396 = vsel %vm388, %v375, %v378
    %v397 = vsel %vm391, %v384, 920167782
    %v398 = vsel %vm390, %v381, %v397
    %v399 = vsel %vm389, %v396, %v398
    %v400 = vsel %vm388, %v378, %v381
    %v401 = vsel %vm391, %v387, 1326507024
    %v402 = vsel %vm390, %v384, %v401
    %v403 = vsel %vm389, %v400, %v402
    %v404 = vshll.u32 %v364, 8
    %v405 = vmul.u32.u64.compose %v404, %v403
    %v406 = vextract.low.u32 %v405
    %v407 = vextract.high.u32 %v405
    %v408 = vmul.u32.u64.compose %v404, %v399
    %v409 = vextract.low.u32 %v408
    %v410 = vextract.high.u32 %v408
    %v411 = vmul.u32 %v404, %v395
    %v412 = vadd.s32 %v407, %v409
    %vm413 = vc.u32 %v407, %v409
    %v414 = vadd.s32 %v410, 1
    %v415 = vsel %vm413, %v414, %v410
    %v416 = vadd.s32 %v411, %v415
    %v417 = vadd.s32 %v416, 536870912
    %v418 = vshrl.u32 %v417, 30
    %v419 = vshll.u32 %v418, 30
    %v420 = vsub.s32 %v416, %v419
    %vm421 = vcmp.lt.s32.totalorder %v420, 0
    %v422 = vsub.s32 0, %v420
    %v423 = vsel %vm421, %v422, %v420
    %v424 = vclz %v423
    %v425 = vsub.s32 %v424, 2
    %vm426 = vcmp.gt.s32.totalorder 0, %v425
    %v427 = vsel %vm426, 0, %v425
    %v428 = vsub.s32 32, %v427
    %v429 = vshll.u32 %v420, %v427
    %v430 = vshrl.u32 %v412, %v428
    %v431 = vor.u32 %v429, %v430
    %v432 = vsub.s32 4294967266, %v427
    %v433 = vadd.s32 %v432, 127
    %v434 = vshll.u32 %v433, 23
    %v435 = vor.u32 4788187, %v434
    %v436 = vand.u32 2147483647, %v435
    %v438 = vcvt.s32.f32 %v431
    %v439 = vmul.f32 %v438, %v436
    %v440 = vxor.u32 %v439, 2147483648
    %v441 = vsel %vm358, %v440, %v439
    %v442 = vsub.s32 4, %v418
    %v443 = vsel %vm358, %v442, %v418
    %v444 = vsel %vm357, %v145, %v441
    %v445 = vsel %vm357, 0, %v443
    %v446 = vcosq.f32.pop %v444
    %v447 = vsinq.f32.pop %v444
    %vm448 = vweird.f32 %v145
    %v449 = vand.u32 %v445, 3
    %vm450 = vcmp.lt.s32.totalorder %v449, 2
    %vm451 = vcmp.eq.s32.totalorder %v449, 0
    %v452 = vxor.u32 %v447, 2147483648
    %v453 = vsel %vm451, %v446, %v452
    %vm454 = vcmp.eq.s32.totalorder %v449, 2
    %v455 = vxor.u32 %v446, 2147483648
    %v456 = vsel %vm454, %v455, %v447
    %v457 = vsel %vm450, %v453, %v456
    %v458 = vsel %vm448, nan, %v457
    %v459 = vand.u32 2147483647, %v146
    %vm460 = vcmp.le.f32.partialorder %v459, 0.7853982
    %vm461 = vcmp.lt.s32.totalorder %v146, 0
    %v462 = vand.u32 %v146, 2139095040
    %v463 = vshrl.u32 %v462, 23
    %v464 = vsub.s32 %v463, 127
    %v465 = vand.u32 2147483647, %v146
    %v466 = vand.u32 %v465, 8388607
    %v467 = vor.u32 %v466, 8388608
    %v468 = vsub.s32 0, %v467
    %v469 = vadd.s32 %v464, 1
    %vm470 = vcmp.gt.s32.totalorder %v469, 0
    %v471 = vsel %vm470, %v469, 0
    %v472 = vshrl.u32 %v471, 5
    %v473 = vand.u32 %v471, 31
    %v474 = vsub.s32 32, %v473
    %v475 = vshrl.u32 683565275, %v474
    %v476 = vshll.u32 683565275, %v473
    %v477 = vshrl.u32 2475754826, %v474
    %v478 = vor.u32 %v476, %v477
    %v479 = vshll.u32 2475754826, %v473
    %v480 = vshrl.u32 2131351028, %v474
    %v481 = vor.u32 %v479, %v480
    %v482 = vshll.u32 2131351028, %v473
    %v483 = vshrl.u32 2102212464, %v474
    %v484 = vor.u32 %v482, %v483
    %v485 = vshll.u32 2102212464, %v473
    %v486 = vshrl.u32 920167782, %v474
    %v487 = vor.u32 %v485, %v486
    %v488 = vshll.u32 920167782, %v473
    %v489 = vshrl.u32 1326507024, %v474
    %v490 = vor.u32 %v488, %v489
    %vm491 = vcmp.lt.s32.totalorder %v472, 1
    %vm492 = vcmp.lt.s32.totalorder %v472, 2
    %vm493 = vcmp.lt.s32.totalorder %v472, 3
    %vm494 = vcmp.lt.s32.totalorder %v472, 4
    %v495 = vsel %vm491, %v475, %v478
    %v496 = vsel %vm494, %v484, 2102212464
    %v497 = vsel %vm493, %v481, %v496
    %v498 = vsel %vm492, %v495, %v497
    %v499 = vsel %vm491, %v478, %v481
    %v500 = vsel %vm494, %v487, 920167782
    %v501 = vsel %vm493, %v484, %v500
    %v502 = vsel %vm492, %v499, %v501
    %v503 = vsel %vm491, %v481, %v484
    %v504 = vsel %vm494, %v490, 1326507024
    %v505 = vsel %vm493, %v487, %v504
    %v506 = vsel %vm492, %v503, %v505
    %v507 = vshll.u32 %v467, 8
    %v508 = vmul.u32.u64.compose %v507, %v506
    %v509 = vextract.low.u32 %v508
    %v510 = vextract.high.u32 %v508
    %v511 = vmul.u32.u64.compose %v507, %v502
    %v512 = vextract.low.u32 %v511
    %v513 = vextract.high.u32 %v511
    %v514 = vmul.u32 %v507, %v498
    %v515 = vadd.s32 %v510, %v512
    %vm516 = vc.u32 %v510, %v512
    %v517 = vadd.s32 %v513, 1
    %v518 = vsel %vm516, %v517, %v513
    %v519 = vadd.s32 %v514, %v518
    %v520 = vadd.s32 %v519, 536870912
    %v521 = vshrl.u32 %v520, 30
    %v522 = vshll.u32 %v521, 30
    %v523 = vsub.s32 %v519, %v522
    %vm524 = vcmp.lt.s32.totalorder %v523, 0
    %v525 = vsub.s32 0, %v523
    %v526 = vsel %vm524, %v525, %v523
    %v527 = vclz %v526
    %v528 = vsub.s32 %v527, 2
    %vm529 = vcmp.gt.s32.totalorder 0, %v528
    %v530 = vsel %vm529, 0, %v528
    %v531 = vsub.s32 32, %v530
    %v532 = vshll.u32 %v523, %v530
    %v533 = vshrl.u32 %v515, %v531
    %v534 = vor.u32 %v532, %v533
    %v535 = vsub.s32 4294967266, %v530
    %v536 = vadd.s32 %v535, 127
    %v537 = vshll.u32 %v536, 23
    %v538 = vor.u32 4788187, %v537
    %v539 = vand.u32 2147483647, %v538
    %v541 = vcvt.s32.f32 %v534
    %v542 = vmul.f32 %v541, %v539
    %v543 = vxor.u32 %v542, 2147483648
    %v544 = vsel %vm461, %v543, %v542
    %v545 = vsub.s32 4, %v521
    %v546 = vsel %vm461, %v545, %v521
    %v547 = vsel %vm460, %v146, %v544
    %v548 = vsel %vm460, 0, %v546
    %v549 = vcosq.f32.pop %v547
    %v550 = vsinq.f32.pop %v547
    %vm551 = vweird.f32 %v146
    %v552 = vand.u32 %v548, 3
    %vm553 = vcmp.lt.s32.totalorder %v552, 2
    %vm554 = vcmp.eq.s32.totalorder %v552, 0
    %v555 = vxor.u32 %v550, 2147483648
    %v556 = vsel %vm554, %v549, %v555
    %vm557 = vcmp.eq.s32.totalorder %v552, 2
    %v558 = vxor.u32 %v549, 2147483648
    %v559 = vsel %vm557, %v558, %v550
    %v560 = vsel %vm553, %v556, %v559
    %v561 = vsel %vm551, nan, %v560
    %v562 = vand.u32 2147483647, %v147
    %vm563 = vcmp.le.f32.partialorder %v562, 0.7853982
    %vm564 = vcmp.lt.s32.totalorder %v147, 0
    %v565 = vand.u32 %v147, 2139095040
    %v566 = vshrl.u32 %v565, 23
    %v567 = vsub.s32 %v566, 127
    %v568 = vand.u32 2147483647, %v147
    %v569 = vand.u32 %v568, 8388607
    %v570 = vor.u32 %v569, 8388608
    %v571 = vsub.s32 0, %v570
    %v572 = vadd.s32 %v567, 1
    %vm573 = vcmp.gt.s32.totalorder %v572, 0
    %v574 = vsel %vm573, %v572, 0
    %v575 = vshrl.u32 %v574, 5
    %v576 = vand.u32 %v574, 31
    %v577 = vsub.s32 32, %v576
    %v578 = vshrl.u32 683565275, %v577
    %v579 = vshll.u32 683565275, %v576
    %v580 = vshrl.u32 2475754826, %v577
    %v581 = vor.u32 %v579, %v580
    %v582 = vshll.u32 2475754826, %v576
    %v583 = vshrl.u32 2131351028, %v577
    %v584 = vor.u32 %v582, %v583
    %v585 = vshll.u32 2131351028, %v576
    %v586 = vshrl.u32 2102212464, %v577
    %v587 = vor.u32 %v585, %v586
    %v588 = vshll.u32 2102212464, %v576
    %v589 = vshrl.u32 920167782, %v577
    %v590 = vor.u32 %v588, %v589
    %v591 = vshll.u32 920167782, %v576
    %v592 = vshrl.u32 1326507024, %v577
    %v593 = vor.u32 %v591, %v592
    %vm594 = vcmp.lt.s32.totalorder %v575, 1
    %vm595 = vcmp.lt.s32.totalorder %v575, 2
    %vm596 = vcmp.lt.s32.totalorder %v575, 3
    %vm597 = vcmp.lt.s32.totalorder %v575, 4
    %v598 = vsel %vm594, %v578, %v581
    %v599 = vsel %vm597, %v587, 2102212464
    %v600 = vsel %vm596, %v584, %v599
    %v601 = vsel %vm595, %v598, %v600
    %v602 = vsel %vm594, %v581, %v584
    %v603 = vsel %vm597, %v590, 920167782
    %v604 = vsel %vm596, %v587, %v603
    %v605 = vsel %vm595, %v602, %v604
    %v606 = vsel %vm594, %v584, %v587
    %v607 = vsel %vm597, %v593, 1326507024
    %v608 = vsel %vm596, %v590, %v607
    %v609 = vsel %vm595, %v606, %v608
    %v610 = vshll.u32 %v570, 8
    %v611 = vmul.u32.u64.compose %v610, %v609
    %v612 = vextract.low.u32 %v611
    %v613 = vextract.high.u32 %v611
    %v614 = vmul.u32.u64.compose %v610, %v605
    %v615 = vextract.low.u32 %v614
    %v616 = vextract.high.u32 %v614
    %v617 = vmul.u32 %v610, %v601
    %v618 = vadd.s32 %v613, %v615
    %vm619 = vc.u32 %v613, %v615
    %v620 = vadd.s32 %v616, 1
    %v621 = vsel %vm619, %v620, %v616
    %v622 = vadd.s32 %v617, %v621
    %v623 = vadd.s32 %v622, 536870912
    %v624 = vshrl.u32 %v623, 30
    %v625 = vshll.u32 %v624, 30
    %v626 = vsub.s32 %v622, %v625
    %vm627 = vcmp.lt.s32.totalorder %v626, 0
    %v628 = vsub.s32 0, %v626
    %v629 = vsel %vm627, %v628, %v626
    %v630 = vclz %v629
    %v631 = vsub.s32 %v630, 2
    %vm632 = vcmp.gt.s32.totalorder 0, %v631
    %v633 = vsel %vm632, 0, %v631
    %v634 = vsub.s32 32, %v633
    %v635 = vshll.u32 %v626, %v633
    %v636 = vshrl.u32 %v618, %v634
    %v637 = vor.u32 %v635, %v636
    %v638 = vsub.s32 4294967266, %v633
    %v639 = vadd.s32 %v638, 127
    %v640 = vshll.u32 %v639, 23
    %v641 = vor.u32 4788187, %v640
    %v642 = vand.u32 2147483647, %v641
    %v644 = vcvt.s32.f32 %v637
    %v645 = vmul.f32 %v644, %v642
    %v646 = vxor.u32 %v645, 2147483648
    %v647 = vsel %vm564, %v646, %v645
    %v648 = vsub.s32 4, %v624
    %v649 = vsel %vm564, %v648, %v624
    %v650 = vsel %vm563, %v147, %v647
    %v651 = vsel %vm563, 0, %v649
    %v652 = vcosq.f32.pop %v650
    %v653 = vsinq.f32.pop %v650
    %vm654 = vweird.f32 %v147
    %v655 = vand.u32 %v651, 3
    %vm656 = vcmp.lt.s32.totalorder %v655, 2
    %vm657 = vcmp.eq.s32.totalorder %v655, 0
    %v658 = vxor.u32 %v653, 2147483648
    %v659 = vsel %vm657, %v652, %v658
    %vm660 = vcmp.eq.s32.totalorder %v655, 2
    %v661 = vxor.u32 %v652, 2147483648
    %v662 = vsel %vm660, %v661, %v653
    %v663 = vsel %vm656, %v659, %v662
    %v664 = vsel %vm654, nan, %v663
    %v665 = vand.u32 2147483647, %v148
    %vm666 = vcmp.le.f32.partialorder %v665, 0.7853982
    %vm667 = vcmp.lt.s32.totalorder %v148, 0
    %v668 = vand.u32 %v148, 2139095040
    %v669 = vshrl.u32 %v668, 23
    %v670 = vsub.s32 %v669, 127
    %v671 = vand.u32 2147483647, %v148
    %v672 = vand.u32 %v671, 8388607
    %v673 = vor.u32 %v672, 8388608
    %v674 = vsub.s32 0, %v673
    %v675 = vadd.s32 %v670, 1
    %vm676 = vcmp.gt.s32.totalorder %v675, 0
    %v677 = vsel %vm676, %v675, 0
    %v678 = vshrl.u32 %v677, 5
    %v679 = vand.u32 %v677, 31
    %v680 = vsub.s32 32, %v679
    %v681 = vshrl.u32 683565275, %v680
    %v682 = vshll.u32 683565275, %v679
    %v683 = vshrl.u32 2475754826, %v680
    %v684 = vor.u32 %v682, %v683
    %v685 = vshll.u32 2475754826, %v679
    %v686 = vshrl.u32 2131351028, %v680
    %v687 = vor.u32 %v685, %v686
    %v688 = vshll.u32 2131351028, %v679
    %v689 = vshrl.u32 2102212464, %v680
    %v690 = vor.u32 %v688, %v689
    %v691 = vshll.u32 2102212464, %v679
    %v692 = vshrl.u32 920167782, %v680
    %v693 = vor.u32 %v691, %v692
    %v694 = vshll.u32 920167782, %v679
    %v695 = vshrl.u32 1326507024, %v680
    %v696 = vor.u32 %v694, %v695
    %vm697 = vcmp.lt.s32.totalorder %v678, 1
    %vm698 = vcmp.lt.s32.totalorder %v678, 2
    %vm699 = vcmp.lt.s32.totalorder %v678, 3
    %vm700 = vcmp.lt.s32.totalorder %v678, 4
    %v701 = vsel %vm697, %v681, %v684
    %v702 = vsel %vm700, %v690, 2102212464
    %v703 = vsel %vm699, %v687, %v702
    %v704 = vsel %vm698, %v701, %v703
    %v705 = vsel %vm697, %v684, %v687
    %v706 = vsel %vm700, %v693, 920167782
    %v707 = vsel %vm699, %v690, %v706
    %v708 = vsel %vm698, %v705, %v707
    %v709 = vsel %vm697, %v687, %v690
    %v710 = vsel %vm700, %v696, 1326507024
    %v711 = vsel %vm699, %v693, %v710
    %v712 = vsel %vm698, %v709, %v711
    %v713 = vshll.u32 %v673, 8
    %v714 = vmul.u32.u64.compose %v713, %v712
    %v715 = vextract.low.u32 %v714
    %v716 = vextract.high.u32 %v714
    %v717 = vmul.u32.u64.compose %v713, %v708
    %v718 = vextract.low.u32 %v717
    %v719 = vextract.high.u32 %v717
    %v720 = vmul.u32 %v713, %v704
    %v721 = vadd.s32 %v716, %v718
    %vm722 = vc.u32 %v716, %v718
    %v723 = vadd.s32 %v719, 1
    %v724 = vsel %vm722, %v723, %v719
    %v725 = vadd.s32 %v720, %v724
    %v726 = vadd.s32 %v725, 536870912
    %v727 = vshrl.u32 %v726, 30
    %v728 = vshll.u32 %v727, 30
    %v729 = vsub.s32 %v725, %v728
    %vm730 = vcmp.lt.s32.totalorder %v729, 0
    %v731 = vsub.s32 0, %v729
    %v732 = vsel %vm730, %v731, %v729
    %v733 = vclz %v732
    %v734 = vsub.s32 %v733, 2
    %vm735 = vcmp.gt.s32.totalorder 0, %v734
    %v736 = vsel %vm735, 0, %v734
    %v737 = vsub.s32 32, %v736
    %v738 = vshll.u32 %v729, %v736
    %v739 = vshrl.u32 %v721, %v737
    %v740 = vor.u32 %v738, %v739
    %v741 = vsub.s32 4294967266, %v736
    %v742 = vadd.s32 %v741, 127
    %v743 = vshll.u32 %v742, 23
    %v744 = vor.u32 4788187, %v743
    %v745 = vand.u32 2147483647, %v744
    %v747 = vcvt.s32.f32 %v740
    %v748 = vmul.f32 %v747, %v745
    %v749 = vxor.u32 %v748, 2147483648
    %v750 = vsel %vm667, %v749, %v748
    %v751 = vsub.s32 4, %v727
    %v752 = vsel %vm667, %v751, %v727
    %v753 = vsel %vm666, %v148, %v750
    %v754 = vsel %vm666, 0, %v752
    %v755 = vcosq.f32.pop %v753
    %v756 = vsinq.f32.pop %v753
    %vm757 = vweird.f32 %v148
    %v758 = vand.u32 %v754, 3
    %vm759 = vcmp.lt.s32.totalorder %v758, 2
    %vm760 = vcmp.eq.s32.totalorder %v758, 0
    %v761 = vxor.u32 %v756, 2147483648
    %v762 = vsel %vm760, %v755, %v761
    %vm763 = vcmp.eq.s32.totalorder %v758, 2
    %v764 = vxor.u32 %v755, 2147483648
    %v765 = vsel %vm763, %v764, %v756
    %v766 = vsel %vm759, %v762, %v765
    %v767 = vsel %vm757, nan, %v766
    %v768 = vand.u32 2147483647, %v149
    %vm769 = vcmp.le.f32.partialorder %v768, 0.7853982
    %vm770 = vcmp.lt.s32.totalorder %v149, 0
    %v771 = vand.u32 %v149, 2139095040
    %v772 = vshrl.u32 %v771, 23
    %v773 = vsub.s32 %v772, 127
    %v774 = vand.u32 2147483647, %v149
    %v775 = vand.u32 %v774, 8388607
    %v776 = vor.u32 %v775, 8388608
    %v777 = vsub.s32 0, %v776
    %v778 = vadd.s32 %v773, 1
    %vm779 = vcmp.gt.s32.totalorder %v778, 0
    %v780 = vsel %vm779, %v778, 0
    %v781 = vshrl.u32 %v780, 5
    %v782 = vand.u32 %v780, 31
    %v783 = vsub.s32 32, %v782
    %v784 = vshrl.u32 683565275, %v783
    %v785 = vshll.u32 683565275, %v782
    %v786 = vshrl.u32 2475754826, %v783
    %v787 = vor.u32 %v785, %v786
    %v788 = vshll.u32 2475754826, %v782
    %v789 = vshrl.u32 2131351028, %v783
    %v790 = vor.u32 %v788, %v789
    %v791 = vshll.u32 2131351028, %v782
    %v792 = vshrl.u32 2102212464, %v783
    %v793 = vor.u32 %v791, %v792
    %v794 = vshll.u32 2102212464, %v782
    %v795 = vshrl.u32 920167782, %v783
    %v796 = vor.u32 %v794, %v795
    %v797 = vshll.u32 920167782, %v782
    %v798 = vshrl.u32 1326507024, %v783
    %v799 = vor.u32 %v797, %v798
    %vm800 = vcmp.lt.s32.totalorder %v781, 1
    %vm801 = vcmp.lt.s32.totalorder %v781, 2
    %vm802 = vcmp.lt.s32.totalorder %v781, 3
    %vm803 = vcmp.lt.s32.totalorder %v781, 4
    %v804 = vsel %vm800, %v784, %v787
    %v805 = vsel %vm803, %v793, 2102212464
    %v806 = vsel %vm802, %v790, %v805
    %v807 = vsel %vm801, %v804, %v806
    %v808 = vsel %vm800, %v787, %v790
    %v809 = vsel %vm803, %v796, 920167782
    %v810 = vsel %vm802, %v793, %v809
    %v811 = vsel %vm801, %v808, %v810
    %v812 = vsel %vm800, %v790, %v793
    %v813 = vsel %vm803, %v799, 1326507024
    %v814 = vsel %vm802, %v796, %v813
    %v815 = vsel %vm801, %v812, %v814
    %v816 = vshll.u32 %v776, 8
    %v817 = vmul.u32.u64.compose %v816, %v815
    %v818 = vextract.low.u32 %v817
    %v819 = vextract.high.u32 %v817
    %v820 = vmul.u32.u64.compose %v816, %v811
    %v821 = vextract.low.u32 %v820
    %v822 = vextract.high.u32 %v820
    %v823 = vmul.u32 %v816, %v807
    %v824 = vadd.s32 %v819, %v821
    %vm825 = vc.u32 %v819, %v821
    %v826 = vadd.s32 %v822, 1
    %v827 = vsel %vm825, %v826, %v822
    %v828 = vadd.s32 %v823, %v827
    %v829 = vadd.s32 %v828, 536870912
    %v830 = vshrl.u32 %v829, 30
    %v831 = vshll.u32 %v830, 30
    %v832 = vsub.s32 %v828, %v831
    %vm833 = vcmp.lt.s32.totalorder %v832, 0
    %v834 = vsub.s32 0, %v832
    %v835 = vsel %vm833, %v834, %v832
    %v836 = vclz %v835
    %v837 = vsub.s32 %v836, 2
    %vm838 = vcmp.gt.s32.totalorder 0, %v837
    %v839 = vsel %vm838, 0, %v837
    %v840 = vsub.s32 32, %v839
    %v841 = vshll.u32 %v832, %v839
    %v842 = vshrl.u32 %v824, %v840
    %v843 = vor.u32 %v841, %v842
    %v844 = vsub.s32 4294967266, %v839
    %v845 = vadd.s32 %v844, 127
    %v846 = vshll.u32 %v845, 23
    %v847 = vor.u32 4788187, %v846
    %v848 = vand.u32 2147483647, %v847
    %v850 = vcvt.s32.f32 %v843
    %v851 = vmul.f32 %v850, %v848
    %v852 = vxor.u32 %v851, 2147483648
    %v853 = vsel %vm770, %v852, %v851
    %v854 = vsub.s32 4, %v830
    %v855 = vsel %vm770, %v854, %v830
    %v856 = vsel %vm769, %v149, %v853
    %v857 = vsel %vm769, 0, %v855
    %v858 = vcosq.f32.pop %v856
    %v859 = vsinq.f32.pop %v856
    %vm860 = vweird.f32 %v149
    %v861 = vand.u32 %v857, 3
    %vm862 = vcmp.lt.s32.totalorder %v861, 2
    %vm863 = vcmp.eq.s32.totalorder %v861, 0
    %v864 = vxor.u32 %v859, 2147483648
    %v865 = vsel %vm863, %v858, %v864
    %vm866 = vcmp.eq.s32.totalorder %v861, 2
    %v867 = vxor.u32 %v858, 2147483648
    %v868 = vsel %vm866, %v867, %v859
    %v869 = vsel %vm862, %v865, %v868
    %v870 = vsel %vm860, nan, %v869
    %v871 = vadd.f32 %v252, 1.0
    %v872 = vadd.f32 %v355, 1.0
    %v873 = vadd.f32 %v458, 1.0
    %v874 = vadd.f32 %v561, 1.0
    %v875 = vadd.f32 %v664, 1.0
    %v876 = vadd.f32 %v767, 1.0
    %v877 = vadd.f32 %v870, 1.0
    %v878 = vmul.f32 %v871, 0.5
    %v879 = vmul.f32 %v872, 0.5
    %v880 = vmul.f32 %v873, 0.5
    %v881 = vmul.f32 %v874, 0.5
    %v882 = vmul.f32 %v875, 0.5
    %v883 = vmul.f32 %v876, 0.5
    %v884 = vmul.f32 %v877, 0.5
    %vm885 = vcmp.lt.f32.partialorder %v59, 5.0
    %vm886 = vcmp.lt.f32.partialorder %v60, 5.0
    %vm887 = vcmp.lt.f32.partialorder %v61, 5.0
    %vm888 = vcmp.lt.f32.partialorder %v62, 5.0
    %vm889 = vcmp.lt.f32.partialorder %v63, 5.0
    %vm890 = vcmp.lt.f32.partialorder %v64, 5.0
    %vm891 = vcmp.lt.f32.partialorder %v65, 5.0
    %v892 = vsel %vm885, %v878, 0.0
    %v893 = vsel %vm886, %v879, 0.0
    %v894 = vsel %vm887, %v880, 0.0
    %v895 = vsel %vm888, %v881, 0.0
    %v896 = vsel %vm889, %v882, 0.0
    %v897 = vsel %vm890, %v883, 0.0
    %v898 = vsel %vm891, %v884, 0.0
    %v899 = vld [vmem:[%s2] sm:$0xff]
    %v900 = vld [vmem:[%s3] sm:$0xff]
    %v901 = vld [vmem:[%s3 + $0x8] sm:$0xff]
    %v902 = vld [vmem:[%s4] sm:$0x1]
    %v904 = vlaneseq
    %v905 = vshrl.u32 %v904, 7
    %v906 = vsub.s32 0, %v905
    %v907 = vrot.slane %v902, %v906
    %vm909 = vcmask 130048
    %v911 = vsel %vm909, %v130, 0
    %v914 = vsel %vm909, %v132, 0
    %v917 = vsel %vm909, %v134, 0
    %v920 = vsel %vm909, %v136, 0
    %v923 = vsel %vm909, %v138, 0
    %v926 = vsel %vm909, %v140, 0
    %v929 = vsel %vm909, %v142, 0
    %931 = vmatprep.subr.mxu0 0.0
    %932 = vmatpush1.msra.mxu0 %v900
    %933 = vmatprep.subr.mxu0 0.0
    %934 = vmatpush1.msra.mxu0 %v901
    %935 = vmatprep.subr.mxu0 0.0
    %936 = vmatpush1.msra.mxu0 0.0
    %937 = vmatprep.subr.mxu0 0.0
    %938 = vmatpush1.msra.mxu0 0.0
    %939 = vmatprep.subr.mxu0 0.0
    %940 = vmatpush1.msra.mxu0 0.0
    %941 = vmatprep.subr.mxu0 0.0
    %942 = vmatpush1.msra.mxu0 0.0
    %943 = vmatprep.subr.mxu0 0.0
    %944 = vmatpush1.msra.mxu0 0.0
    %945 = vmatprep.subr.mxu0 0.0
    %946 = vmatpush1.msra.mxu0 0.0
    %947 = vmatprep.subr.mxu0 0.0
    %948 = vmatpush1.msra.mxu0 0.0
    %949 = vmatprep.subr.mxu0 0.0
    %950 = vmatpush1.msra.mxu0 0.0
    %951 = vmatprep.subr.mxu0 0.0
    %952 = vmatpush1.msra.mxu0 0.0
    %953 = vmatprep.subr.mxu0 0.0
    %954 = vmatpush1.msra.mxu0 0.0
    %955 = vmatprep.subr.mxu0 0.0
    %956 = vmatpush1.msra.mxu0 0.0
    %957 = vmatprep.subr.mxu0 0.0
    %958 = vmatpush1.msra.mxu0 0.0
    %959 = vmatprep.subr.mxu0 0.0
    %960 = vmatpush1.msra.mxu0 0.0
    %961 = vmatprep.subr.mxu0 0.0
    %962 = vmatpush1.msra.mxu0 0.0
    %963 = vmatprep.subr.mxu0 0.0
    %964 = vmatpush1.msra.mxu0 0.0
    %965 = vmatprep.subr.mxu0 0.0
    %966 = vmatpush1.msra.mxu0 0.0
    %967 = vmatprep.subr.mxu0 0.0
    %968 = vmatpush1.msra.mxu0 0.0
    %969 = vmatprep.subr.mxu0 0.0
    %970 = vmatpush1.msra.mxu0 0.0
    %971 = vmatprep.subr.mxu0 0.0
    %972 = vmatpush1.msra.mxu0 0.0
    %973 = vmatprep.subr.mxu0 0.0
    %974 = vmatpush1.msra.mxu0 0.0
    %975 = vmatprep.subr.mxu0 0.0
    %976 = vmatpush1.msra.mxu0 0.0
    %977 = vmatprep.subr.mxu0 0.0
    %978 = vmatpush1.msra.mxu0 0.0
    %979 = vmatprep.subr.mxu0 0.0
    %980 = vmatpush1.msra.mxu0 0.0
    %981 = vmatprep.subr.mxu0 0.0
    %982 = vmatpush1.msra.mxu0 0.0
    %983 = vmatprep.subr.mxu0 0.0
    %984 = vmatpush1.msra.mxu0 0.0
    %985 = vmatprep.subr.mxu0 0.0
    %986 = vmatpush1.msra.mxu0 0.0
    %987 = vmatprep.subr.mxu0 0.0
    %988 = vmatpush1.msra.mxu0 0.0
    %989 = vmatprep.subr.mxu0 0.0
    %990 = vmatpush1.msra.mxu0 0.0
    %991 = vmatprep.subr.mxu0 0.0
    %992 = vmatpush1.msra.mxu0 0.0
    %993 = vmatprep.subr.mxu0 0.0
    %994 = vmatpush1.msra.mxu0 0.0
    %995 = vmatprep.mubr.f32.mxu0 0.0
    %996 = vmatmul.mubr.f32.gmra.mrb[0].mxu0 %v911
    %v997 = vpop.f32.mrb[0].mxu0
    %v998 = vadd.f32 %v907, %v997
    %v999 = vpop.f32.mrb[0].mxu0
    %1000 = vmatprep.mubr.f32.mxu0 0.0
    %1001 = vmatmul.mubr.f32.gmra.mrb[0].mxu0 %v914
    %v1002 = vpop.f32.mrb[0].mxu0
    %v1003 = vadd.f32 %v907, %v1002
    %v1004 = vpop.f32.mrb[0].mxu0
    %1005 = vmatprep.mubr.f32.mxu0 0.0
    %1006 = vmatmul.mubr.f32.gmra.mrb[0].mxu0 %v917
    %v1007 = vpop.f32.mrb[0].mxu0
    %v1008 = vadd.f32 %v907, %v1007
    %v1009 = vpop.f32.mrb[0].mxu0
    %1010 = vmatprep.mubr.f32.mxu0 0.0
    %1011 = vmatmul.mubr.f32.gmra.mrb[0].mxu0 %v920
    %v1012 = vpop.f32.mrb[0].mxu0
    %v1013 = vadd.f32 %v907, %v1012
    %v1014 = vpop.f32.mrb[0].mxu0
    %1015 = vmatprep.mubr.f32.mxu0 0.0
    %1016 = vmatmul.mubr.f32.gmra.mrb[0].mxu0 %v923
    %v1017 = vpop.f32.mrb[0].mxu0
    %v1018 = vadd.f32 %v907, %v1017
    %v1019 = vpop.f32.mrb[0].mxu0
    %1020 = vmatprep.mubr.f32.mxu0 0.0
    %1021 = vmatmul.mubr.f32.gmra.mrb[0].mxu0 %v926
    %v1022 = vpop.f32.mrb[0].mxu0
    %v1023 = vadd.f32 %v907, %v1022
    %v1024 = vpop.f32.mrb[0].mxu0
    %1025 = vmatprep.mubr.f32.mxu0 0.0
    %1026 = vmatmul.mubr.f32.gmra.mrb[0].mxu0 %v929
    %v1027 = vpop.f32.mrb[0].mxu0
    %v1028 = vadd.f32 %v907, %v1027
    %v1029 = vpop.f32.mrb[0].mxu0
    %1030 = vdwg.mxu0
    %v1031 = vmax.f32 %v998, 0.0
    %v1032 = vmax.f32 %v1003, 0.0
    %v1033 = vmax.f32 %v1008, 0.0
    %v1034 = vmax.f32 %v1013, 0.0
    %v1035 = vmax.f32 %v1018, 0.0
    %v1036 = vmax.f32 %v1023, 0.0
    %v1037 = vmax.f32 %v1028, 0.0
    %v1038 = vand.u32 2147483647, %v998
    %v1039 = vand.u32 2147483647, %v1003
    %v1040 = vand.u32 2147483647, %v1008
    %v1041 = vand.u32 2147483647, %v1013
    %v1042 = vand.u32 2147483647, %v1018
    %v1043 = vand.u32 2147483647, %v1023
    %v1044 = vand.u32 2147483647, %v1028
    %v1045 = vsub.f32 0.0, %v1038
    %v1046 = vsub.f32 0.0, %v1039
    %v1047 = vsub.f32 0.0, %v1040
    %v1048 = vsub.f32 0.0, %v1041
    %v1049 = vsub.f32 0.0, %v1042
    %v1050 = vsub.f32 0.0, %v1043
    %v1051 = vsub.f32 0.0, %v1044
    %v1052 = vmul.f32 %v1045, 1.442695
    %v1053 = vpow.pop %v1052
    %v1054 = vmul.f32 %v1046, 1.442695
    %v1055 = vpow.pop %v1054
    %v1056 = vmul.f32 %v1047, 1.442695
    %v1057 = vpow.pop %v1056
    %v1058 = vmul.f32 %v1048, 1.442695
    %v1059 = vpow.pop %v1058
    %v1060 = vmul.f32 %v1049, 1.442695
    %v1061 = vpow.pop %v1060
    %v1062 = vmul.f32 %v1050, 1.442695
    %v1063 = vpow.pop %v1062
    %v1064 = vmul.f32 %v1051, 1.442695
    %v1065 = vpow.pop %v1064
    %v1066 = vadd.f32 %v1053, 1.0
    %v1067 = vlog2.pop %v1066
    %v1068 = vmul.f32 %v1067, 0.6931472
    %v1069 = vmul.f32 -0.5, %v1053
    %v1070 = vadd.f32 %v1069, 1.0
    %v1071 = vmul.f32 %v1070, %v1053
    %v1072 = vand.u32 2147483647, %v1053
    %vm1073 = vcmp.lt.f32.partialorder %v1072, 0.0004427343
    %v1074 = vsel %vm1073, %v1071, %v1068
    %v1075 = vadd.f32 %v1055, 1.0
    %v1076 = vlog2.pop %v1075
    %v1077 = vmul.f32 %v1076, 0.6931472
    %v1078 = vmul.f32 -0.5, %v1055
    %v1079 = vadd.f32 %v1078, 1.0
    %v1080 = vmul.f32 %v1079, %v1055
    %v1081 = vand.u32 2147483647, %v1055
    %vm1082 = vcmp.lt.f32.partialorder %v1081, 0.0004427343
    %v1083 = vsel %vm1082, %v1080, %v1077
    %v1084 = vadd.f32 %v1057, 1.0
    %v1085 = vlog2.pop %v1084
    %v1086 = vmul.f32 %v1085, 0.6931472
    %v1087 = vmul.f32 -0.5, %v1057
    %v1088 = vadd.f32 %v1087, 1.0
    %v1089 = vmul.f32 %v1088, %v1057
    %v1090 = vand.u32 2147483647, %v1057
    %vm1091 = vcmp.lt.f32.partialorder %v1090, 0.0004427343
    %v1092 = vsel %vm1091, %v1089, %v1086
    %v1093 = vadd.f32 %v1059, 1.0
    %v1094 = vlog2.pop %v1093
    %v1095 = vmul.f32 %v1094, 0.6931472
    %v1096 = vmul.f32 -0.5, %v1059
    %v1097 = vadd.f32 %v1096, 1.0
    %v1098 = vmul.f32 %v1097, %v1059
    %v1099 = vand.u32 2147483647, %v1059
    %vm1100 = vcmp.lt.f32.partialorder %v1099, 0.0004427343
    %v1101 = vsel %vm1100, %v1098, %v1095
    %v1102 = vadd.f32 %v1061, 1.0
    %v1103 = vlog2.pop %v1102
    %v1104 = vmul.f32 %v1103, 0.6931472
    %v1105 = vmul.f32 -0.5, %v1061
    %v1106 = vadd.f32 %v1105, 1.0
    %v1107 = vmul.f32 %v1106, %v1061
    %v1108 = vand.u32 2147483647, %v1061
    %vm1109 = vcmp.lt.f32.partialorder %v1108, 0.0004427343
    %v1110 = vsel %vm1109, %v1107, %v1104
    %v1111 = vadd.f32 %v1063, 1.0
    %v1112 = vlog2.pop %v1111
    %v1113 = vmul.f32 %v1112, 0.6931472
    %v1114 = vmul.f32 -0.5, %v1063
    %v1115 = vadd.f32 %v1114, 1.0
    %v1116 = vmul.f32 %v1115, %v1063
    %v1117 = vand.u32 2147483647, %v1063
    %vm1118 = vcmp.lt.f32.partialorder %v1117, 0.0004427343
    %v1119 = vsel %vm1118, %v1116, %v1113
    %v1120 = vadd.f32 %v1065, 1.0
    %v1121 = vlog2.pop %v1120
    %v1122 = vmul.f32 %v1121, 0.6931472
    %v1123 = vmul.f32 -0.5, %v1065
    %v1124 = vadd.f32 %v1123, 1.0
    %v1125 = vmul.f32 %v1124, %v1065
    %v1126 = vand.u32 2147483647, %v1065
    %vm1127 = vcmp.lt.f32.partialorder %v1126, 0.0004427343
    %v1128 = vsel %vm1127, %v1125, %v1122
    %v1129 = vadd.f32 %v1031, %v1074
    %v1130 = vadd.f32 %v1032, %v1083
    %v1131 = vadd.f32 %v1033, %v1092
    %v1132 = vadd.f32 %v1034, %v1101
    %v1133 = vadd.f32 %v1035, %v1110
    %v1134 = vadd.f32 %v1036, %v1119
    %v1135 = vadd.f32 %v1037, %v1128
    %v1136 = vsub.f32 %v1129, 0.6931472
    %v1137 = vsub.f32 %v1130, 0.6931472
    %v1138 = vsub.f32 %v1131, 0.6931472
    %v1139 = vsub.f32 %v1132, 0.6931472
    %v1140 = vsub.f32 %v1133, 0.6931472
    %v1141 = vsub.f32 %v1134, 0.6931472
    %v1142 = vsub.f32 %v1135, 0.6931472
    %v1143 = vld [vmem:[%s5] sm:$0xff]
    %v1144 = vld [vmem:[%s5 + $0x8] sm:$0xff]
    %v1145 = vld [vmem:[%s5 + $0x10] sm:$0xff]
    %v1146 = vld [vmem:[%s5 + $0x18] sm:$0xff]
    %v1147 = vld [vmem:[%s6] sm:$0x1]
    %v1149 = vlaneseq
    %v1150 = vshrl.u32 %v1149, 7
    %v1151 = vsub.s32 0, %v1150
    %v1152 = vrot.slane %v1147, %v1151
    %vm1154 = vcmask 261120
    %v1156 = vsel %vm1154, %v1136, 0
    %v1159 = vsel %vm1154, %v1137, 0
    %v1162 = vsel %vm1154, %v1138, 0
    %v1165 = vsel %vm1154, %v1139, 0
    %v1168 = vsel %vm1154, %v1140, 0
    %v1171 = vsel %vm1154, %v1141, 0
    %v1174 = vsel %vm1154, %v1142, 0
    %1176 = vmatprep.subr.mxu0 0.0
    %1177 = vmatpush1.msra.mxu0 %v1143
    %1178 = vmatprep.subr.mxu0 0.0
    %1179 = vmatpush1.msra.mxu0 %v1144
    %1180 = vmatprep.subr.mxu0 0.0
    %1181 = vmatpush1.msra.mxu0 %v1145
    %1182 = vmatprep.subr.mxu0 0.0
    %1183 = vmatpush1.msra.mxu0 %v1146
    %1184 = vmatprep.subr.mxu0 0.0
    %1185 = vmatpush1.msra.mxu0 0.0
    %1186 = vmatprep.subr.mxu0 0.0
    %1187 = vmatpush1.msra.mxu0 0.0
    %1188 = vmatprep.subr.mxu0 0.0
    %1189 = vmatpush1.msra.mxu0 0.0
    %1190 = vmatprep.subr.mxu0 0.0
    %1191 = vmatpush1.msra.mxu0 0.0
    %1192 = vmatprep.subr.mxu0 0.0
    %1193 = vmatpush1.msra.mxu0 0.0
    %1194 = vmatprep.subr.mxu0 0.0
    %1195 = vmatpush1.msra.mxu0 0.0
    %1196 = vmatprep.subr.mxu0 0.0
    %1197 = vmatpush1.msra.mxu0 0.0
    %1198 = vmatprep.subr.mxu0 0.0
    %1199 = vmatpush1.msra.mxu0 0.0
    %1200 = vmatprep.subr.mxu0 0.0
    %1201 = vmatpush1.msra.mxu0 0.0
    %1202 = vmatprep.subr.mxu0 0.0
    %1203 = vmatpush1.msra.mxu0 0.0
    %1204 = vmatprep.subr.mxu0 0.0
    %1205 = vmatpush1.msra.mxu0 0.0
    %1206 = vmatprep.subr.mxu0 0.0
    %1207 = vmatpush1.msra.mxu0 0.0
    %1208 = vmatprep.subr.mxu0 0.0
    %1209 = vmatpush1.msra.mxu0 0.0
    %1210 = vmatprep.subr.mxu0 0.0
    %1211 = vmatpush1.msra.mxu0 0.0
    %1212 = vmatprep.subr.mxu0 0.0
    %1213 = vmatpush1.msra.mxu0 0.0
    %1214 = vmatprep.subr.mxu0 0.0
    %1215 = vmatpush1.msra.mxu0 0.0
    %1216 = vmatprep.subr.mxu0 0.0
    %1217 = vmatpush1.msra.mxu0 0.0
    %1218 = vmatprep.subr.mxu0 0.0
    %1219 = vmatpush1.msra.mxu0 0.0
    %1220 = vmatprep.subr.mxu0 0.0
    %1221 = vmatpush1.msra.mxu0 0.0
    %1222 = vmatprep.subr.mxu0 0.0
    %1223 = vmatpush1.msra.mxu0 0.0
    %1224 = vmatprep.subr.mxu0 0.0
    %1225 = vmatpush1.msra.mxu0 0.0
    %1226 = vmatprep.subr.mxu0 0.0
    %1227 = vmatpush1.msra.mxu0 0.0
    %1228 = vmatprep.subr.mxu0 0.0
    %1229 = vmatpush1.msra.mxu0 0.0
    %1230 = vmatprep.subr.mxu0 0.0
    %1231 = vmatpush1.msra.mxu0 0.0
    %1232 = vmatprep.subr.mxu0 0.0
    %1233 = vmatpush1.msra.mxu0 0.0
    %1234 = vmatprep.subr.mxu0 0.0
    %1235 = vmatpush1.msra.mxu0 0.0
    %1236 = vmatprep.subr.mxu0 0.0
    %1237 = vmatpush1.msra.mxu0 0.0
    %1238 = vmatprep.subr.mxu0 0.0
    %1239 = vmatpush1.msra.mxu0 0.0
    %1240 = vmatprep.mubr.f32.mxu0 0.0
    %1241 = vmatmul.mubr.f32.gmra.mrb[0].mxu0 %v1156
    %v1242 = vpop.f32.mrb[0].mxu0
    %v1243 = vadd.f32 %v1152, %v1242
    %v1244 = vpop.f32.mrb[0].mxu0
    %1245 = vmatprep.mubr.f32.mxu0 0.0
    %1246 = vmatmul.mubr.f32.gmra.mrb[0].mxu0 %v1159
    %v1247 = vpop.f32.mrb[0].mxu0
    %v1248 = vadd.f32 %v1152, %v1247
    %v1249 = vpop.f32.mrb[0].mxu0
    %1250 = vmatprep.mubr.f32.mxu0 0.0
    %1251 = vmatmul.mubr.f32.gmra.mrb[0].mxu0 %v1162
    %v1252 = vpop.f32.mrb[0].mxu0
    %v1253 = vadd.f32 %v1152, %v1252
    %v1254 = vpop.f32.mrb[0].mxu0
    %1255 = vmatprep.mubr.f32.mxu0 0.0
    %1256 = vmatmul.mubr.f32.gmra.mrb[0].mxu0 %v1165
    %v1257 = vpop.f32.mrb[0].mxu0
    %v1258 = vadd.f32 %v1152, %v1257
    %v1259 = vpop.f32.mrb[0].mxu0
    %1260 = vmatprep.mubr.f32.mxu0 0.0
    %1261 = vmatmul.mubr.f32.gmra.mrb[0].mxu0 %v1168
    %v1262 = vpop.f32.mrb[0].mxu0
    %v1263 = vadd.f32 %v1152, %v1262
    %v1264 = vpop.f32.mrb[0].mxu0
    %1265 = vmatprep.mubr.f32.mxu0 0.0
    %1266 = vmatmul.mubr.f32.gmra.mrb[0].mxu0 %v1171
    %v1267 = vpop.f32.mrb[0].mxu0
    %v1268 = vadd.f32 %v1152, %v1267
    %v1269 = vpop.f32.mrb[0].mxu0
    %1270 = vmatprep.mubr.f32.mxu0 0.0
    %1271 = vmatmul.mubr.f32.gmra.mrb[0].mxu0 %v1174
    %v1272 = vpop.f32.mrb[0].mxu0
    %v1273 = vadd.f32 %v1152, %v1272
    %v1274 = vpop.f32.mrb[0].mxu0
    %1275 = vdwg.mxu0
    %1277 = vset.pattern.permute.xlu0 0
    %1278 = vperm.xlu0 %1277, %v892
    %v1279 = vpop.permute.xlu0 %1278
    %1282 = vset.pattern.permute.xlu0 0
    %1283 = vperm.xlu0 %1282, %v893
    %v1284 = vpop.permute.xlu0 %1283
    %1287 = vset.pattern.permute.xlu0 0
    %1288 = vperm.xlu0 %1287, %v894
    %v1289 = vpop.permute.xlu0 %1288
    %1292 = vset.pattern.permute.xlu0 0
    %1293 = vperm.xlu0 %1292, %v895
    %v1294 = vpop.permute.xlu0 %1293
    %1297 = vset.pattern.permute.xlu0 0
    %1298 = vperm.xlu0 %1297, %v896
    %v1299 = vpop.permute.xlu0 %1298
    %1302 = vset.pattern.permute.xlu0 0
    %1303 = vperm.xlu0 %1302, %v897
    %v1304 = vpop.permute.xlu0 %1303
    %1307 = vset.pattern.permute.xlu0 0
    %1308 = vperm.xlu0 %1307, %v898
    %v1309 = vpop.permute.xlu0 %1308
    %v1311 = vmul.f32 %v1243, %v1279
    %v1312 = vmul.f32 %v1248, %v1284
    %v1313 = vmul.f32 %v1253, %v1289
    %v1314 = vmul.f32 %v1258, %v1294
    %v1315 = vmul.f32 %v1263, %v1299
    %v1316 = vmul.f32 %v1268, %v1304
    %v1317 = vmul.f32 %v1273, %v1309
    %v1318 = vld [vmem:[%s7] sm:$0xff]
    %v1319 = vld [vmem:[%s7 + $0x8] sm:$0xff]
    %v1320 = vld [vmem:[%s7 + $0x10] sm:$0xff]
    %v1321 = vld [vmem:[%s7 + $0x18] sm:$0xff]
    %v1322 = vld [vmem:[%s8] sm:$0x1]
    %v1324 = vlaneseq
    %v1325 = vshrl.u32 %v1324, 7
    %v1326 = vsub.s32 0, %v1325
    %v1327 = vrot.slane %v1322, %v1326
    %v1330 = vsel %vm1154, %v899, 0
    %1332 = vmatprep.subr.mxu0 0.0
    %1333 = vmatpush1.msra.mxu0 %v1318
    %1334 = vmatprep.subr.mxu0 0.0
    %1335 = vmatpush1.msra.mxu0 %v1319
    %1336 = vmatprep.subr.mxu0 0.0
    %1337 = vmatpush1.msra.mxu0 %v1320
    %1338 = vmatprep.subr.mxu0 0.0
    %1339 = vmatpush1.msra.mxu0 %v1321
    %1340 = vmatprep.subr.mxu0 0.0
    %1341 = vmatpush1.msra.mxu0 0.0
    %1342 = vmatprep.subr.mxu0 0.0
    %1343 = vmatpush1.msra.mxu0 0.0
    %1344 = vmatprep.subr.mxu0 0.0
    %1345 = vmatpush1.msra.mxu0 0.0
    %1346 = vmatprep.subr.mxu0 0.0
    %1347 = vmatpush1.msra.mxu0 0.0
    %1348 = vmatprep.subr.mxu0 0.0
    %1349 = vmatpush1.msra.mxu0 0.0
    %1350 = vmatprep.subr.mxu0 0.0
    %1351 = vmatpush1.msra.mxu0 0.0
    %1352 = vmatprep.subr.mxu0 0.0
    %1353 = vmatpush1.msra.mxu0 0.0
    %1354 = vmatprep.subr.mxu0 0.0
    %1355 = vmatpush1.msra.mxu0 0.0
    %1356 = vmatprep.subr.mxu0 0.0
    %1357 = vmatpush1.msra.mxu0 0.0
    %1358 = vmatprep.subr.mxu0 0.0
    %1359 = vmatpush1.msra.mxu0 0.0
    %1360 = vmatprep.subr.mxu0 0.0
    %1361 = vmatpush1.msra.mxu0 0.0
    %1362 = vmatprep.subr.mxu0 0.0
    %1363 = vmatpush1.msra.mxu0 0.0
    %1364 = vmatprep.subr.mxu0 0.0
    %1365 = vmatpush1.msra.mxu0 0.0
    %1366 = vmatprep.subr.mxu0 0.0
    %1367 = vmatpush1.msra.mxu0 0.0
    %1368 = vmatprep.subr.mxu0 0.0
    %1369 = vmatpush1.msra.mxu0 0.0
    %1370 = vmatprep.subr.mxu0 0.0
    %1371 = vmatpush1.msra.mxu0 0.0
    %1372 = vmatprep.subr.mxu0 0.0
    %1373 = vmatpush1.msra.mxu0 0.0
    %1374 = vmatprep.subr.mxu0 0.0
    %1375 = vmatpush1.msra.mxu0 0.0
    %1376 = vmatprep.subr.mxu0 0.0
    %1377 = vmatpush1.msra.mxu0 0.0
    %1378 = vmatprep.subr.mxu0 0.0
    %1379 = vmatpush1.msra.mxu0 0.0
    %1380 = vmatprep.subr.mxu0 0.0
    %1381 = vmatpush1.msra.mxu0 0.0
    %1382 = vmatprep.subr.mxu0 0.0
    %1383 = vmatpush1.msra.mxu0 0.0
    %1384 = vmatprep.subr.mxu0 0.0
    %1385 = vmatpush1.msra.mxu0 0.0
    %1386 = vmatprep.subr.mxu0 0.0
    %1387 = vmatpush1.msra.mxu0 0.0
    %1388 = vmatprep.subr.mxu0 0.0
    %1389 = vmatpush1.msra.mxu0 0.0
    %1390 = vmatprep.subr.mxu0 0.0
    %1391 = vmatpush1.msra.mxu0 0.0
    %1392 = vmatprep.subr.mxu0 0.0
    %1393 = vmatpush1.msra.mxu0 0.0
    %1394 = vmatprep.subr.mxu0 0.0
    %1395 = vmatpush1.msra.mxu0 0.0
    %1396 = vmatprep.mubr.f32.mxu0 0.0
    %1397 = vmatmul.mubr.f32.gmra.mrb[0].mxu0 %v1330
    %v1398 = vpop.f32.mrb[0].mxu0
    %v1399 = vadd.f32 %v1327, %v1398
    %v1400 = vpop.f32.mrb[0].mxu0
    %1401 = vdwg.mxu0
    %v1402 = vrot.slane %v1399, 1
    %v1403 = vmul.f32 %v1402, %v1311
    %v1404 = vadd.f32 %v1403, 0.0
    %v1405 = vrot.slane %v1399, 2
    %v1406 = vmul.f32 %v1405, %v1312
    %v1407 = vadd.f32 %v1404, %v1406
    %v1408 = vrot.slane %v1399, 3
    %v1409 = vmul.f32 %v1408, %v1313
    %v1410 = vadd.f32 %v1407, %v1409
    %v1411 = vrot.slane %v1399, 4
    %v1412 = vmul.f32 %v1411, %v1314
    %v1413 = vadd.f32 %v1410, %v1412
    %v1414 = vrot.slane %v1399, 5
    %v1415 = vmul.f32 %v1414, %v1315
    %v1416 = vadd.f32 %v1413, %v1415
    %v1417 = vrot.slane %v1399, 6
    %v1418 = vmul.f32 %v1417, %v1316
    %v1419 = vadd.f32 %v1416, %v1418
    %v1420 = vrot.slane %v1399, 7
    %v1421 = vmul.f32 %v1420, %v1317
    %v1422 = vadd.f32 %v1419, %v1421
    %v1423 = vld [vmem:[%s9] sm:$0xff]
    %v1424 = vld [vmem:[%s9 + $0x8] sm:$0xff]
    %v1425 = vld [vmem:[%s9 + $0x10] sm:$0xff]
    %v1426 = vld [vmem:[%s9 + $0x18] sm:$0xff]
    %v1427 = vld [vmem:[%s10] sm:$0x1]
    %v1429 = vlaneseq
    %v1430 = vshrl.u32 %v1429, 7
    %v1431 = vsub.s32 0, %v1430
    %v1432 = vrot.slane %v1427, %v1431
    %v1435 = vsel %vm1154, %v1422, 0
    %1437 = vmatprep.subr.mxu0 0.0
    %1438 = vmatpush1.msra.mxu0 %v1423
    %1439 = vmatprep.subr.mxu0 0.0
    %1440 = vmatpush1.msra.mxu0 %v1424
    %1441 = vmatprep.subr.mxu0 0.0
    %1442 = vmatpush1.msra.mxu0 %v1425
    %1443 = vmatprep.subr.mxu0 0.0
    %1444 = vmatpush1.msra.mxu0 %v1426
    %1445 = vmatprep.subr.mxu0 0.0
    %1446 = vmatpush1.msra.mxu0 0.0
    %1447 = vmatprep.subr.mxu0 0.0
    %1448 = vmatpush1.msra.mxu0 0.0
    %1449 = vmatprep.subr.mxu0 0.0
    %1450 = vmatpush1.msra.mxu0 0.0
    %1451 = vmatprep.subr.mxu0 0.0
    %1452 = vmatpush1.msra.mxu0 0.0
    %1453 = vmatprep.subr.mxu0 0.0
    %1454 = vmatpush1.msra.mxu0 0.0
    %1455 = vmatprep.subr.mxu0 0.0
    %1456 = vmatpush1.msra.mxu0 0.0
    %1457 = vmatprep.subr.mxu0 0.0
    %1458 = vmatpush1.msra.mxu0 0.0
    %1459 = vmatprep.subr.mxu0 0.0
    %1460 = vmatpush1.msra.mxu0 0.0
    %1461 = vmatprep.subr.mxu0 0.0
    %1462 = vmatpush1.msra.mxu0 0.0
    %1463 = vmatprep.subr.mxu0 0.0
    %1464 = vmatpush1.msra.mxu0 0.0
    %1465 = vmatprep.subr.mxu0 0.0
    %1466 = vmatpush1.msra.mxu0 0.0
    %1467 = vmatprep.subr.mxu0 0.0
    %1468 = vmatpush1.msra.mxu0 0.0
    %1469 = vmatprep.subr.mxu0 0.0
    %1470 = vmatpush1.msra.mxu0 0.0
    %1471 = vmatprep.subr.mxu0 0.0
    %1472 = vmatpush1.msra.mxu0 0.0
    %1473 = vmatprep.subr.mxu0 0.0
    %1474 = vmatpush1.msra.mxu0 0.0
    %1475 = vmatprep.subr.mxu0 0.0
    %1476 = vmatpush1.msra.mxu0 0.0
    %1477 = vmatprep.subr.mxu0 0.0
    %1478 = vmatpush1.msra.mxu0 0.0
    %1479 = vmatprep.subr.mxu0 0.0
    %1480 = vmatpush1.msra.mxu0 0.0
    %1481 = vmatprep.subr.mxu0 0.0
    %1482 = vmatpush1.msra.mxu0 0.0
    %1483 = vmatprep.subr.mxu0 0.0
    %1484 = vmatpush1.msra.mxu0 0.0
    %1485 = vmatprep.subr.mxu0 0.0
    %1486 = vmatpush1.msra.mxu0 0.0
    %1487 = vmatprep.subr.mxu0 0.0
    %1488 = vmatpush1.msra.mxu0 0.0
    %1489 = vmatprep.subr.mxu0 0.0
    %1490 = vmatpush1.msra.mxu0 0.0
    %1491 = vmatprep.subr.mxu0 0.0
    %1492 = vmatpush1.msra.mxu0 0.0
    %1493 = vmatprep.subr.mxu0 0.0
    %1494 = vmatpush1.msra.mxu0 0.0
    %1495 = vmatprep.subr.mxu0 0.0
    %1496 = vmatpush1.msra.mxu0 0.0
    %1497 = vmatprep.subr.mxu0 0.0
    %1498 = vmatpush1.msra.mxu0 0.0
    %1499 = vmatprep.subr.mxu0 0.0
    %1500 = vmatpush1.msra.mxu0 0.0
    %1501 = vmatprep.mubr.f32.mxu0 0.0
    %1502 = vmatmul.mubr.f32.gmra.mrb[0].mxu0 %v1435
    %v1503 = vpop.f32.mrb[0].mxu0
    %v1504 = vadd.f32 %v1432, %v1503
    %v1505 = vpop.f32.mrb[0].mxu0
    %1506 = vdwg.mxu0
    %v1507 = vmax.f32 %v1504, 0.0
    %v1508 = vand.u32 2147483647, %v1504
    %v1509 = vsub.f32 0.0, %v1508
    %v1510 = vmul.f32 %v1509, 1.442695
    %v1511 = vpow.pop %v1510
    %v1512 = vadd.f32 %v1511, 1.0
    %v1513 = vlog2.pop %v1512
    %v1514 = vmul.f32 %v1513, 0.6931472
    %v1515 = vmul.f32 -0.5, %v1511
    %v1516 = vadd.f32 %v1515, 1.0
    %v1517 = vmul.f32 %v1516, %v1511
    %v1518 = vand.u32 2147483647, %v1511
    %vm1519 = vcmp.lt.f32.partialorder %v1518, 0.0004427343
    %v1520 = vsel %vm1519, %v1517, %v1514
    %v1521 = vadd.f32 %v1507, %v1520
    %v1522 = vsub.f32 %v1521, 0.6931472
    %v1523 = vld [vmem:[%s11] sm:$0xff]
    %v1524 = vld [vmem:[%s11 + $0x8] sm:$0xff]
    %v1525 = vld [vmem:[%s11 + $0x10] sm:$0xff]
    %v1526 = vld [vmem:[%s11 + $0x18] sm:$0xff]
    %v1527 = vld [vmem:[%s12] sm:$0x1]
    %v1529 = vlaneseq
    %v1530 = vshrl.u32 %v1529, 7
    %v1531 = vsub.s32 0, %v1530
    %v1532 = vrot.slane %v1527, %v1531
    %v1535 = vsel %vm1154, %v1522, 0
    %1537 = vmatprep.subr.mxu0 0.0
    %1538 = vmatpush1.msra.mxu0 %v1523
    %1539 = vmatprep.subr.mxu0 0.0
    %1540 = vmatpush1.msra.mxu0 %v1524
    %1541 = vmatprep.subr.mxu0 0.0
    %1542 = vmatpush1.msra.mxu0 %v1525
    %1543 = vmatprep.subr.mxu0 0.0
    %1544 = vmatpush1.msra.mxu0 %v1526
    %1545 = vmatprep.subr.mxu0 0.0
    %1546 = vmatpush1.msra.mxu0 0.0
    %1547 = vmatprep.subr.mxu0 0.0
    %1548 = vmatpush1.msra.mxu0 0.0
    %1549 = vmatprep.subr.mxu0 0.0
    %1550 = vmatpush1.msra.mxu0 0.0
    %1551 = vmatprep.subr.mxu0 0.0
    %1552 = vmatpush1.msra.mxu0 0.0
    %1553 = vmatprep.subr.mxu0 0.0
    %1554 = vmatpush1.msra.mxu0 0.0
    %1555 = vmatprep.subr.mxu0 0.0
    %1556 = vmatpush1.msra.mxu0 0.0
    %1557 = vmatprep.subr.mxu0 0.0
    %1558 = vmatpush1.msra.mxu0 0.0
    %1559 = vmatprep.subr.mxu0 0.0
    %1560 = vmatpush1.msra.mxu0 0.0
    %1561 = vmatprep.subr.mxu0 0.0
    %1562 = vmatpush1.msra.mxu0 0.0
    %1563 = vmatprep.subr.mxu0 0.0
    %1564 = vmatpush1.msra.mxu0 0.0
    %1565 = vmatprep.subr.mxu0 0.0
    %1566 = vmatpush1.msra.mxu0 0.0
    %1567 = vmatprep.subr.mxu0 0.0
    %1568 = vmatpush1.msra.mxu0 0.0
    %1569 = vmatprep.subr.mxu0 0.0
    %1570 = vmatpush1.msra.mxu0 0.0
    %1571 = vmatprep.subr.mxu0 0.0
    %1572 = vmatpush1.msra.mxu0 0.0
    %1573 = vmatprep.subr.mxu0 0.0
    %1574 = vmatpush1.msra.mxu0 0.0
    %1575 = vmatprep.subr.mxu0 0.0
    %1576 = vmatpush1.msra.mxu0 0.0
    %1577 = vmatprep.subr.mxu0 0.0
    %1578 = vmatpush1.msra.mxu0 0.0
    %1579 = vmatprep.subr.mxu0 0.0
    %1580 = vmatpush1.msra.mxu0 0.0
    %1581 = vmatprep.subr.mxu0 0.0
    %1582 = vmatpush1.msra.mxu0 0.0
    %1583 = vmatprep.subr.mxu0 0.0
    %1584 = vmatpush1.msra.mxu0 0.0
    %1585 = vmatprep.subr.mxu0 0.0
    %1586 = vmatpush1.msra.mxu0 0.0
    %1587 = vmatprep.subr.mxu0 0.0
    %1588 = vmatpush1.msra.mxu0 0.0
    %1589 = vmatprep.subr.mxu0 0.0
    %1590 = vmatpush1.msra.mxu0 0.0
    %1591 = vmatprep.subr.mxu0 0.0
    %1592 = vmatpush1.msra.mxu0 0.0
    %1593 = vmatprep.subr.mxu0 0.0
    %1594 = vmatpush1.msra.mxu0 0.0
    %1595 = vmatprep.subr.mxu0 0.0
    %1596 = vmatpush1.msra.mxu0 0.0
    %1597 = vmatprep.subr.mxu0 0.0
    %1598 = vmatpush1.msra.mxu0 0.0
    %1599 = vmatprep.subr.mxu0 0.0
    %1600 = vmatpush1.msra.mxu0 0.0
    %1601 = vmatprep.mubr.f32.mxu0 0.0
    %1602 = vmatmul.mubr.f32.gmra.mrb[0].mxu0 %v1535
    %v1603 = vpop.f32.mrb[0].mxu0
    %v1604 = vadd.f32 %v1532, %v1603
    %v1605 = vpop.f32.mrb[0].mxu0
    %1606 = vdwg.mxu0
    %v1607 = vadd.f32 %v899, %v1604
    %s1608 = scalar_lea.vmem %s3, 16
    %v1609 = vld [vmem:[%s1608] sm:$0xff]
    %v1610 = vld [vmem:[%s1608 + $0x8] sm:$0xff]
    %s1611 = scalar_lea.vmem %s4, 1
    %v1612 = vld [vmem:[%s1611] sm:$0x1]
    %v1614 = vlaneseq
    %v1615 = vshrl.u32 %v1614, 7
    %v1616 = vsub.s32 0, %v1615
    %v1617 = vrot.slane %v1612, %v1616
    %1619 = vmatprep.subr.mxu0 0.0
    %1620 = vmatpush1.msra.mxu0 %v1609
    %1621 = vmatprep.subr.mxu0 0.0
    %1622 = vmatpush1.msra.mxu0 %v1610
    %1623 = vmatprep.subr.mxu0 0.0
    %1624 = vmatpush1.msra.mxu0 0.0
    %1625 = vmatprep.subr.mxu0 0.0
    %1626 = vmatpush1.msra.mxu0 0.0
    %1627 = vmatprep.subr.mxu0 0.0
    %1628 = vmatpush1.msra.mxu0 0.0
    %1629 = vmatprep.subr.mxu0 0.0
    %1630 = vmatpush1.msra.mxu0 0.0
    %1631 = vmatprep.subr.mxu0 0.0
    %1632 = vmatpush1.msra.mxu0 0.0
    %1633 = vmatprep.subr.mxu0 0.0
    %1634 = vmatpush1.msra.mxu0 0.0
    %1635 = vmatprep.subr.mxu0 0.0
    %1636 = vmatpush1.msra.mxu0 0.0
    %1637 = vmatprep.subr.mxu0 0.0
    %1638 = vmatpush1.msra.mxu0 0.0
    %1639 = vmatprep.subr.mxu0 0.0
    %1640 = vmatpush1.msra.mxu0 0.0
    %1641 = vmatprep.subr.mxu0 0.0
    %1642 = vmatpush1.msra.mxu0 0.0
    %1643 = vmatprep.subr.mxu0 0.0
    %1644 = vmatpush1.msra.mxu0 0.0
    %1645 = vmatprep.subr.mxu0 0.0
    %1646 = vmatpush1.msra.mxu0 0.0
    %1647 = vmatprep.subr.mxu0 0.0
    %1648 = vmatpush1.msra.mxu0 0.0
    %1649 = vmatprep.subr.mxu0 0.0
    %1650 = vmatpush1.msra.mxu0 0.0
    %1651 = vmatprep.subr.mxu0 0.0
    %1652 = vmatpush1.msra.mxu0 0.0
    %1653 = vmatprep.subr.mxu0 0.0
    %1654 = vmatpush1.msra.mxu0 0.0
    %1655 = vmatprep.subr.mxu0 0.0
    %1656 = vmatpush1.msra.mxu0 0.0
    %1657 = vmatprep.subr.mxu0 0.0
    %1658 = vmatpush1.msra.mxu0 0.0
    %1659 = vmatprep.subr.mxu0 0.0
    %1660 = vmatpush1.msra.mxu0 0.0
    %1661 = vmatprep.subr.mxu0 0.0
    %1662 = vmatpush1.msra.mxu0 0.0
    %1663 = vmatprep.subr.mxu0 0.0
    %1664 = vmatpush1.msra.mxu0 0.0
    %1665 = vmatprep.subr.mxu0 0.0
    %1666 = vmatpush1.msra.mxu0 0.0
    %1667 = vmatprep.subr.mxu0 0.0
    %1668 = vmatpush1.msra.mxu0 0.0
    %1669 = vmatprep.subr.mxu0 0.0
    %1670 = vmatpush1.msra.mxu0 0.0
    %1671 = vmatprep.subr.mxu0 0.0
    %1672 = vmatpush1.msra.mxu0 0.0
    %1673 = vmatprep.subr.mxu0 0.0
    %1674 = vmatpush1.msra.mxu0 0.0
    %1675 = vmatprep.subr.mxu0 0.0
    %1676 = vmatpush1.msra.mxu0 0.0
    %1677 = vmatprep.subr.mxu0 0.0
    %1678 = vmatpush1.msra.mxu0 0.0
    %1679 = vmatprep.subr.mxu0 0.0
    %1680 = vmatpush1.msra.mxu0 0.0
    %1681 = vmatprep.subr.mxu0 0.0
    %1682 = vmatpush1.msra.mxu0 0.0
    %1683 = vmatprep.mubr.f32.mxu0 0.0
    %1684 = vmatmul.mubr.f32.gmra.mrb[0].mxu0 %v911
    %v1685 = vpop.f32.mrb[0].mxu0
    %v1686 = vadd.f32 %v1617, %v1685
    %v1687 = vpop.f32.mrb[0].mxu0
    %1688 = vmatprep.mubr.f32.mxu0 0.0
    %1689 = vmatmul.mubr.f32.gmra.mrb[0].mxu0 %v914
    %v1690 = vpop.f32.mrb[0].mxu0
    %v1691 = vadd.f32 %v1617, %v1690
    %v1692 = vpop.f32.mrb[0].mxu0
    %1693 = vmatprep.mubr.f32.mxu0 0.0
    %1694 = vmatmul.mubr.f32.gmra.mrb[0].mxu0 %v917
    %v1695 = vpop.f32.mrb[0].mxu0
    %v1696 = vadd.f32 %v1617, %v1695
    %v1697 = vpop.f32.mrb[0].mxu0
    %1698 = vmatprep.mubr.f32.mxu0 0.0
    %1699 = vmatmul.mubr.f32.gmra.mrb[0].mxu0 %v920
    %v1700 = vpop.f32.mrb[0].mxu0
    %v1701 = vadd.f32 %v1617, %v1700
    %v1702 = vpop.f32.mrb[0].mxu0
    %1703 = vmatprep.mubr.f32.mxu0 0.0
    %1704 = vmatmul.mubr.f32.gmra.mrb[0].mxu0 %v923
    %v1705 = vpop.f32.mrb[0].mxu0
    %v1706 = vadd.f32 %v1617, %v1705
    %v1707 = vpop.f32.mrb[0].mxu0
    %1708 = vmatprep.mubr.f32.mxu0 0.0
    %1709 = vmatmul.mubr.f32.gmra.mrb[0].mxu0 %v926
    %v1710 = vpop.f32.mrb[0].mxu0
    %v1711 = vadd.f32 %v1617, %v1710
    %v1712 = vpop.f32.mrb[0].mxu0
    %1713 = vmatprep.mubr.f32.mxu0 0.0
    %1714 = vmatmul.mubr.f32.gmra.mrb[0].mxu0 %v929
    %v1715 = vpop.f32.mrb[0].mxu0
    %v1716 = vadd.f32 %v1617, %v1715
    %v1717 = vpop.f32.mrb[0].mxu0
    %1718 = vdwg.mxu0
    %v1719 = vmax.f32 %v1686, 0.0
    %v1720 = vmax.f32 %v1691, 0.0
    %v1721 = vmax.f32 %v1696, 0.0
    %v1722 = vmax.f32 %v1701, 0.0
    %v1723 = vmax.f32 %v1706, 0.0
    %v1724 = vmax.f32 %v1711, 0.0
    %v1725 = vmax.f32 %v1716, 0.0
    %v1726 = vand.u32 2147483647, %v1686
    %v1727 = vand.u32 2147483647, %v1691
    %v1728 = vand.u32 2147483647, %v1696
    %v1729 = vand.u32 2147483647, %v1701
    %v1730 = vand.u32 2147483647, %v1706
    %v1731 = vand.u32 2147483647, %v1711
    %v1732 = vand.u32 2147483647, %v1716
    %v1733 = vsub.f32 0.0, %v1726
    %v1734 = vsub.f32 0.0, %v1727
    %v1735 = vsub.f32 0.0, %v1728
    %v1736 = vsub.f32 0.0, %v1729
    %v1737 = vsub.f32 0.0, %v1730
    %v1738 = vsub.f32 0.0, %v1731
    %v1739 = vsub.f32 0.0, %v1732
    %v1740 = vmul.f32 %v1733, 1.442695
    %v1741 = vpow.pop %v1740
    %v1742 = vmul.f32 %v1734, 1.442695
    %v1743 = vpow.pop %v1742
    %v1744 = vmul.f32 %v1735, 1.442695
    %v1745 = vpow.pop %v1744
    %v1746 = vmul.f32 %v1736, 1.442695
    %v1747 = vpow.pop %v1746
    %v1748 = vmul.f32 %v1737, 1.442695
    %v1749 = vpow.pop %v1748
    %v1750 = vmul.f32 %v1738, 1.442695
    %v1751 = vpow.pop %v1750
    %v1752 = vmul.f32 %v1739, 1.442695
    %v1753 = vpow.pop %v1752
    %v1754 = vadd.f32 %v1741, 1.0
    %v1755 = vlog2.pop %v1754
    %v1756 = vmul.f32 %v1755, 0.6931472
    %v1757 = vmul.f32 -0.5, %v1741
    %v1758 = vadd.f32 %v1757, 1.0
    %v1759 = vmul.f32 %v1758, %v1741
    %v1760 = vand.u32 2147483647, %v1741
    %vm1761 = vcmp.lt.f32.partialorder %v1760, 0.0004427343
    %v1762 = vsel %vm1761, %v1759, %v1756
    %v1763 = vadd.f32 %v1743, 1.0
    %v1764 = vlog2.pop %v1763
    %v1765 = vmul.f32 %v1764, 0.6931472
    %v1766 = vmul.f32 -0.5, %v1743
    %v1767 = vadd.f32 %v1766, 1.0
    %v1768 = vmul.f32 %v1767, %v1743
    %v1769 = vand.u32 2147483647, %v1743
    %vm1770 = vcmp.lt.f32.partialorder %v1769, 0.0004427343
    %v1771 = vsel %vm1770, %v1768, %v1765
    %v1772 = vadd.f32 %v1745, 1.0
    %v1773 = vlog2.pop %v1772
    %v1774 = vmul.f32 %v1773, 0.6931472
    %v1775 = vmul.f32 -0.5, %v1745
    %v1776 = vadd.f32 %v1775, 1.0
    %v1777 = vmul.f32 %v1776, %v1745
    %v1778 = vand.u32 2147483647, %v1745
    %vm1779 = vcmp.lt.f32.partialorder %v1778, 0.0004427343
    %v1780 = vsel %vm1779, %v1777, %v1774
    %v1781 = vadd.f32 %v1747, 1.0
    %v1782 = vlog2.pop %v1781
    %v1783 = vmul.f32 %v1782, 0.6931472
    %v1784 = vmul.f32 -0.5, %v1747
    %v1785 = vadd.f32 %v1784, 1.0
    %v1786 = vmul.f32 %v1785, %v1747
    %v1787 = vand.u32 2147483647, %v1747
    %vm1788 = vcmp.lt.f32.partialorder %v1787, 0.0004427343
    %v1789 = vsel %vm1788, %v1786, %v1783
    %v1790 = vadd.f32 %v1749, 1.0
    %v1791 = vlog2.pop %v1790
    %v1792 = vmul.f32 %v1791, 0.6931472
    %v1793 = vmul.f32 -0.5, %v1749
    %v1794 = vadd.f32 %v1793, 1.0
    %v1795 = vmul.f32 %v1794, %v1749
    %v1796 = vand.u32 2147483647, %v1749
    %vm1797 = vcmp.lt.f32.partialorder %v1796, 0.0004427343
    %v1798 = vsel %vm1797, %v1795, %v1792
    %v1799 = vadd.f32 %v1751, 1.0
    %v1800 = vlog2.pop %v1799
    %v1801 = vmul.f32 %v1800, 0.6931472
    %v1802 = vmul.f32 -0.5, %v1751
    %v1803 = vadd.f32 %v1802, 1.0
    %v1804 = vmul.f32 %v1803, %v1751
    %v1805 = vand.u32 2147483647, %v1751
    %vm1806 = vcmp.lt.f32.partialorder %v1805, 0.0004427343
    %v1807 = vsel %vm1806, %v1804, %v1801
    %v1808 = vadd.f32 %v1753, 1.0
    %v1809 = vlog2.pop %v1808
    %v1810 = vmul.f32 %v1809, 0.6931472
    %v1811 = vmul.f32 -0.5, %v1753
    %v1812 = vadd.f32 %v1811, 1.0
    %v1813 = vmul.f32 %v1812, %v1753
    %v1814 = vand.u32 2147483647, %v1753
    %vm1815 = vcmp.lt.f32.partialorder %v1814, 0.0004427343
    %v1816 = vsel %vm1815, %v1813, %v1810
    %v1817 = vadd.f32 %v1719, %v1762
    %v1818 = vadd.f32 %v1720, %v1771
    %v1819 = vadd.f32 %v1721, %v1780
    %v1820 = vadd.f32 %v1722, %v1789
    %v1821 = vadd.f32 %v1723, %v1798
    %v1822 = vadd.f32 %v1724, %v1807
    %v1823 = vadd.f32 %v1725, %v1816
    %v1824 = vsub.f32 %v1817, 0.6931472
    %v1825 = vsub.f32 %v1818, 0.6931472
    %v1826 = vsub.f32 %v1819, 0.6931472
    %v1827 = vsub.f32 %v1820, 0.6931472
    %v1828 = vsub.f32 %v1821, 0.6931472
    %v1829 = vsub.f32 %v1822, 0.6931472
    %v1830 = vsub.f32 %v1823, 0.6931472
    %s1831 = scalar_lea.vmem %s5, 32
    %v1832 = vld [vmem:[%s1831] sm:$0xff]
    %v1833 = vld [vmem:[%s1831 + $0x8] sm:$0xff]
    %v1834 = vld [vmem:[%s1831 + $0x10] sm:$0xff]
    %v1835 = vld [vmem:[%s1831 + $0x18] sm:$0xff]
    %s1836 = scalar_lea.vmem %s6, 1
    %v1837 = vld [vmem:[%s1836] sm:$0x1]
    %v1839 = vlaneseq
    %v1840 = vshrl.u32 %v1839, 7
    %v1841 = vsub.s32 0, %v1840
    %v1842 = vrot.slane %v1837, %v1841
    %v1845 = vsel %vm1154, %v1824, 0
    %v1848 = vsel %vm1154, %v1825, 0
    %v1851 = vsel %vm1154, %v1826, 0
    %v1854 = vsel %vm1154, %v1827, 0
    %v1857 = vsel %vm1154, %v1828, 0
    %v1860 = vsel %vm1154, %v1829, 0
    %v1863 = vsel %vm1154, %v1830, 0
    %1865 = vmatprep.subr.mxu0 0.0
    %1866 = vmatpush1.msra.mxu0 %v1832
    %1867 = vmatprep.subr.mxu0 0.0
    %1868 = vmatpush1.msra.mxu0 %v1833
    %1869 = vmatprep.subr.mxu0 0.0
    %1870 = vmatpush1.msra.mxu0 %v1834
    %1871 = vmatprep.subr.mxu0 0.0
    %1872 = vmatpush1.msra.mxu0 %v1835
    %1873 = vmatprep.subr.mxu0 0.0
    %1874 = vmatpush1.msra.mxu0 0.0
    %1875 = vmatprep.subr.mxu0 0.0
    %1876 = vmatpush1.msra.mxu0 0.0
    %1877 = vmatprep.subr.mxu0 0.0
    %1878 = vmatpush1.msra.mxu0 0.0
    %1879 = vmatprep.subr.mxu0 0.0
    %1880 = vmatpush1.msra.mxu0 0.0
    %1881 = vmatprep.subr.mxu0 0.0
    %1882 = vmatpush1.msra.mxu0 0.0
    %1883 = vmatprep.subr.mxu0 0.0
    %1884 = vmatpush1.msra.mxu0 0.0
    %1885 = vmatprep.subr.mxu0 0.0
    %1886 = vmatpush1.msra.mxu0 0.0
    %1887 = vmatprep.subr.mxu0 0.0
    %1888 = vmatpush1.msra.mxu0 0.0
    %1889 = vmatprep.subr.mxu0 0.0
    %1890 = vmatpush1.msra.mxu0 0.0
    %1891 = vmatprep.subr.mxu0 0.0
    %1892 = vmatpush1.msra.mxu0 0.0
    %1893 = vmatprep.subr.mxu0 0.0
    %1894 = vmatpush1.msra.mxu0 0.0
    %1895 = vmatprep.subr.mxu0 0.0
    %1896 = vmatpush1.msra.mxu0 0.0
    %1897 = vmatprep.subr.mxu0 0.0
    %1898 = vmatpush1.msra.mxu0 0.0
    %1899 = vmatprep.subr.mxu0 0.0
    %1900 = vmatpush1.msra.mxu0 0.0
    %1901 = vmatprep.subr.mxu0 0.0
    %1902 = vmatpush1.msra.mxu0 0.0
    %1903 = vmatprep.subr.mxu0 0.0
    %1904 = vmatpush1.msra.mxu0 0.0
    %1905 = vmatprep.subr.mxu0 0.0
    %1906 = vmatpush1.msra.mxu0 0.0
    %1907 = vmatprep.subr.mxu0 0.0
    %1908 = vmatpush1.msra.mxu0 0.0
    %1909 = vmatprep.subr.mxu0 0.0
    %1910 = vmatpush1.msra.mxu0 0.0
    %1911 = vmatprep.subr.mxu0 0.0
    %1912 = vmatpush1.msra.mxu0 0.0
    %1913 = vmatprep.subr.mxu0 0.0
    %1914 = vmatpush1.msra.mxu0 0.0
    %1915 = vmatprep.subr.mxu0 0.0
    %1916 = vmatpush1.msra.mxu0 0.0
    %1917 = vmatprep.subr.mxu0 0.0
    %1918 = vmatpush1.msra.mxu0 0.0
    %1919 = vmatprep.subr.mxu0 0.0
    %1920 = vmatpush1.msra.mxu0 0.0
    %1921 = vmatprep.subr.mxu0 0.0
    %1922 = vmatpush1.msra.mxu0 0.0
    %1923 = vmatprep.subr.mxu0 0.0
    %1924 = vmatpush1.msra.mxu0 0.0
    %1925 = vmatprep.subr.mxu0 0.0
    %1926 = vmatpush1.msra.mxu0 0.0
    %1927 = vmatprep.subr.mxu0 0.0
    %1928 = vmatpush1.msra.mxu0 0.0
    %1929 = vmatprep.mubr.f32.mxu0 0.0
    %1930 = vmatmul.mubr.f32.gmra.mrb[0].mxu0 %v1845
    %v1931 = vpop.f32.mrb[0].mxu0
    %v1932 = vadd.f32 %v1842, %v1931
    %v1933 = vpop.f32.mrb[0].mxu0
    %1934 = vmatprep.mubr.f32.mxu0 0.0
    %1935 = vmatmul.mubr.f32.gmra.mrb[0].mxu0 %v1848
    %v1936 = vpop.f32.mrb[0].mxu0
    %v1937 = vadd.f32 %v1842, %v1936
    %v1938 = vpop.f32.mrb[0].mxu0
    %1939 = vmatprep.mubr.f32.mxu0 0.0
    %1940 = vmatmul.mubr.f32.gmra.mrb[0].mxu0 %v1851
    %v1941 = vpop.f32.mrb[0].mxu0
    %v1942 = vadd.f32 %v1842, %v1941
    %v1943 = vpop.f32.mrb[0].mxu0
    %1944 = vmatprep.mubr.f32.mxu0 0.0
    %1945 = vmatmul.mubr.f32.gmra.mrb[0].mxu0 %v1854
    %v1946 = vpop.f32.mrb[0].mxu0
    %v1947 = vadd.f32 %v1842, %v1946
    %v1948 = vpop.f32.mrb[0].mxu0
    %1949 = vmatprep.mubr.f32.mxu0 0.0
    %1950 = vmatmul.mubr.f32.gmra.mrb[0].mxu0 %v1857
    %v1951 = vpop.f32.mrb[0].mxu0
    %v1952 = vadd.f32 %v1842, %v1951
    %v1953 = vpop.f32.mrb[0].mxu0
    %1954 = vmatprep.mubr.f32.mxu0 0.0
    %1955 = vmatmul.mubr.f32.gmra.mrb[0].mxu0 %v1860
    %v1956 = vpop.f32.mrb[0].mxu0
    %v1957 = vadd.f32 %v1842, %v1956
    %v1958 = vpop.f32.mrb[0].mxu0
    %1959 = vmatprep.mubr.f32.mxu0 0.0
    %1960 = vmatmul.mubr.f32.gmra.mrb[0].mxu0 %v1863
    %v1961 = vpop.f32.mrb[0].mxu0
    %v1962 = vadd.f32 %v1842, %v1961
    %v1963 = vpop.f32.mrb[0].mxu0
    %1964 = vdwg.mxu0
    %v1965 = vmul.f32 %v1932, %v1279
    %v1966 = vmul.f32 %v1937, %v1284
    %v1967 = vmul.f32 %v1942, %v1289
    %v1968 = vmul.f32 %v1947, %v1294
    %v1969 = vmul.f32 %v1952, %v1299
    %v1970 = vmul.f32 %v1957, %v1304
    %v1971 = vmul.f32 %v1962, %v1309
    %s1972 = scalar_lea.vmem %s7, 32
    %v1973 = vld [vmem:[%s1972] sm:$0xff]
    %v1974 = vld [vmem:[%s1972 + $0x8] sm:$0xff]
    %v1975 = vld [vmem:[%s1972 + $0x10] sm:$0xff]
    %v1976 = vld [vmem:[%s1972 + $0x18] sm:$0xff]
    %s1977 = scalar_lea.vmem %s8, 1
    %v1978 = vld [vmem:[%s1977] sm:$0x1]
    %v1980 = vlaneseq
    %v1981 = vshrl.u32 %v1980, 7
    %v1982 = vsub.s32 0, %v1981
    %v1983 = vrot.slane %v1978, %v1982
    %v1986 = vsel %vm1154, %v1607, 0
    %1988 = vmatprep.subr.mxu0 0.0
    %1989 = vmatpush1.msra.mxu0 %v1973
    %1990 = vmatprep.subr.mxu0 0.0
    %1991 = vmatpush1.msra.mxu0 %v1974
    %1992 = vmatprep.subr.mxu0 0.0
    %1993 = vmatpush1.msra.mxu0 %v1975
    %1994 = vmatprep.subr.mxu0 0.0
    %1995 = vmatpush1.msra.mxu0 %v1976
    %1996 = vmatprep.subr.mxu0 0.0
    %1997 = vmatpush1.msra.mxu0 0.0
    %1998 = vmatprep.subr.mxu0 0.0
    %1999 = vmatpush1.msra.mxu0 0.0
    %2000 = vmatprep.subr.mxu0 0.0
    %2001 = vmatpush1.msra.mxu0 0.0
    %2002 = vmatprep.subr.mxu0 0.0
    %2003 = vmatpush1.msra.mxu0 0.0
    %2004 = vmatprep.subr.mxu0 0.0
    %2005 = vmatpush1.msra.mxu0 0.0
    %2006 = vmatprep.subr.mxu0 0.0
    %2007 = vmatpush1.msra.mxu0 0.0
    %2008 = vmatprep.subr.mxu0 0.0
    %2009 = vmatpush1.msra.mxu0 0.0
    %2010 = vmatprep.subr.mxu0 0.0
    %2011 = vmatpush1.msra.mxu0 0.0
    %2012 = vmatprep.subr.mxu0 0.0
    %2013 = vmatpush1.msra.mxu0 0.0
    %2014 = vmatprep.subr.mxu0 0.0
    %2015 = vmatpush1.msra.mxu0 0.0
    %2016 = vmatprep.subr.mxu0 0.0
    %2017 = vmatpush1.msra.mxu0 0.0
    %2018 = vmatprep.subr.mxu0 0.0
    %2019 = vmatpush1.msra.mxu0 0.0
    %2020 = vmatprep.subr.mxu0 0.0
    %2021 = vmatpush1.msra.mxu0 0.0
    %2022 = vmatprep.subr.mxu0 0.0
    %2023 = vmatpush1.msra.mxu0 0.0
    %2024 = vmatprep.subr.mxu0 0.0
    %2025 = vmatpush1.msra.mxu0 0.0
    %2026 = vmatprep.subr.mxu0 0.0
    %2027 = vmatpush1.msra.mxu0 0.0
    %2028 = vmatprep.subr.mxu0 0.0
    %2029 = vmatpush1.msra.mxu0 0.0
    %2030 = vmatprep.subr.mxu0 0.0
    %2031 = vmatpush1.msra.mxu0 0.0
    %2032 = vmatprep.subr.mxu0 0.0
    %2033 = vmatpush1.msra.mxu0 0.0
    %2034 = vmatprep.subr.mxu0 0.0
    %2035 = vmatpush1.msra.mxu0 0.0
    %2036 = vmatprep.subr.mxu0 0.0
    %2037 = vmatpush1.msra.mxu0 0.0
    %2038 = vmatprep.subr.mxu0 0.0
    %2039 = vmatpush1.msra.mxu0 0.0
    %2040 = vmatprep.subr.mxu0 0.0
    %2041 = vmatpush1.msra.mxu0 0.0
    %2042 = vmatprep.subr.mxu0 0.0
    %2043 = vmatpush1.msra.mxu0 0.0
    %2044 = vmatprep.subr.mxu0 0.0
    %2045 = vmatpush1.msra.mxu0 0.0
    %2046 = vmatprep.subr.mxu0 0.0
    %2047 = vmatpush1.msra.mxu0 0.0
    %2048 = vmatprep.subr.mxu0 0.0
    %2049 = vmatpush1.msra.mxu0 0.0
    %2050 = vmatprep.subr.mxu0 0.0
    %2051 = vmatpush1.msra.mxu0 0.0
    %2052 = vmatprep.mubr.f32.mxu0 0.0
    %2053 = vmatmul.mubr.f32.gmra.mrb[0].mxu0 %v1986
    %v2054 = vpop.f32.mrb[0].mxu0
    %v2055 = vadd.f32 %v1983, %v2054
    %v2056 = vpop.f32.mrb[0].mxu0
    %2057 = vdwg.mxu0
    %v2058 = vrot.slane %v2055, 1
    %v2059 = vmul.f32 %v2058, %v1965
    %v2060 = vadd.f32 %v2059, 0.0
    %v2061 = vrot.slane %v2055, 2
    %v2062 = vmul.f32 %v2061, %v1966
    %v2063 = vadd.f32 %v2060, %v2062
    %v2064 = vrot.slane %v2055, 3
    %v2065 = vmul.f32 %v2064, %v1967
    %v2066 = vadd.f32 %v2063, %v2065
    %v2067 = vrot.slane %v2055, 4
    %v2068 = vmul.f32 %v2067, %v1968
    %v2069 = vadd.f32 %v2066, %v2068
    %v2070 = vrot.slane %v2055, 5
    %v2071 = vmul.f32 %v2070, %v1969
    %v2072 = vadd.f32 %v2069, %v2071
    %v2073 = vrot.slane %v2055, 6
    %v2074 = vmul.f32 %v2073, %v1970
    %v2075 = vadd.f32 %v2072, %v2074
    %v2076 = vrot.slane %v2055, 7
    %v2077 = vmul.f32 %v2076, %v1971
    %v2078 = vadd.f32 %v2075, %v2077
    %s2079 = scalar_lea.vmem %s9, 32
    %v2080 = vld [vmem:[%s2079] sm:$0xff]
    %v2081 = vld [vmem:[%s2079 + $0x8] sm:$0xff]
    %v2082 = vld [vmem:[%s2079 + $0x10] sm:$0xff]
    %v2083 = vld [vmem:[%s2079 + $0x18] sm:$0xff]
    %s2084 = scalar_lea.vmem %s10, 1
    %v2085 = vld [vmem:[%s2084] sm:$0x1]
    %v2087 = vlaneseq
    %v2088 = vshrl.u32 %v2087, 7
    %v2089 = vsub.s32 0, %v2088
    %v2090 = vrot.slane %v2085, %v2089
    %v2093 = vsel %vm1154, %v2078, 0
    %2095 = vmatprep.subr.mxu0 0.0
    %2096 = vmatpush1.msra.mxu0 %v2080
    %2097 = vmatprep.subr.mxu0 0.0
    %2098 = vmatpush1.msra.mxu0 %v2081
    %2099 = vmatprep.subr.mxu0 0.0
    %2100 = vmatpush1.msra.mxu0 %v2082
    %2101 = vmatprep.subr.mxu0 0.0
    %2102 = vmatpush1.msra.mxu0 %v2083
    %2103 = vmatprep.subr.mxu0 0.0
    %2104 = vmatpush1.msra.mxu0 0.0
    %2105 = vmatprep.subr.mxu0 0.0
    %2106 = vmatpush1.msra.mxu0 0.0
    %2107 = vmatprep.subr.mxu0 0.0
    %2108 = vmatpush1.msra.mxu0 0.0
    %2109 = vmatprep.subr.mxu0 0.0
    %2110 = vmatpush1.msra.mxu0 0.0
    %2111 = vmatprep.subr.mxu0 0.0
    %2112 = vmatpush1.msra.mxu0 0.0
    %2113 = vmatprep.subr.mxu0 0.0
    %2114 = vmatpush1.msra.mxu0 0.0
    %2115 = vmatprep.subr.mxu0 0.0
    %2116 = vmatpush1.msra.mxu0 0.0
    %2117 = vmatprep.subr.mxu0 0.0
    %2118 = vmatpush1.msra.mxu0 0.0
    %2119 = vmatprep.subr.mxu0 0.0
    %2120 = vmatpush1.msra.mxu0 0.0
    %2121 = vmatprep.subr.mxu0 0.0
    %2122 = vmatpush1.msra.mxu0 0.0
    %2123 = vmatprep.subr.mxu0 0.0
    %2124 = vmatpush1.msra.mxu0 0.0
    %2125 = vmatprep.subr.mxu0 0.0
    %2126 = vmatpush1.msra.mxu0 0.0
    %2127 = vmatprep.subr.mxu0 0.0
    %2128 = vmatpush1.msra.mxu0 0.0
    %2129 = vmatprep.subr.mxu0 0.0
    %2130 = vmatpush1.msra.mxu0 0.0
    %2131 = vmatprep.subr.mxu0 0.0
    %2132 = vmatpush1.msra.mxu0 0.0
    %2133 = vmatprep.subr.mxu0 0.0
    %2134 = vmatpush1.msra.mxu0 0.0
    %2135 = vmatprep.subr.mxu0 0.0
    %2136 = vmatpush1.msra.mxu0 0.0
    %2137 = vmatprep.subr.mxu0 0.0
    %2138 = vmatpush1.msra.mxu0 0.0
    %2139 = vmatprep.subr.mxu0 0.0
    %2140 = vmatpush1.msra.mxu0 0.0
    %2141 = vmatprep.subr.mxu0 0.0
    %2142 = vmatpush1.msra.mxu0 0.0
    %2143 = vmatprep.subr.mxu0 0.0
    %2144 = vmatpush1.msra.mxu0 0.0
    %2145 = vmatprep.subr.mxu0 0.0
    %2146 = vmatpush1.msra.mxu0 0.0
    %2147 = vmatprep.subr.mxu0 0.0
    %2148 = vmatpush1.msra.mxu0 0.0
    %2149 = vmatprep.subr.mxu0 0.0
    %2150 = vmatpush1.msra.mxu0 0.0
    %2151 = vmatprep.subr.mxu0 0.0
    %2152 = vmatpush1.msra.mxu0 0.0
    %2153 = vmatprep.subr.mxu0 0.0
    %2154 = vmatpush1.msra.mxu0 0.0
    %2155 = vmatprep.subr.mxu0 0.0
    %2156 = vmatpush1.msra.mxu0 0.0
    %2157 = vmatprep.subr.mxu0 0.0
    %2158 = vmatpush1.msra.mxu0 0.0
    %2159 = vmatprep.mubr.f32.mxu0 0.0
    %2160 = vmatmul.mubr.f32.gmra.mrb[0].mxu0 %v2093
    %v2161 = vpop.f32.mrb[0].mxu0
    %v2162 = vadd.f32 %v2090, %v2161
    %v2163 = vpop.f32.mrb[0].mxu0
    %2164 = vdwg.mxu0
    %v2165 = vmax.f32 %v2162, 0.0
    %v2166 = vand.u32 2147483647, %v2162
    %v2167 = vsub.f32 0.0, %v2166
    %v2168 = vmul.f32 %v2167, 1.442695
    %v2169 = vpow.pop %v2168
    %v2170 = vadd.f32 %v2169, 1.0
    %v2171 = vlog2.pop %v2170
    %v2172 = vmul.f32 %v2171, 0.6931472
    %v2173 = vmul.f32 -0.5, %v2169
    %v2174 = vadd.f32 %v2173, 1.0
    %v2175 = vmul.f32 %v2174, %v2169
    %v2176 = vand.u32 2147483647, %v2169
    %vm2177 = vcmp.lt.f32.partialorder %v2176, 0.0004427343
    %v2178 = vsel %vm2177, %v2175, %v2172
    %v2179 = vadd.f32 %v2165, %v2178
    %v2180 = vsub.f32 %v2179, 0.6931472
    %s2181 = scalar_lea.vmem %s11, 32
    %v2182 = vld [vmem:[%s2181] sm:$0xff]
    %v2183 = vld [vmem:[%s2181 + $0x8] sm:$0xff]
    %v2184 = vld [vmem:[%s2181 + $0x10] sm:$0xff]
    %v2185 = vld [vmem:[%s2181 + $0x18] sm:$0xff]
    %s2186 = scalar_lea.vmem %s12, 1
    %v2187 = vld [vmem:[%s2186] sm:$0x1]
    %v2189 = vlaneseq
    %v2190 = vshrl.u32 %v2189, 7
    %v2191 = vsub.s32 0, %v2190
    %v2192 = vrot.slane %v2187, %v2191
    %v2195 = vsel %vm1154, %v2180, 0
    %2197 = vmatprep.subr.mxu0 0.0
    %2198 = vmatpush1.msra.mxu0 %v2182
    %2199 = vmatprep.subr.mxu0 0.0
    %2200 = vmatpush1.msra.mxu0 %v2183
    %2201 = vmatprep.subr.mxu0 0.0
    %2202 = vmatpush1.msra.mxu0 %v2184
    %2203 = vmatprep.subr.mxu0 0.0
    %2204 = vmatpush1.msra.mxu0 %v2185
    %2205 = vmatprep.subr.mxu0 0.0
    %2206 = vmatpush1.msra.mxu0 0.0
    %2207 = vmatprep.subr.mxu0 0.0
    %2208 = vmatpush1.msra.mxu0 0.0
    %2209 = vmatprep.subr.mxu0 0.0
    %2210 = vmatpush1.msra.mxu0 0.0
    %2211 = vmatprep.subr.mxu0 0.0
    %2212 = vmatpush1.msra.mxu0 0.0
    %2213 = vmatprep.subr.mxu0 0.0
    %2214 = vmatpush1.msra.mxu0 0.0
    %2215 = vmatprep.subr.mxu0 0.0
    %2216 = vmatpush1.msra.mxu0 0.0
    %2217 = vmatprep.subr.mxu0 0.0
    %2218 = vmatpush1.msra.mxu0 0.0
    %2219 = vmatprep.subr.mxu0 0.0
    %2220 = vmatpush1.msra.mxu0 0.0
    %2221 = vmatprep.subr.mxu0 0.0
    %2222 = vmatpush1.msra.mxu0 0.0
    %2223 = vmatprep.subr.mxu0 0.0
    %2224 = vmatpush1.msra.mxu0 0.0
    %2225 = vmatprep.subr.mxu0 0.0
    %2226 = vmatpush1.msra.mxu0 0.0
    %2227 = vmatprep.subr.mxu0 0.0
    %2228 = vmatpush1.msra.mxu0 0.0
    %2229 = vmatprep.subr.mxu0 0.0
    %2230 = vmatpush1.msra.mxu0 0.0
    %2231 = vmatprep.subr.mxu0 0.0
    %2232 = vmatpush1.msra.mxu0 0.0
    %2233 = vmatprep.subr.mxu0 0.0
    %2234 = vmatpush1.msra.mxu0 0.0
    %2235 = vmatprep.subr.mxu0 0.0
    %2236 = vmatpush1.msra.mxu0 0.0
    %2237 = vmatprep.subr.mxu0 0.0
    %2238 = vmatpush1.msra.mxu0 0.0
    %2239 = vmatprep.subr.mxu0 0.0
    %2240 = vmatpush1.msra.mxu0 0.0
    %2241 = vmatprep.subr.mxu0 0.0
    %2242 = vmatpush1.msra.mxu0 0.0
    %2243 = vmatprep.subr.mxu0 0.0
    %2244 = vmatpush1.msra.mxu0 0.0
    %2245 = vmatprep.subr.mxu0 0.0
    %2246 = vmatpush1.msra.mxu0 0.0
    %2247 = vmatprep.subr.mxu0 0.0
    %2248 = vmatpush1.msra.mxu0 0.0
    %2249 = vmatprep.subr.mxu0 0.0
    %2250 = vmatpush1.msra.mxu0 0.0
    %2251 = vmatprep.subr.mxu0 0.0
    %2252 = vmatpush1.msra.mxu0 0.0
    %2253 = vmatprep.subr.mxu0 0.0
    %2254 = vmatpush1.msra.mxu0 0.0
    %2255 = vmatprep.subr.mxu0 0.0
    %2256 = vmatpush1.msra.mxu0 0.0
    %2257 = vmatprep.subr.mxu0 0.0
    %2258 = vmatpush1.msra.mxu0 0.0
    %2259 = vmatprep.subr.mxu0 0.0
    %2260 = vmatpush1.msra.mxu0 0.0
    %2261 = vmatprep.mubr.f32.mxu0 0.0
    %2262 = vmatmul.mubr.f32.gmra.mrb[0].mxu0 %v2195
    %v2263 = vpop.f32.mrb[0].mxu0
    %v2264 = vadd.f32 %v2192, %v2263
    %v2265 = vpop.f32.mrb[0].mxu0
    %2266 = vdwg.mxu0
    %v2267 = vadd.f32 %v1607, %v2264
    %v2268 = vld [vmem:[%s13] sm:$0xff]
    %v2269 = vld [vmem:[%s13 + $0x8] sm:$0xff]
    %v2270 = vld [vmem:[%s13 + $0x10] sm:$0xff]
    %v2271 = vld [vmem:[%s13 + $0x18] sm:$0xff]
    %v2272 = vld [vmem:[%s14] sm:$0x1]
    %v2274 = vlaneseq
    %v2275 = vshrl.u32 %v2274, 7
    %v2276 = vsub.s32 0, %v2275
    %v2277 = vrot.slane %v2272, %v2276
    %v2280 = vsel %vm1154, %v2267, 0
    %2282 = vmatprep.subr.mxu0 0.0
    %2283 = vmatpush1.msra.mxu0 %v2268
    %2284 = vmatprep.subr.mxu0 0.0
    %2285 = vmatpush1.msra.mxu0 %v2269
    %2286 = vmatprep.subr.mxu0 0.0
    %2287 = vmatpush1.msra.mxu0 %v2270
    %2288 = vmatprep.subr.mxu0 0.0
    %2289 = vmatpush1.msra.mxu0 %v2271
    %2290 = vmatprep.subr.mxu0 0.0
    %2291 = vmatpush1.msra.mxu0 0.0
    %2292 = vmatprep.subr.mxu0 0.0
    %2293 = vmatpush1.msra.mxu0 0.0
    %2294 = vmatprep.subr.mxu0 0.0
    %2295 = vmatpush1.msra.mxu0 0.0
    %2296 = vmatprep.subr.mxu0 0.0
    %2297 = vmatpush1.msra.mxu0 0.0
    %2298 = vmatprep.subr.mxu0 0.0
    %2299 = vmatpush1.msra.mxu0 0.0
    %2300 = vmatprep.subr.mxu0 0.0
    %2301 = vmatpush1.msra.mxu0 0.0
    %2302 = vmatprep.subr.mxu0 0.0
    %2303 = vmatpush1.msra.mxu0 0.0
    %2304 = vmatprep.subr.mxu0 0.0
    %2305 = vmatpush1.msra.mxu0 0.0
    %2306 = vmatprep.subr.mxu0 0.0
    %2307 = vmatpush1.msra.mxu0 0.0
    %2308 = vmatprep.subr.mxu0 0.0
    %2309 = vmatpush1.msra.mxu0 0.0
    %2310 = vmatprep.subr.mxu0 0.0
    %2311 = vmatpush1.msra.mxu0 0.0
    %2312 = vmatprep.subr.mxu0 0.0
    %2313 = vmatpush1.msra.mxu0 0.0
    %2314 = vmatprep.subr.mxu0 0.0
    %2315 = vmatpush1.msra.mxu0 0.0
    %2316 = vmatprep.subr.mxu0 0.0
    %2317 = vmatpush1.msra.mxu0 0.0
    %2318 = vmatprep.subr.mxu0 0.0
    %2319 = vmatpush1.msra.mxu0 0.0
    %2320 = vmatprep.subr.mxu0 0.0
    %2321 = vmatpush1.msra.mxu0 0.0
    %2322 = vmatprep.subr.mxu0 0.0
    %2323 = vmatpush1.msra.mxu0 0.0
    %2324 = vmatprep.subr.mxu0 0.0
    %2325 = vmatpush1.msra.mxu0 0.0
    %2326 = vmatprep.subr.mxu0 0.0
    %2327 = vmatpush1.msra.mxu0 0.0
    %2328 = vmatprep.subr.mxu0 0.0
    %2329 = vmatpush1.msra.mxu0 0.0
    %2330 = vmatprep.subr.mxu0 0.0
    %2331 = vmatpush1.msra.mxu0 0.0
    %2332 = vmatprep.subr.mxu0 0.0
    %2333 = vmatpush1.msra.mxu0 0.0
    %2334 = vmatprep.subr.mxu0 0.0
    %2335 = vmatpush1.msra.mxu0 0.0
    %2336 = vmatprep.subr.mxu0 0.0
    %2337 = vmatpush1.msra.mxu0 0.0
    %2338 = vmatprep.subr.mxu0 0.0
    %2339 = vmatpush1.msra.mxu0 0.0
    %2340 = vmatprep.subr.mxu0 0.0
    %2341 = vmatpush1.msra.mxu0 0.0
    %2342 = vmatprep.subr.mxu0 0.0
    %2343 = vmatpush1.msra.mxu0 0.0
    %2344 = vmatprep.subr.mxu0 0.0
    %2345 = vmatpush1.msra.mxu0 0.0
    %2346 = vmatprep.mubr.f32.mxu0 0.0
    %2347 = vmatmul.mubr.f32.gmra.mrb[0].mxu0 %v2280
    %v2348 = vpop.f32.mrb[0].mxu0
    %v2349 = vadd.f32 %v2277, %v2348
    %v2350 = vpop.f32.mrb[0].mxu0
    %2351 = vdwg.mxu0
    %v2352 = vmax.f32 %v2349, 0.0
    %v2353 = vand.u32 2147483647, %v2349
    %v2354 = vsub.f32 0.0, %v2353
    %v2355 = vmul.f32 %v2354, 1.442695
    %v2356 = vpow.pop %v2355
    %v2357 = vadd.f32 %v2356, 1.0
    %v2358 = vlog2.pop %v2357
    %v2359 = vmul.f32 %v2358, 0.6931472
    %v2360 = vmul.f32 -0.5, %v2356
    %v2361 = vadd.f32 %v2360, 1.0
    %v2362 = vmul.f32 %v2361, %v2356
    %v2363 = vand.u32 2147483647, %v2356
    %vm2364 = vcmp.lt.f32.partialorder %v2363, 0.0004427343
    %v2365 = vsel %vm2364, %v2362, %v2359
    %v2366 = vadd.f32 %v2352, %v2365
    %v2367 = vsub.f32 %v2366, 0.6931472
    %v2368 = vld [vmem:[%s15] sm:$0xff]
    %v2369 = vld [vmem:[%s15 + $0x8] sm:$0xff]
    %v2370 = vld [vmem:[#allocation2] sm:$0x1]
    %v2372 = vlaneseq
    %v2373 = vshrl.u32 %v2372, 7
    %v2374 = vsub.s32 0, %v2373
    %v2375 = vrot.slane %v2370, %v2374
    %v2378 = vsel %vm909, %v2367, 0
    %2380 = vmatprep.subr.mxu0 0.0
    %2381 = vmatpush1.msra.mxu0 %v2368
    %2382 = vmatprep.subr.mxu0 0.0
    %2383 = vmatpush1.msra.mxu0 %v2369
    %2384 = vmatprep.subr.mxu0 0.0
    %2385 = vmatpush1.msra.mxu0 0.0
    %2386 = vmatprep.subr.mxu0 0.0
    %2387 = vmatpush1.msra.mxu0 0.0
    %2388 = vmatprep.subr.mxu0 0.0
    %2389 = vmatpush1.msra.mxu0 0.0
    %2390 = vmatprep.subr.mxu0 0.0
    %2391 = vmatpush1.msra.mxu0 0.0
    %2392 = vmatprep.subr.mxu0 0.0
    %2393 = vmatpush1.msra.mxu0 0.0
    %2394 = vmatprep.subr.mxu0 0.0
    %2395 = vmatpush1.msra.mxu0 0.0
    %2396 = vmatprep.subr.mxu0 0.0
    %2397 = vmatpush1.msra.mxu0 0.0
    %2398 = vmatprep.subr.mxu0 0.0
    %2399 = vmatpush1.msra.mxu0 0.0
    %2400 = vmatprep.subr.mxu0 0.0
    %2401 = vmatpush1.msra.mxu0 0.0
    %2402 = vmatprep.subr.mxu0 0.0
    %2403 = vmatpush1.msra.mxu0 0.0
    %2404 = vmatprep.subr.mxu0 0.0
    %2405 = vmatpush1.msra.mxu0 0.0
    %2406 = vmatprep.subr.mxu0 0.0
    %2407 = vmatpush1.msra.mxu0 0.0
    %2408 = vmatprep.subr.mxu0 0.0
    %2409 = vmatpush1.msra.mxu0 0.0
    %2410 = vmatprep.subr.mxu0 0.0
    %2411 = vmatpush1.msra.mxu0 0.0
    %2412 = vmatprep.subr.mxu0 0.0
    %2413 = vmatpush1.msra.mxu0 0.0
    %2414 = vmatprep.subr.mxu0 0.0
    %2415 = vmatpush1.msra.mxu0 0.0
    %2416 = vmatprep.subr.mxu0 0.0
    %2417 = vmatpush1.msra.mxu0 0.0
    %2418 = vmatprep.subr.mxu0 0.0
    %2419 = vmatpush1.msra.mxu0 0.0
    %2420 = vmatprep.subr.mxu0 0.0
    %2421 = vmatpush1.msra.mxu0 0.0
    %2422 = vmatprep.subr.mxu0 0.0
    %2423 = vmatpush1.msra.mxu0 0.0
    %2424 = vmatprep.subr.mxu0 0.0
    %2425 = vmatpush1.msra.mxu0 0.0
    %2426 = vmatprep.subr.mxu0 0.0
    %2427 = vmatpush1.msra.mxu0 0.0
    %2428 = vmatprep.subr.mxu0 0.0
    %2429 = vmatpush1.msra.mxu0 0.0
    %2430 = vmatprep.subr.mxu0 0.0
    %2431 = vmatpush1.msra.mxu0 0.0
    %2432 = vmatprep.subr.mxu0 0.0
    %2433 = vmatpush1.msra.mxu0 0.0
    %2434 = vmatprep.subr.mxu0 0.0
    %2435 = vmatpush1.msra.mxu0 0.0
    %2436 = vmatprep.subr.mxu0 0.0
    %2437 = vmatpush1.msra.mxu0 0.0
    %2438 = vmatprep.subr.mxu0 0.0
    %2439 = vmatpush1.msra.mxu0 0.0
    %2440 = vmatprep.subr.mxu0 0.0
    %2441 = vmatpush1.msra.mxu0 0.0
    %2442 = vmatprep.subr.mxu0 0.0
    %2443 = vmatpush1.msra.mxu0 0.0
    %2444 = vmatprep.mubr.f32.mxu0 0.0
    %2445 = vmatmul.mubr.f32.gmra.mrb[0].mxu0 %v2378
    %v2446 = vpop.f32.mrb[0].mxu0
    %v2447 = vadd.f32 %v2375, %v2446
    %v2448 = vpop.f32.mrb[0].mxu0
    %2449 = vdwg.mxu0
    %vm2450 = vcmask 7168
    %v2451 = vsel %vm2450, %v2447, 0.0
    %2452 = vadd.xlane.f32.xlu0 %v2451
    %v2453 = vpop.xlane.xlu0 %2452
    %v2454 = vrot.slane %v2453, 4
    %v2455 = vadd.f32 %v2453, %v2454
    %v2456 = vrot.slane %v2455, 2
    %v2457 = vadd.f32 %v2455, %v2456
    %v2458 = vrot.slane %v2457, 1
    %v2459 = vadd.f32 %v2457, %v2458
    %s2460 = vtos %v2459
    %v2461 = vstv %s2460
    %vm2462 = vcmask 0
    %2463 = vst.msk [vmem:[#allocation3] sm:$0x1] %vm2462, %v2461
    // Predicated region
    $region70: #{schnet_force_pbc_forward.1} parent=1 // pred_check
      _
    $region71: #{schnet_force_pbc_forward.1} parent=1 // pred_check_branch
      %2465 = sbr.rel (0) target = $region73
    $region72: #{schnet_force_pbc_forward.1} parent=1 // pred_region
      %s2467 = ssub.s32 16, 16
      %2468 = vsyncadd [#allocation4], %s2467
      %s2470 = sshll.u32 [#allocation3], 4
      %s2471 = int_to_ptr.vmem [resolvable:$true] %s2470
      %2473 = dma.vmem_to_hbm [thread:$0]  %s2471, 16, %s17, [#allocation4]
    $region73: #{schnet_force_pbc_forward.1} parent=1 // pred_fallthru
      _
    // Predicated region
    $region74: #{schnet_force_pbc_forward.1} parent=1 // pred_check
      _
    $region75: #{schnet_force_pbc_forward.1} parent=1 // pred_check_branch
      %2475 = sbr.rel (0) target = $region77
    $region76: #{schnet_force_pbc_forward.1} parent=1 // pred_region
      %2476 = dma.done [#allocation4], 16
    $region77: #{schnet_force_pbc_forward.1} parent=1 // pred_fallthru
      _
    %2477 = vsyncpa [#allocation4], 1

</llo_original>
